<compile_context>
chip_gen: v5e
topology: v5e:2x2
jax: 0.10.0
libtpu: 0.0.40
codegen_flags: <defaults>
</compile_context>

<pallas_src>
import math

import jax
import jax.numpy as jnp
from jax import lax
from jax.experimental import pallas as pl
from jax.experimental.pallas import tpu as pltpu  # noqa: F401  (TPU backend assumed)

# ----------------------------- model hyper-params -----------------------------
DIM = 32            # hidden dim ("dim" in the torch module; small for the demo)
NFEAT = 19          # nfeat_node
NC_EDGE = 1         # nc_edge_hidden -> PotConv mode='r'
CUTOFF = 5.0
N_BLOCK = 3
LEAKY_SLOPE = 0.01
LOG2 = math.log(2.0)

# TODO(synk): Morse() class not provided; standard Morse with fixed (D, a, r0),
# ignoring z_i / z_j.
MORSE_D, MORSE_A, MORSE_R0 = 1.0, 1.0, 1.5
BN_EPS = 1e-5       # BatchNorm1d(1) in eval mode with init running stats.


# --------------------------- small in-kernel helpers ---------------------------
def _sigmoid(x):
    return 1.0 / (1.0 + jnp.exp(-x))


def _softplus(x):
    return jnp.log(1.0 + jnp.exp(-jnp.abs(x))) + jnp.maximum(x, 0.0)


def _ssp(x):          # shifted softplus (Act('ssp'))
    return _softplus(x) - LOG2


def _leaky(x):
    return jnp.where(x >= 0, x, LEAKY_SLOPE * x)


def _dot(a, b):
    return jnp.dot(a, b, preferred_element_type=jnp.float32)


# --------------------------- pallas_call plumbing ---------------------------
def _spec(shape):
    nd = len(shape)
    return pl.BlockSpec(tuple(shape), lambda i, _nd=nd: (0,) * _nd)


def _pcall(kernel, out_shapes, *args):
    """Whole-array blocks, grid=(1,): all tensors are tiny and fit VMEM."""
    multi = isinstance(out_shapes, (tuple, list))
    outs = tuple(out_shapes) if multi else (out_shapes,)
    out_specs = tuple(_spec(o.shape) for o in outs)
    return pl.pallas_call(
        kernel,
        out_shape=outs if multi else out_shapes,
        grid=(1,),
        in_specs=[_spec(a.shape) for a in args],
        out_specs=out_specs if multi else out_specs[0],
    )(*args)


# ------------------------------- Pallas kernels -------------------------------
def _trunk_kernel(
    # graph data
    x_ref, ew_ref, ea_ref, src_col_ref, dst_col_ref, dst_row_ref,
    # lin0
    w0, b0,
    # PotConv block 0 (lin1 split by input columns; lin2; lin3)
    p_w1a, p_w1b, p_w1w, p_w1e, p_w2, p_b2, p_w3, p_b3,
    # NNConv block 1
    a_m0w, a_m0b, a_m1w, a_m1b, a_w1, a_w2, a_b2, a_w3, a_b3,
    # NNConv block 2
    b_m0w, b_m0b, b_m1w, b_m1b, b_w1, b_w2, b_b2, b_w3, b_b3,
    # GRU (packed gates, PyTorch r|z|n order)
    g_wx, g_wh, g_bih, g_bhh,
    # output
    out_ref,
):
    N, D = out_ref.shape
    E = ew_ref.shape[0]

    x = x_ref[...]
    ew = ew_ref[...]                                   # [E, 1] raw distance
    ea = ea_ref[...]                                   # [E, 1] edge_attr

    # One-hot gather/scatter matrices built in-kernel from int32 index vectors.
    iota_en = lax.broadcasted_iota(jnp.int32, (E, N), 1)
    g_src = (src_col_ref[...] == iota_en).astype(jnp.float32)   # [E,N] gather x_j
    g_dst = (dst_col_ref[...] == iota_en).astype(jnp.float32)   # [E,N] gather x_i
    iota_ne = lax.broadcasted_iota(jnp.int32, (N, E), 0)
    s_dst = (dst_row_ref[...] == iota_ne).astype(jnp.float32)   # [N,E] scatter->i
    inv_deg = 1.0 / jnp.maximum(jnp.sum(s_dst, axis=1, keepdims=True), 1.0)

    def gru(m, h):
        gx = _dot(m, g_wx[...]) + g_bih[...]           # [N, 3D]
        gh = _dot(h, g_wh[...]) + g_bhh[...]
        r = _sigmoid(gx[:, :D] + gh[:, :D])
        z = _sigmoid(gx[:, D:2 * D] + gh[:, D:2 * D])
        n = jnp.tanh(gx[:, 2 * D:] + r * gh[:, 2 * D:])
        return (1.0 - z) * n + z * h

    # lin0 + leaky_relu; GRU hidden initialized with it
    out = _leaky(_dot(x, w0[...]) + b0[...])
    h = out

    # ---------------- block 0: PotConv (morse, mode='r') ----------------
    xi = _dot(g_dst, out)                              # x_i (center) [E, D]
    xj = _dot(g_src, out)                              # x_j (neighbor)
    dr = ew - MORSE_R0
    w_pot = MORSE_D * (jnp.exp(-2.0 * MORSE_A * dr) - 2.0 * jnp.exp(-MORSE_A * dr))
    w_pot = w_pot / jnp.sqrt(1.0 + BN_EPS)             # BatchNorm1d(1), eval stats
    # lin1(cat([x_i, x_j, edge_weight, edge_attr])) expressed without a concat
    lin = (_dot(xi, p_w1a[...]) + _dot(xj, p_w1b[...])
           + ew * p_w1w[...] + ea * p_w1e[...])        # [E, 2D]
    msg = lin * w_pot
    agg = _dot(s_dst, msg) * inv_deg                   # scatter-mean over centers
    hid = _ssp(_dot(agg, p_w2[...]) + p_b2[...])
    m = _leaky(_dot(hid, p_w3[...]) + p_b3[...])       # [N, D]
    h = gru(m, h)
    out = h

    # ---------------- blocks 1, 2: NNConv ----------------
    for (m0w, m0b, m1w, m1b, w1, w2, b2, w3, b3) in (
        (a_m0w, a_m0b, a_m1w, a_m1b, a_w1, a_w2, a_b2, a_w3, a_b3),
        (b_m0w, b_m0b, b_m1w, b_m1b, b_w1, b_w2, b_b2, b_w3, b_b3),
    ):
        h1 = jnp.maximum(ea * m0w[...] + m0b[...], 0.0)       # Linear(1,32)+ReLU
        w_mlp = _dot(h1, m1w[...]) + m1b[...]                 # Linear(32,D) -> [E,D]
        cutc = jnp.cos(ew * (math.pi / CUTOFF)) * 0.5 + 0.5   # cosine cutoff
        xl = _dot(out, w1[...])                               # lin1 (bias=False)
        xj = _dot(g_src, xl)                                  # gather x_j
        msg = xj * (w_mlp * cutc)
        agg = _dot(s_dst, msg) * inv_deg                      # scatter-mean
        hid = _ssp(_dot(agg, w2[...]) + b2[...])
        m = _leaky(_dot(hid, w3[...]) + b3[...])
        h = gru(m, h)
        out = h

    out_ref[...] = out


def _readout_kernel(
    out_in_ref, ref_shift_ref, batch_row_ref,
    # Set2Set LSTM (packed gates i|f|g|o; x-weights split by q / r halves)
    l_wxq, l_wxr, l_wh, l_b,
    # energy head (lin1 split by q / r halves; lin2)
    e_w1q, e_w1r, e_b1, e_w2, e_b2,
    # force head
    f_w1, f_b1, f_w2, f_b2,
    # stress head
    s_w, s_b,
    # outputs
    energy_ref, forces_ref, stress_ref,
):
    out = out_in_ref[...]
    N, D = out.shape
    B = energy_ref.shape[0]

    # out1 = out + atom_ref[z] + energy_ref[z]; the [N,1] shift broadcasts over
    # all D channels, exactly as torch's [N,dim] + [N,1] broadcasting does.
    out1 = out + ref_shift_ref[...]

    iota_bn = lax.broadcasted_iota(jnp.int32, (B, N), 0)
    seg = (batch_row_ref[...] == iota_bn).astype(jnp.float32)   # [B, N]
    cnt = jnp.maximum(jnp.sum(seg, axis=1, keepdims=True), 1.0)

    out1_t = out1.T                                    # hoisted out of the loop

    q = jnp.zeros((B, D), jnp.float32)                 # LSTM output / q-part
    r = jnp.zeros((B, D), jnp.float32)                 # readout r-part
    hs = jnp.zeros((B, D), jnp.float32)
    cs = jnp.zeros((B, D), jnp.float32)

    for _ in range(3):                                 # Set2Set processing_steps=3
        gates = (_dot(q, l_wxq[...]) + _dot(r, l_wxr[...])
                 + _dot(hs, l_wh[...]) + l_b[...])     # [B, 4D]
        ig = _sigmoid(gates[:, :D])
        fg = _sigmoid(gates[:, D:2 * D])
        gg = jnp.tanh(gates[:, 2 * D:3 * D])
        og = _sigmoid(gates[:, 3 * D:])
        cs = fg * cs + ig * gg
        hs = og * jnp.tanh(cs)
        q = hs
        # attention logits for every (graph, node) pair, then per-graph softmax
        e_bn = _dot(q, out1_t)                         # [B, N]
        masked = jnp.where(seg > 0, e_bn, -1e30)
        emax = jnp.max(masked, axis=1, keepdims=True)
        ae = jnp.exp(masked - emax)                    # 0 off-segment
        denom = jnp.sum(ae, axis=1, keepdims=True)
        a_bn = ae / denom
        r = _dot(a_bn, out1)                           # weighted scatter-add [B,D]

    # energy = lin2(leaky_relu(lin1(q_star)))
    eh = _leaky(_dot(q, e_w1q[...]) + _dot(r, e_w1r[...]) + e_b1[...])
    energy_ref[...] = _dot(eh, e_w2[...]) + e_b2[...]

    # TODO(synk): Forces(dim)/Stress(dim) classes not provided; synthesized as
    # small deterministic heads with the documented output shapes.
    fh = _ssp(_dot(out, f_w1[...]) + f_b1[...])
    forces_ref[...] = _dot(fh, f_w2[...]) + f_b2[...]            # [N, 3]
    s_node = _dot(out, s_w[...]) + s_b[...]                      # [N, 6]
    stress_ref[...] = _dot(seg, s_node) / cnt                    # per-graph mean


# ------------------------------- full forward -------------------------------
def cggru_forward(params, x, z, batch, src, dst, edge_weight, edge_attr, num_graphs):
    N = x.shape[0]
    E = src.shape[0]
    B = num_graphs
    D = DIM

    ew = edge_weight.reshape(E, 1).astype(jnp.float32)
    ea = edge_attr.reshape(E, 1).astype(jnp.float32)
    src_col = src.reshape(E, 1).astype(jnp.int32)
    dst_col = dst.reshape(E, 1).astype(jnp.int32)
    dst_row = dst.reshape(1, E).astype(jnp.int32)
    batch_row = batch.reshape(1, N).astype(jnp.int32)

    p = params
    c0, c1, c2 = p["convs"]

    trunk_args = [
        x.astype(jnp.float32), ew, ea, src_col, dst_col, dst_row,
        p["lin0_w"], p["lin0_b"],
        c0["w1a"], c0["w1b"], c0["w1w"], c0["w1e"],
        c0["w2"], c0["b2"], c0["w3"], c0["b3"],
        c1["m0w"], c1["m0b"], c1["m1w"], c1["m1b"],
        c1["w1"], c1["w2"], c1["b2"], c1["w3"], c1["b3"],
        c2["m0w"], c2["m0b"], c2["m1w"], c2["m1b"],
        c2["w1"], c2["w2"], c2["b2"], c2["w3"], c2["b3"],
        p["gru_wx"], p["gru_wh"], p["gru_bih"], p["gru_bhh"],
    ]
    out = _pcall(_trunk_kernel,
                 jax.ShapeDtypeStruct((N, D), jnp.float32),
                 *trunk_args)

    # per-atom reference shifts: tiny [100,1] table gathers stay in XLA glue
    ref_shift = p["atom_ref"][z] + p["energy_ref"][z]            # [N, 1]

    s2s = p["set2set"]
    readout_args = [
        out, ref_shift, batch_row,
        s2s["wxq"], s2s["wxr"], s2s["wh"], s2s["b"],
        p["lin1_wq"], p["lin1_wr"], p["lin1_b"], p["lin2_w"], p["lin2_b"],
        p["force_w1"], p["force_b1"], p["force_w2"], p["force_b2"],
        p["stress_w"], p["stress_b"],
    ]
    energy, forces, stress = _pcall(
        _readout_kernel,
        (jax.ShapeDtypeStruct((B, 1), jnp.float32),
         jax.ShapeDtypeStruct((N, 3), jnp.float32),
         jax.ShapeDtypeStruct((B, 6), jnp.float32)),
        *readout_args)
    return energy.reshape(-1), forces, stress


# ---------------------------- deterministic init ----------------------------
# All weights are created already in [in, out] layout, biases as (1, out), and
# GRU/LSTM gate weights packed wide (no per-call transposes / reshapes).
def init_params(key):
    keys = jax.random.split(key, 64)
    kit = iter(keys)

    def w(in_f, out_f):
        s = 1.0 / math.sqrt(in_f)
        return jax.random.uniform(next(kit), (in_f, out_f), jnp.float32, -s, s)

    def b(out_f):
        return jnp.zeros((1, out_f), jnp.float32)

    D = DIM
    params = {"lin0_w": w(NFEAT, D), "lin0_b": b(D)}

    # PotConv: lin1 = Linear(2D + nc_edge + 1 -> 2D, bias=False), split by the
    # concat layout [x_i | x_j | edge_weight | edge_attr]; lin2; lin3.
    w1_full = w(2 * D + NC_EDGE + 1, 2 * D)
    conv0 = {
        "w1a": w1_full[:D], "w1b": w1_full[D:2 * D],
        "w1w": w1_full[2 * D:2 * D + 1], "w1e": w1_full[2 * D + 1:],
        "w2": w(2 * D, 2 * D), "b2": b(2 * D),
        "w3": w(2 * D, D), "b3": b(D),
    }
    convs = [conv0]
    for _ in range(N_BLOCK - 1):
        convs.append({
            "m0w": w(NC_EDGE, 32), "m0b": b(32),       # mlp Linear(1, 32)
            "m1w": w(32, D), "m1b": b(D),              # mlp Linear(32, D)
            "w1": w(D, D),                             # lin1, bias=False
            "w2": w(D, D), "b2": b(D),
            "w3": w(D, D), "b3": b(D),
        })
    params["convs"] = convs

    # GRU(dim, dim): gate weights packed [in, 3D] (PyTorch r|z|n column order)
    params["gru_wx"] = w(D, 3 * D)
    params["gru_wh"] = w(D, 3 * D)
    params["gru_bih"] = b(3 * D)
    params["gru_bhh"] = b(3 * D)

    # Set2Set LSTM(2D -> D): gates packed [*, 4D] (i|f|g|o); input weights split
    # by the q / r halves of q_star; b = b_ih + b_hh folded into one bias.
    s2s_wx = w(2 * D, 4 * D)
    params["set2set"] = {"wxq": s2s_wx[:D], "wxr": s2s_wx[D:],
                         "wh": w(D, 4 * D), "b": b(4 * D)}

    # energy head: lin1 (2D -> D) split by q / r halves; lin2 (D -> 1)
    l1 = w(2 * D, D)
    params["lin1_wq"] = l1[:D]
    params["lin1_wr"] = l1[D:]
    params["lin1_b"] = b(D)
    params["lin2_w"] = w(D, 1)
    params["lin2_b"] = b(1)

    # TODO(synk): `atomic_energy` table not provided -> deterministic synthetic values.
    params["atom_ref"] = jax.random.normal(next(kit), (100, 1), jnp.float32) * 0.1
    params["energy_ref"] = jax.random.normal(next(kit), (100, 1), jnp.float32) * 0.1

    params["force_w1"] = w(D, D)
    params["force_b1"] = b(D)
    params["force_w2"] = w(D, 3)
    params["force_b2"] = b(3)
    params["stress_w"] = w(D, 6)
    params["stress_b"] = b(6)
    return params


# ------------------------------------ main ------------------------------------
if __name__ == "__main__":
    key = jax.random.PRNGKey(0)
    kp, kd = jax.random.split(key)
    params = init_params(kp)

    N, E, B = 16, 32, 2                     # nodes, edges, graphs
    ks = jax.random.split(kd, 8)
    x = jax.random.normal(ks[0], (N, NFEAT), jnp.float32)          # node features
    z = jax.random.randint(ks[1], (N,), 1, 90)                     # atomic numbers
    batch = jnp.repeat(jnp.arange(B, dtype=jnp.int32), N // B)     # graph assignment
    # edges confined within each graph
    egraph = jnp.repeat(jnp.arange(B, dtype=jnp.int32), E // B)
    src = jax.random.randint(ks[2], (E,), 0, N // B) + egraph * (N // B)   # neighbor j
    dst = jax.random.randint(ks[3], (E,), 0, N // B) + egraph * (N // B)   # center   i
    edge_weight = jax.random.uniform(ks[4], (E,), jnp.float32, 0.8, CUTOFF)
    edge_attr = edge_weight.reshape(E, 1)                          # nc_edge_hidden == 1

    run = jax.jit(cggru_forward, static_argnames=("num_graphs",))
    energy, forces, stress = run(params, x, z, batch, src, dst,
                                 edge_weight, edge_attr, num_graphs=B)
    jax.block_until_ready((energy, forces, stress))

    assert energy.shape == (B,)
    assert forces.shape == (N, 3)
    assert stress.shape == (B, 6)
    assert bool(jnp.all(jnp.isfinite(energy)))
    assert bool(jnp.all(jnp.isfinite(forces)))
    assert bool(jnp.all(jnp.isfinite(stress)))
    print("KERNEL_OK")
</pallas_src>

<mosaic_0001>
module attributes {stable_mosaic.version = 11 : i64} {
  func.func @_trunk_kernel(%arg0: i32, %arg1: memref<16x19xf32, #tpu.memory_space<vmem>>, %arg2: memref<32x1xf32, #tpu.memory_space<vmem>>, %arg3: memref<32x1xf32, #tpu.memory_space<vmem>>, %arg4: memref<32x1xi32, #tpu.memory_space<vmem>>, %arg5: memref<32x1xi32, #tpu.memory_space<vmem>>, %arg6: memref<1x32xi32, #tpu.memory_space<vmem>>, %arg7: memref<19x32xf32, #tpu.memory_space<vmem>>, %arg8: memref<1x32xf32, #tpu.memory_space<vmem>>, %arg9: memref<32x64xf32, #tpu.memory_space<vmem>>, %arg10: memref<32x64xf32, #tpu.memory_space<vmem>>, %arg11: memref<1x64xf32, #tpu.memory_space<vmem>>, %arg12: memref<1x64xf32, #tpu.memory_space<vmem>>, %arg13: memref<64x64xf32, #tpu.memory_space<vmem>>, %arg14: memref<1x64xf32, #tpu.memory_space<vmem>>, %arg15: memref<64x32xf32, #tpu.memory_space<vmem>>, %arg16: memref<1x32xf32, #tpu.memory_space<vmem>>, %arg17: memref<1x32xf32, #tpu.memory_space<vmem>>, %arg18: memref<1x32xf32, #tpu.memory_space<vmem>>, %arg19: memref<32x32xf32, #tpu.memory_space<vmem>>, %arg20: memref<1x32xf32, #tpu.memory_space<vmem>>, %arg21: memref<32x32xf32, #tpu.memory_space<vmem>>, %arg22: memref<32x32xf32, #tpu.memory_space<vmem>>, %arg23: memref<1x32xf32, #tpu.memory_space<vmem>>, %arg24: memref<32x32xf32, #tpu.memory_space<vmem>>, %arg25: memref<1x32xf32, #tpu.memory_space<vmem>>, %arg26: memref<1x32xf32, #tpu.memory_space<vmem>>, %arg27: memref<1x32xf32, #tpu.memory_space<vmem>>, %arg28: memref<32x32xf32, #tpu.memory_space<vmem>>, %arg29: memref<1x32xf32, #tpu.memory_space<vmem>>, %arg30: memref<32x32xf32, #tpu.memory_space<vmem>>, %arg31: memref<32x32xf32, #tpu.memory_space<vmem>>, %arg32: memref<1x32xf32, #tpu.memory_space<vmem>>, %arg33: memref<32x32xf32, #tpu.memory_space<vmem>>, %arg34: memref<1x32xf32, #tpu.memory_space<vmem>>, %arg35: memref<32x96xf32, #tpu.memory_space<vmem>>, %arg36: memref<32x96xf32, #tpu.memory_space<vmem>>, %arg37: memref<1x96xf32, #tpu.memory_space<vmem>>, %arg38: memref<1x96xf32, #tpu.memory_space<vmem>>, %arg39: memref<16x32xf32, #tpu.memory_space<vmem>>) attributes {dimension_semantics = [#tpu.dimension_semantics<arbitrary>], iteration_bounds = array<i64: 1>, scalar_prefetch = 0 : i64, scratch_operands = 0 : i64, tpu.core_type = #tpu.core_type<tc>, window_params = [{pipeline_mode = #tpu.pipeline_mode<synchronous>, transform_indices = @transform_0, window_bounds = array<i64: 16, 19>}, {pipeline_mode = #tpu.pipeline_mode<synchronous>, transform_indices = @transform_1, window_bounds = array<i64: 32, 1>}, {pipeline_mode = #tpu.pipeline_mode<synchronous>, transform_indices = @transform_2, window_bounds = array<i64: 32, 1>}, {pipeline_mode = #tpu.pipeline_mode<synchronous>, transform_indices = @transform_3, window_bounds = array<i64: 32, 1>}, {pipeline_mode = #tpu.pipeline_mode<synchronous>, transform_indices = @transform_4, window_bounds = array<i64: 32, 1>}, {pipeline_mode = #tpu.pipeline_mode<synchronous>, transform_indices = @transform_5, window_bounds = array<i64: 1, 32>}, {pipeline_mode = #tpu.pipeline_mode<synchronous>, transform_indices = @transform_6, window_bounds = array<i64: 19, 32>}, {pipeline_mode = #tpu.pipeline_mode<synchronous>, transform_indices = @transform_7, window_bounds = array<i64: 1, 32>}, {pipeline_mode = #tpu.pipeline_mode<synchronous>, transform_indices = @transform_8, window_bounds = array<i64: 32, 64>}, {pipeline_mode = #tpu.pipeline_mode<synchronous>, transform_indices = @transform_9, window_bounds = array<i64: 32, 64>}, {pipeline_mode = #tpu.pipeline_mode<synchronous>, transform_indices = @transform_10, window_bounds = array<i64: 1, 64>}, {pipeline_mode = #tpu.pipeline_mode<synchronous>, transform_indices = @transform_11, window_bounds = array<i64: 1, 64>}, {pipeline_mode = #tpu.pipeline_mode<synchronous>, transform_indices = @transform_12, window_bounds = array<i64: 64, 64>}, {pipeline_mode = #tpu.pipeline_mode<synchronous>, transform_indices = @transform_13, window_bounds = array<i64: 1, 64>}, {pipeline_mode = #tpu.pipeline_mode<synchronous>, transform_indices = @transform_14, window_bounds = array<i64: 64, 32>}, {pipeline_mode = #tpu.pipeline_mode<synchronous>, transform_indices = @transform_15, window_bounds = array<i64: 1, 32>}, {pipeline_mode = #tpu.pipeline_mode<synchronous>, transform_indices = @transform_16, window_bounds = array<i64: 1, 32>}, {pipeline_mode = #tpu.pipeline_mode<synchronous>, transform_indices = @transform_17, window_bounds = array<i64: 1, 32>}, {pipeline_mode = #tpu.pipeline_mode<synchronous>, transform_indices = @transform_18, window_bounds = array<i64: 32, 32>}, {pipeline_mode = #tpu.pipeline_mode<synchronous>, transform_indices = @transform_19, window_bounds = array<i64: 1, 32>}, {pipeline_mode = #tpu.pipeline_mode<synchronous>, transform_indices = @transform_20, window_bounds = array<i64: 32, 32>}, {pipeline_mode = #tpu.pipeline_mode<synchronous>, transform_indices = @transform_21, window_bounds = array<i64: 32, 32>}, {pipeline_mode = #tpu.pipeline_mode<synchronous>, transform_indices = @transform_22, window_bounds = array<i64: 1, 32>}, {pipeline_mode = #tpu.pipeline_mode<synchronous>, transform_indices = @transform_23, window_bounds = array<i64: 32, 32>}, {pipeline_mode = #tpu.pipeline_mode<synchronous>, transform_indices = @transform_24, window_bounds = array<i64: 1, 32>}, {pipeline_mode = #tpu.pipeline_mode<synchronous>, transform_indices = @transform_25, window_bounds = array<i64: 1, 32>}, {pipeline_mode = #tpu.pipeline_mode<synchronous>, transform_indices = @transform_26, window_bounds = array<i64: 1, 32>}, {pipeline_mode = #tpu.pipeline_mode<synchronous>, transform_indices = @transform_27, window_bounds = array<i64: 32, 32>}, {pipeline_mode = #tpu.pipeline_mode<synchronous>, transform_indices = @transform_28, window_bounds = array<i64: 1, 32>}, {pipeline_mode = #tpu.pipeline_mode<synchronous>, transform_indices = @transform_29, window_bounds = array<i64: 32, 32>}, {pipeline_mode = #tpu.pipeline_mode<synchronous>, transform_indices = @transform_30, window_bounds = array<i64: 32, 32>}, {pipeline_mode = #tpu.pipeline_mode<synchronous>, transform_indices = @transform_31, window_bounds = array<i64: 1, 32>}, {pipeline_mode = #tpu.pipeline_mode<synchronous>, transform_indices = @transform_32, window_bounds = array<i64: 32, 32>}, {pipeline_mode = #tpu.pipeline_mode<synchronous>, transform_indices = @transform_33, window_bounds = array<i64: 1, 32>}, {pipeline_mode = #tpu.pipeline_mode<synchronous>, transform_indices = @transform_34, window_bounds = array<i64: 32, 96>}, {pipeline_mode = #tpu.pipeline_mode<synchronous>, transform_indices = @transform_35, window_bounds = array<i64: 32, 96>}, {pipeline_mode = #tpu.pipeline_mode<synchronous>, transform_indices = @transform_36, window_bounds = array<i64: 1, 96>}, {pipeline_mode = #tpu.pipeline_mode<synchronous>, transform_indices = @transform_37, window_bounds = array<i64: 1, 96>}, {pipeline_mode = #tpu.pipeline_mode<synchronous>, transform_indices = @transform_38, window_bounds = array<i64: 16, 32>}]} {
    %c0 = arith.constant 0 : index
    %c0_0 = arith.constant 0 : index
    %0 = vector.load %arg1[%c0, %c0_0] : memref<16x19xf32, #tpu.memory_space<vmem>>, vector<16x19xf32>
    %c0_1 = arith.constant 0 : index
    %c0_2 = arith.constant 0 : index
    %1 = vector.load %arg2[%c0_1, %c0_2] : memref<32x1xf32, #tpu.memory_space<vmem>>, vector<32x1xf32>
    %c0_3 = arith.constant 0 : index
    %c0_4 = arith.constant 0 : index
    %2 = vector.load %arg3[%c0_3, %c0_4] : memref<32x1xf32, #tpu.memory_space<vmem>>, vector<32x1xf32>
    %3 = tpu.iota {dimensions = array<i32: 1>} : vector<32x16xi32>
    %c0_5 = arith.constant 0 : index
    %c0_6 = arith.constant 0 : index
    %4 = vector.load %arg4[%c0_5, %c0_6] : memref<32x1xi32, #tpu.memory_space<vmem>>, vector<32x1xi32>
    %5 = vector.broadcast %4 : vector<32x1xi32> to vector<32x16xi32>
    %6 = arith.cmpi eq, %5, %3 : vector<32x16xi32>
    %7 = arith.extui %6 : vector<32x16xi1> to vector<32x16xi32>
    %8 = arith.sitofp %7 : vector<32x16xi32> to vector<32x16xf32>
    %c0_7 = arith.constant 0 : index
    %c0_8 = arith.constant 0 : index
    %9 = vector.load %arg5[%c0_7, %c0_8] : memref<32x1xi32, #tpu.memory_space<vmem>>, vector<32x1xi32>
    %10 = vector.broadcast %9 : vector<32x1xi32> to vector<32x16xi32>
    %11 = arith.cmpi eq, %10, %3 : vector<32x16xi32>
    %12 = arith.extui %11 : vector<32x16xi1> to vector<32x16xi32>
    %13 = arith.sitofp %12 : vector<32x16xi32> to vector<32x16xf32>
    %14 = tpu.iota {dimensions = array<i32: 0>} : vector<16x32xi32>
    %c0_9 = arith.constant 0 : index
    %c0_10 = arith.constant 0 : index
    %15 = vector.load %arg6[%c0_9, %c0_10] : memref<1x32xi32, #tpu.memory_space<vmem>>, vector<1x32xi32>
    %16 = vector.broadcast %15 : vector<1x32xi32> to vector<16x32xi32>
    %17 = arith.cmpi eq, %16, %14 : vector<16x32xi32>
    %18 = arith.extui %17 : vector<16x32xi1> to vector<16x32xi32>
    %19 = arith.sitofp %18 : vector<16x32xi32> to vector<16x32xf32>
    %cst = arith.constant dense<0.000000e+00> : vector<16xf32>
    %20 = vector.multi_reduction <add>, %19, %cst [1] : vector<16x32xf32> to vector<16xf32>
    %21 = vector.shape_cast %20 : vector<16xf32> to vector<16x1xf32>
    %cst_11 = arith.constant 1.000000e+00 : f32
    %22 = vector.broadcast %cst_11 : f32 to vector<16x1xf32>
    %23 = arith.maximumf %21, %22 : vector<16x1xf32>
    %cst_12 = arith.constant 1.000000e+00 : f32
    %24 = vector.broadcast %cst_12 : f32 to vector<16x1xf32>
    %25 = arith.divf %24, %23 : vector<16x1xf32>
    %c0_13 = arith.constant 0 : index
    %c0_14 = arith.constant 0 : index
    %26 = vector.load %arg7[%c0_13, %c0_14] : memref<19x32xf32, #tpu.memory_space<vmem>>, vector<19x32xf32>
    %cst_15 = arith.constant dense<0.000000e+00> : vector<16x32xf32>
    %27 = tpu.matmul %0, %26, %cst_15 {dimension_numbers = #tpu.dot_dimension_numbers<[1], [0], [0], [1], [0, 0, 1, 1], [], []>} : vector<16x19xf32>, vector<19x32xf32>, vector<16x32xf32> -> vector<16x32xf32>
    %c0_16 = arith.constant 0 : index
    %c0_17 = arith.constant 0 : index
    %28 = vector.load %arg8[%c0_16, %c0_17] : memref<1x32xf32, #tpu.memory_space<vmem>>, vector<1x32xf32>
    %29 = vector.broadcast %28 : vector<1x32xf32> to vector<16x32xf32>
    %30 = arith.addf %27, %29 : vector<16x32xf32>
    %cst_18 = arith.constant 0.000000e+00 : f32
    %31 = vector.broadcast %cst_18 : f32 to vector<16x32xf32>
    %32 = arith.cmpf oge, %30, %31 : vector<16x32xf32>
    %cst_19 = arith.constant 0.00999999977 : f32
    %33 = vector.broadcast %cst_19 : f32 to vector<16x32xf32>
    %34 = arith.mulf %33, %30 : vector<16x32xf32>
    %35 = arith.select %32, %30, %34 : vector<16x32xi1>, vector<16x32xf32>
    %cst_20 = arith.constant dense<0.000000e+00> : vector<32x32xf32>
    %36 = tpu.matmul %13, %35, %cst_20 {dimension_numbers = #tpu.dot_dimension_numbers<[1], [0], [0], [1], [0, 0, 1, 1], [], []>} : vector<32x16xf32>, vector<16x32xf32>, vector<32x32xf32> -> vector<32x32xf32>
    %cst_21 = arith.constant dense<0.000000e+00> : vector<32x32xf32>
    %37 = tpu.matmul %8, %35, %cst_21 {dimension_numbers = #tpu.dot_dimension_numbers<[1], [0], [0], [1], [0, 0, 1, 1], [], []>} : vector<32x16xf32>, vector<16x32xf32>, vector<32x32xf32> -> vector<32x32xf32>
    %cst_22 = arith.constant 1.500000e+00 : f32
    %38 = vector.broadcast %cst_22 : f32 to vector<32x1xf32>
    %39 = arith.subf %1, %38 : vector<32x1xf32>
    %cst_23 = arith.constant -2.000000e+00 : f32
    %40 = vector.broadcast %cst_23 : f32 to vector<32x1xf32>
    %41 = arith.mulf %40, %39 : vector<32x1xf32>
    %42 = math.exp %41 : vector<32x1xf32>
    %cst_24 = arith.constant -1.000000e+00 : f32
    %43 = vector.broadcast %cst_24 : f32 to vector<32x1xf32>
    %44 = arith.mulf %43, %39 : vector<32x1xf32>
    %45 = math.exp %44 : vector<32x1xf32>
    %cst_25 = arith.constant 2.000000e+00 : f32
    %46 = vector.broadcast %cst_25 : f32 to vector<32x1xf32>
    %47 = arith.mulf %46, %45 : vector<32x1xf32>
    %48 = arith.subf %42, %47 : vector<32x1xf32>
    %cst_26 = arith.constant 1.000000e+00 : f32
    %49 = vector.broadcast %cst_26 : f32 to vector<32x1xf32>
    %50 = arith.mulf %49, %48 : vector<32x1xf32>
    %cst_27 = arith.constant 1.000010e+00 : f32
    %51 = math.sqrt %cst_27 : f32
    %52 = vector.broadcast %51 : f32 to vector<32x1xf32>
    %53 = arith.divf %50, %52 : vector<32x1xf32>
    %c0_28 = arith.constant 0 : index
    %c0_29 = arith.constant 0 : index
    %54 = vector.load %arg9[%c0_28, %c0_29] : memref<32x64xf32, #tpu.memory_space<vmem>>, vector<32x64xf32>
    %cst_30 = arith.constant dense<0.000000e+00> : vector<32x64xf32>
    %55 = tpu.matmul %36, %54, %cst_30 {dimension_numbers = #tpu.dot_dimension_numbers<[1], [0], [0], [1], [0, 0, 1, 1], [], []>} : vector<32x32xf32>, vector<32x64xf32>, vector<32x64xf32> -> vector<32x64xf32>
    %c0_31 = arith.constant 0 : index
    %c0_32 = arith.constant 0 : index
    %56 = vector.load %arg10[%c0_31, %c0_32] : memref<32x64xf32, #tpu.memory_space<vmem>>, vector<32x64xf32>
    %cst_33 = arith.constant dense<0.000000e+00> : vector<32x64xf32>
    %57 = tpu.matmul %37, %56, %cst_33 {dimension_numbers = #tpu.dot_dimension_numbers<[1], [0], [0], [1], [0, 0, 1, 1], [], []>} : vector<32x32xf32>, vector<32x64xf32>, vector<32x64xf32> -> vector<32x64xf32>
    %58 = arith.addf %55, %57 : vector<32x64xf32>
    %c0_34 = arith.constant 0 : index
    %c0_35 = arith.constant 0 : index
    %59 = vector.load %arg11[%c0_34, %c0_35] : memref<1x64xf32, #tpu.memory_space<vmem>>, vector<1x64xf32>
    %60 = vector.broadcast %1 : vector<32x1xf32> to vector<32x64xf32>
    %61 = vector.broadcast %59 : vector<1x64xf32> to vector<32x64xf32>
    %62 = arith.mulf %60, %61 : vector<32x64xf32>
    %63 = arith.addf %58, %62 : vector<32x64xf32>
    %c0_36 = arith.constant 0 : index
    %c0_37 = arith.constant 0 : index
    %64 = vector.load %arg12[%c0_36, %c0_37] : memref<1x64xf32, #tpu.memory_space<vmem>>, vector<1x64xf32>
    %65 = vector.broadcast %2 : vector<32x1xf32> to vector<32x64xf32>
    %66 = vector.broadcast %64 : vector<1x64xf32> to vector<32x64xf32>
    %67 = arith.mulf %65, %66 : vector<32x64xf32>
    %68 = arith.addf %63, %67 : vector<32x64xf32>
    %69 = vector.broadcast %53 : vector<32x1xf32> to vector<32x64xf32>
    %70 = arith.mulf %68, %69 : vector<32x64xf32>
    %cst_38 = arith.constant dense<0.000000e+00> : vector<16x64xf32>
    %71 = tpu.matmul %19, %70, %cst_38 {dimension_numbers = #tpu.dot_dimension_numbers<[1], [0], [0], [1], [0, 0, 1, 1], [], []>} : vector<16x32xf32>, vector<32x64xf32>, vector<16x64xf32> -> vector<16x64xf32>
    %72 = vector.broadcast %25 : vector<16x1xf32> to vector<16x64xf32>
    %73 = arith.mulf %71, %72 : vector<16x64xf32>
    %c0_39 = arith.constant 0 : index
    %c0_40 = arith.constant 0 : index
    %74 = vector.load %arg13[%c0_39, %c0_40] : memref<64x64xf32, #tpu.memory_space<vmem>>, vector<64x64xf32>
    %cst_41 = arith.constant dense<0.000000e+00> : vector<16x64xf32>
    %75 = tpu.matmul %73, %74, %cst_41 {dimension_numbers = #tpu.dot_dimension_numbers<[1], [0], [0], [1], [0, 0, 1, 1], [], []>} : vector<16x64xf32>, vector<64x64xf32>, vector<16x64xf32> -> vector<16x64xf32>
    %c0_42 = arith.constant 0 : index
    %c0_43 = arith.constant 0 : index
    %76 = vector.load %arg14[%c0_42, %c0_43] : memref<1x64xf32, #tpu.memory_space<vmem>>, vector<1x64xf32>
    %77 = vector.broadcast %76 : vector<1x64xf32> to vector<16x64xf32>
    %78 = arith.addf %75, %77 : vector<16x64xf32>
    %79 = math.absf %78 : vector<16x64xf32>
    %cst_44 = arith.constant 0.000000e+00 : f32
    %80 = vector.broadcast %cst_44 : f32 to vector<16x64xf32>
    %81 = arith.subf %80, %79 : vector<16x64xf32>
    %82 = math.exp %81 : vector<16x64xf32>
    %cst_45 = arith.constant 1.000000e+00 : f32
    %83 = vector.broadcast %cst_45 : f32 to vector<16x64xf32>
    %84 = arith.addf %83, %82 : vector<16x64xf32>
    %85 = math.log %84 : vector<16x64xf32>
    %cst_46 = arith.constant 0.000000e+00 : f32
    %86 = vector.broadcast %cst_46 : f32 to vector<16x64xf32>
    %87 = arith.maximumf %78, %86 : vector<16x64xf32>
    %88 = arith.addf %85, %87 : vector<16x64xf32>
    %cst_47 = arith.constant 0.693147182 : f32
    %89 = vector.broadcast %cst_47 : f32 to vector<16x64xf32>
    %90 = arith.subf %88, %89 : vector<16x64xf32>
    %c0_48 = arith.constant 0 : index
    %c0_49 = arith.constant 0 : index
    %91 = vector.load %arg15[%c0_48, %c0_49] : memref<64x32xf32, #tpu.memory_space<vmem>>, vector<64x32xf32>
    %cst_50 = arith.constant dense<0.000000e+00> : vector<16x32xf32>
    %92 = tpu.matmul %90, %91, %cst_50 {dimension_numbers = #tpu.dot_dimension_numbers<[1], [0], [0], [1], [0, 0, 1, 1], [], []>} : vector<16x64xf32>, vector<64x32xf32>, vector<16x32xf32> -> vector<16x32xf32>
    %c0_51 = arith.constant 0 : index
    %c0_52 = arith.constant 0 : index
    %93 = vector.load %arg16[%c0_51, %c0_52] : memref<1x32xf32, #tpu.memory_space<vmem>>, vector<1x32xf32>
    %94 = vector.broadcast %93 : vector<1x32xf32> to vector<16x32xf32>
    %95 = arith.addf %92, %94 : vector<16x32xf32>
    %cst_53 = arith.constant 0.000000e+00 : f32
    %96 = vector.broadcast %cst_53 : f32 to vector<16x32xf32>
    %97 = arith.cmpf oge, %95, %96 : vector<16x32xf32>
    %cst_54 = arith.constant 0.00999999977 : f32
    %98 = vector.broadcast %cst_54 : f32 to vector<16x32xf32>
    %99 = arith.mulf %98, %95 : vector<16x32xf32>
    %100 = arith.select %97, %95, %99 : vector<16x32xi1>, vector<16x32xf32>
    %c0_55 = arith.constant 0 : index
    %c0_56 = arith.constant 0 : index
    %101 = vector.load %arg35[%c0_55, %c0_56] : memref<32x96xf32, #tpu.memory_space<vmem>>, vector<32x96xf32>
    %cst_57 = arith.constant dense<0.000000e+00> : vector<16x96xf32>
    %102 = tpu.matmul %100, %101, %cst_57 {dimension_numbers = #tpu.dot_dimension_numbers<[1], [0], [0], [1], [0, 0, 1, 1], [], []>} : vector<16x32xf32>, vector<32x96xf32>, vector<16x96xf32> -> vector<16x96xf32>
    %c0_58 = arith.constant 0 : index
    %c0_59 = arith.constant 0 : index
    %103 = vector.load %arg37[%c0_58, %c0_59] : memref<1x96xf32, #tpu.memory_space<vmem>>, vector<1x96xf32>
    %104 = vector.broadcast %103 : vector<1x96xf32> to vector<16x96xf32>
    %105 = arith.addf %102, %104 : vector<16x96xf32>
    %c0_60 = arith.constant 0 : index
    %c0_61 = arith.constant 0 : index
    %106 = vector.load %arg36[%c0_60, %c0_61] : memref<32x96xf32, #tpu.memory_space<vmem>>, vector<32x96xf32>
    %cst_62 = arith.constant dense<0.000000e+00> : vector<16x96xf32>
    %107 = tpu.matmul %35, %106, %cst_62 {dimension_numbers = #tpu.dot_dimension_numbers<[1], [0], [0], [1], [0, 0, 1, 1], [], []>} : vector<16x32xf32>, vector<32x96xf32>, vector<16x96xf32> -> vector<16x96xf32>
    %c0_63 = arith.constant 0 : index
    %c0_64 = arith.constant 0 : index
    %108 = vector.load %arg38[%c0_63, %c0_64] : memref<1x96xf32, #tpu.memory_space<vmem>>, vector<1x96xf32>
    %109 = vector.broadcast %108 : vector<1x96xf32> to vector<16x96xf32>
    %110 = arith.addf %107, %109 : vector<16x96xf32>
    %111 = vector.extract_strided_slice %105 {offsets = [0, 0], sizes = [16, 32], strides = [1, 1]} : vector<16x96xf32> to vector<16x32xf32>
    %112 = vector.extract_strided_slice %110 {offsets = [0, 0], sizes = [16, 32], strides = [1, 1]} : vector<16x96xf32> to vector<16x32xf32>
    %113 = arith.addf %111, %112 : vector<16x32xf32>
    %cst_65 = arith.constant 0.000000e+00 : f32
    %114 = vector.broadcast %cst_65 : f32 to vector<16x32xf32>
    %115 = arith.subf %114, %113 : vector<16x32xf32>
    %116 = math.exp %115 : vector<16x32xf32>
    %cst_66 = arith.constant 1.000000e+00 : f32
    %117 = vector.broadcast %cst_66 : f32 to vector<16x32xf32>
    %118 = arith.addf %117, %116 : vector<16x32xf32>
    %cst_67 = arith.constant 1.000000e+00 : f32
    %119 = vector.broadcast %cst_67 : f32 to vector<16x32xf32>
    %120 = arith.divf %119, %118 : vector<16x32xf32>
    %121 = vector.extract_strided_slice %105 {offsets = [0, 32], sizes = [16, 32], strides = [1, 1]} : vector<16x96xf32> to vector<16x32xf32>
    %122 = vector.extract_strided_slice %110 {offsets = [0, 32], sizes = [16, 32], strides = [1, 1]} : vector<16x96xf32> to vector<16x32xf32>
    %123 = arith.addf %121, %122 : vector<16x32xf32>
    %cst_68 = arith.constant 0.000000e+00 : f32
    %124 = vector.broadcast %cst_68 : f32 to vector<16x32xf32>
    %125 = arith.subf %124, %123 : vector<16x32xf32>
    %126 = math.exp %125 : vector<16x32xf32>
    %cst_69 = arith.constant 1.000000e+00 : f32
    %127 = vector.broadcast %cst_69 : f32 to vector<16x32xf32>
    %128 = arith.addf %127, %126 : vector<16x32xf32>
    %cst_70 = arith.constant 1.000000e+00 : f32
    %129 = vector.broadcast %cst_70 : f32 to vector<16x32xf32>
    %130 = arith.divf %129, %128 : vector<16x32xf32>
    %131 = vector.extract_strided_slice %105 {offsets = [0, 64], sizes = [16, 32], strides = [1, 1]} : vector<16x96xf32> to vector<16x32xf32>
    %132 = vector.extract_strided_slice %110 {offsets = [0, 64], sizes = [16, 32], strides = [1, 1]} : vector<16x96xf32> to vector<16x32xf32>
    %133 = arith.mulf %120, %132 : vector<16x32xf32>
    %134 = arith.addf %131, %133 : vector<16x32xf32>
    %135 = math.tanh %134 : vector<16x32xf32>
    %cst_71 = arith.constant 1.000000e+00 : f32
    %136 = vector.broadcast %cst_71 : f32 to vector<16x32xf32>
    %137 = arith.subf %136, %130 : vector<16x32xf32>
    %138 = arith.mulf %137, %135 : vector<16x32xf32>
    %139 = arith.mulf %130, %35 : vector<16x32xf32>
    %140 = arith.addf %138, %139 : vector<16x32xf32>
    %c0_72 = arith.constant 0 : index
    %c0_73 = arith.constant 0 : index
    %141 = vector.load %arg17[%c0_72, %c0_73] : memref<1x32xf32, #tpu.memory_space<vmem>>, vector<1x32xf32>
    %142 = vector.broadcast %2 : vector<32x1xf32> to vector<32x32xf32>
    %143 = vector.broadcast %141 : vector<1x32xf32> to vector<32x32xf32>
    %144 = arith.mulf %142, %143 : vector<32x32xf32>
    %c0_74 = arith.constant 0 : index
    %c0_75 = arith.constant 0 : index
    %145 = vector.load %arg18[%c0_74, %c0_75] : memref<1x32xf32, #tpu.memory_space<vmem>>, vector<1x32xf32>
    %146 = vector.broadcast %145 : vector<1x32xf32> to vector<32x32xf32>
    %147 = arith.addf %144, %146 : vector<32x32xf32>
    %cst_76 = arith.constant 0.000000e+00 : f32
    %148 = vector.broadcast %cst_76 : f32 to vector<32x32xf32>
    %149 = arith.maximumf %147, %148 : vector<32x32xf32>
    %c0_77 = arith.constant 0 : index
    %c0_78 = arith.constant 0 : index
    %150 = vector.load %arg19[%c0_77, %c0_78] : memref<32x32xf32, #tpu.memory_space<vmem>>, vector<32x32xf32>
    %cst_79 = arith.constant dense<0.000000e+00> : vector<32x32xf32>
    %151 = tpu.matmul %149, %150, %cst_79 {dimension_numbers = #tpu.dot_dimension_numbers<[1], [0], [0], [1], [0, 0, 1, 1], [], []>} : vector<32x32xf32>, vector<32x32xf32>, vector<32x32xf32> -> vector<32x32xf32>
    %c0_80 = arith.constant 0 : index
    %c0_81 = arith.constant 0 : index
    %152 = vector.load %arg20[%c0_80, %c0_81] : memref<1x32xf32, #tpu.memory_space<vmem>>, vector<1x32xf32>
    %153 = vector.broadcast %152 : vector<1x32xf32> to vector<32x32xf32>
    %154 = arith.addf %151, %153 : vector<32x32xf32>
    %cst_82 = arith.constant 0.628318548 : f32
    %155 = vector.broadcast %cst_82 : f32 to vector<32x1xf32>
    %156 = arith.mulf %1, %155 : vector<32x1xf32>
    %157 = math.cos %156 : vector<32x1xf32>
    %cst_83 = arith.constant 5.000000e-01 : f32
    %158 = vector.broadcast %cst_83 : f32 to vector<32x1xf32>
    %159 = arith.mulf %157, %158 : vector<32x1xf32>
    %cst_84 = arith.constant 5.000000e-01 : f32
    %160 = vector.broadcast %cst_84 : f32 to vector<32x1xf32>
    %161 = arith.addf %159, %160 : vector<32x1xf32>
    %c0_85 = arith.constant 0 : index
    %c0_86 = arith.constant 0 : index
    %162 = vector.load %arg21[%c0_85, %c0_86] : memref<32x32xf32, #tpu.memory_space<vmem>>, vector<32x32xf32>
    %cst_87 = arith.constant dense<0.000000e+00> : vector<16x32xf32>
    %163 = tpu.matmul %140, %162, %cst_87 {dimension_numbers = #tpu.dot_dimension_numbers<[1], [0], [0], [1], [0, 0, 1, 1], [], []>} : vector<16x32xf32>, vector<32x32xf32>, vector<16x32xf32> -> vector<16x32xf32>
    %cst_88 = arith.constant dense<0.000000e+00> : vector<32x32xf32>
    %164 = tpu.matmul %8, %163, %cst_88 {dimension_numbers = #tpu.dot_dimension_numbers<[1], [0], [0], [1], [0, 0, 1, 1], [], []>} : vector<32x16xf32>, vector<16x32xf32>, vector<32x32xf32> -> vector<32x32xf32>
    %165 = vector.broadcast %161 : vector<32x1xf32> to vector<32x32xf32>
    %166 = arith.mulf %154, %165 : vector<32x32xf32>
    %167 = arith.mulf %164, %166 : vector<32x32xf32>
    %cst_89 = arith.constant dense<0.000000e+00> : vector<16x32xf32>
    %168 = tpu.matmul %19, %167, %cst_89 {dimension_numbers = #tpu.dot_dimension_numbers<[1], [0], [0], [1], [0, 0, 1, 1], [], []>} : vector<16x32xf32>, vector<32x32xf32>, vector<16x32xf32> -> vector<16x32xf32>
    %169 = vector.broadcast %25 : vector<16x1xf32> to vector<16x32xf32>
    %170 = arith.mulf %168, %169 : vector<16x32xf32>
    %c0_90 = arith.constant 0 : index
    %c0_91 = arith.constant 0 : index
    %171 = vector.load %arg22[%c0_90, %c0_91] : memref<32x32xf32, #tpu.memory_space<vmem>>, vector<32x32xf32>
    %cst_92 = arith.constant dense<0.000000e+00> : vector<16x32xf32>
    %172 = tpu.matmul %170, %171, %cst_92 {dimension_numbers = #tpu.dot_dimension_numbers<[1], [0], [0], [1], [0, 0, 1, 1], [], []>} : vector<16x32xf32>, vector<32x32xf32>, vector<16x32xf32> -> vector<16x32xf32>
    %c0_93 = arith.constant 0 : index
    %c0_94 = arith.constant 0 : index
    %173 = vector.load %arg23[%c0_93, %c0_94] : memref<1x32xf32, #tpu.memory_space<vmem>>, vector<1x32xf32>
    %174 = vector.broadcast %173 : vector<1x32xf32> to vector<16x32xf32>
    %175 = arith.addf %172, %174 : vector<16x32xf32>
    %176 = math.absf %175 : vector<16x32xf32>
    %cst_95 = arith.constant 0.000000e+00 : f32
    %177 = vector.broadcast %cst_95 : f32 to vector<16x32xf32>
    %178 = arith.subf %177, %176 : vector<16x32xf32>
    %179 = math.exp %178 : vector<16x32xf32>
    %cst_96 = arith.constant 1.000000e+00 : f32
    %180 = vector.broadcast %cst_96 : f32 to vector<16x32xf32>
    %181 = arith.addf %180, %179 : vector<16x32xf32>
    %182 = math.log %181 : vector<16x32xf32>
    %cst_97 = arith.constant 0.000000e+00 : f32
    %183 = vector.broadcast %cst_97 : f32 to vector<16x32xf32>
    %184 = arith.maximumf %175, %183 : vector<16x32xf32>
    %185 = arith.addf %182, %184 : vector<16x32xf32>
    %cst_98 = arith.constant 0.693147182 : f32
    %186 = vector.broadcast %cst_98 : f32 to vector<16x32xf32>
    %187 = arith.subf %185, %186 : vector<16x32xf32>
    %c0_99 = arith.constant 0 : index
    %c0_100 = arith.constant 0 : index
    %188 = vector.load %arg24[%c0_99, %c0_100] : memref<32x32xf32, #tpu.memory_space<vmem>>, vector<32x32xf32>
    %cst_101 = arith.constant dense<0.000000e+00> : vector<16x32xf32>
    %189 = tpu.matmul %187, %188, %cst_101 {dimension_numbers = #tpu.dot_dimension_numbers<[1], [0], [0], [1], [0, 0, 1, 1], [], []>} : vector<16x32xf32>, vector<32x32xf32>, vector<16x32xf32> -> vector<16x32xf32>
    %c0_102 = arith.constant 0 : index
    %c0_103 = arith.constant 0 : index
    %190 = vector.load %arg25[%c0_102, %c0_103] : memref<1x32xf32, #tpu.memory_space<vmem>>, vector<1x32xf32>
    %191 = vector.broadcast %190 : vector<1x32xf32> to vector<16x32xf32>
    %192 = arith.addf %189, %191 : vector<16x32xf32>
    %cst_104 = arith.constant 0.000000e+00 : f32
    %193 = vector.broadcast %cst_104 : f32 to vector<16x32xf32>
    %194 = arith.cmpf oge, %192, %193 : vector<16x32xf32>
    %cst_105 = arith.constant 0.00999999977 : f32
    %195 = vector.broadcast %cst_105 : f32 to vector<16x32xf32>
    %196 = arith.mulf %195, %192 : vector<16x32xf32>
    %197 = arith.select %194, %192, %196 : vector<16x32xi1>, vector<16x32xf32>
    %c0_106 = arith.constant 0 : index
    %c0_107 = arith.constant 0 : index
    %198 = vector.load %arg35[%c0_106, %c0_107] : memref<32x96xf32, #tpu.memory_space<vmem>>, vector<32x96xf32>
    %cst_108 = arith.constant dense<0.000000e+00> : vector<16x96xf32>
    %199 = tpu.matmul %197, %198, %cst_108 {dimension_numbers = #tpu.dot_dimension_numbers<[1], [0], [0], [1], [0, 0, 1, 1], [], []>} : vector<16x32xf32>, vector<32x96xf32>, vector<16x96xf32> -> vector<16x96xf32>
    %c0_109 = arith.constant 0 : index
    %c0_110 = arith.constant 0 : index
    %200 = vector.load %arg37[%c0_109, %c0_110] : memref<1x96xf32, #tpu.memory_space<vmem>>, vector<1x96xf32>
    %201 = vector.broadcast %200 : vector<1x96xf32> to vector<16x96xf32>
    %202 = arith.addf %199, %201 : vector<16x96xf32>
    %c0_111 = arith.constant 0 : index
    %c0_112 = arith.constant 0 : index
    %203 = vector.load %arg36[%c0_111, %c0_112] : memref<32x96xf32, #tpu.memory_space<vmem>>, vector<32x96xf32>
    %cst_113 = arith.constant dense<0.000000e+00> : vector<16x96xf32>
    %204 = tpu.matmul %140, %203, %cst_113 {dimension_numbers = #tpu.dot_dimension_numbers<[1], [0], [0], [1], [0, 0, 1, 1], [], []>} : vector<16x32xf32>, vector<32x96xf32>, vector<16x96xf32> -> vector<16x96xf32>
    %c0_114 = arith.constant 0 : index
    %c0_115 = arith.constant 0 : index
    %205 = vector.load %arg38[%c0_114, %c0_115] : memref<1x96xf32, #tpu.memory_space<vmem>>, vector<1x96xf32>
    %206 = vector.broadcast %205 : vector<1x96xf32> to vector<16x96xf32>
    %207 = arith.addf %204, %206 : vector<16x96xf32>
    %208 = vector.extract_strided_slice %202 {offsets = [0, 0], sizes = [16, 32], strides = [1, 1]} : vector<16x96xf32> to vector<16x32xf32>
    %209 = vector.extract_strided_slice %207 {offsets = [0, 0], sizes = [16, 32], strides = [1, 1]} : vector<16x96xf32> to vector<16x32xf32>
    %210 = arith.addf %208, %209 : vector<16x32xf32>
    %cst_116 = arith.constant 0.000000e+00 : f32
    %211 = vector.broadcast %cst_116 : f32 to vector<16x32xf32>
    %212 = arith.subf %211, %210 : vector<16x32xf32>
    %213 = math.exp %212 : vector<16x32xf32>
    %cst_117 = arith.constant 1.000000e+00 : f32
    %214 = vector.broadcast %cst_117 : f32 to vector<16x32xf32>
    %215 = arith.addf %214, %213 : vector<16x32xf32>
    %cst_118 = arith.constant 1.000000e+00 : f32
    %216 = vector.broadcast %cst_118 : f32 to vector<16x32xf32>
    %217 = arith.divf %216, %215 : vector<16x32xf32>
    %218 = vector.extract_strided_slice %202 {offsets = [0, 32], sizes = [16, 32], strides = [1, 1]} : vector<16x96xf32> to vector<16x32xf32>
    %219 = vector.extract_strided_slice %207 {offsets = [0, 32], sizes = [16, 32], strides = [1, 1]} : vector<16x96xf32> to vector<16x32xf32>
    %220 = arith.addf %218, %219 : vector<16x32xf32>
    %cst_119 = arith.constant 0.000000e+00 : f32
    %221 = vector.broadcast %cst_119 : f32 to vector<16x32xf32>
    %222 = arith.subf %221, %220 : vector<16x32xf32>
    %223 = math.exp %222 : vector<16x32xf32>
    %cst_120 = arith.constant 1.000000e+00 : f32
    %224 = vector.broadcast %cst_120 : f32 to vector<16x32xf32>
    %225 = arith.addf %224, %223 : vector<16x32xf32>
    %cst_121 = arith.constant 1.000000e+00 : f32
    %226 = vector.broadcast %cst_121 : f32 to vector<16x32xf32>
    %227 = arith.divf %226, %225 : vector<16x32xf32>
    %228 = vector.extract_strided_slice %202 {offsets = [0, 64], sizes = [16, 32], strides = [1, 1]} : vector<16x96xf32> to vector<16x32xf32>
    %229 = vector.extract_strided_slice %207 {offsets = [0, 64], sizes = [16, 32], strides = [1, 1]} : vector<16x96xf32> to vector<16x32xf32>
    %230 = arith.mulf %217, %229 : vector<16x32xf32>
    %231 = arith.addf %228, %230 : vector<16x32xf32>
    %232 = math.tanh %231 : vector<16x32xf32>
    %cst_122 = arith.constant 1.000000e+00 : f32
    %233 = vector.broadcast %cst_122 : f32 to vector<16x32xf32>
    %234 = arith.subf %233, %227 : vector<16x32xf32>
    %235 = arith.mulf %234, %232 : vector<16x32xf32>
    %236 = arith.mulf %227, %140 : vector<16x32xf32>
    %237 = arith.addf %235, %236 : vector<16x32xf32>
    %c0_123 = arith.constant 0 : index
    %c0_124 = arith.constant 0 : index
    %238 = vector.load %arg26[%c0_123, %c0_124] : memref<1x32xf32, #tpu.memory_space<vmem>>, vector<1x32xf32>
    %239 = vector.broadcast %2 : vector<32x1xf32> to vector<32x32xf32>
    %240 = vector.broadcast %238 : vector<1x32xf32> to vector<32x32xf32>
    %241 = arith.mulf %239, %240 : vector<32x32xf32>
    %c0_125 = arith.constant 0 : index
    %c0_126 = arith.constant 0 : index
    %242 = vector.load %arg27[%c0_125, %c0_126] : memref<1x32xf32, #tpu.memory_space<vmem>>, vector<1x32xf32>
    %243 = vector.broadcast %242 : vector<1x32xf32> to vector<32x32xf32>
    %244 = arith.addf %241, %243 : vector<32x32xf32>
    %cst_127 = arith.constant 0.000000e+00 : f32
    %245 = vector.broadcast %cst_127 : f32 to vector<32x32xf32>
    %246 = arith.maximumf %244, %245 : vector<32x32xf32>
    %c0_128 = arith.constant 0 : index
    %c0_129 = arith.constant 0 : index
    %247 = vector.load %arg28[%c0_128, %c0_129] : memref<32x32xf32, #tpu.memory_space<vmem>>, vector<32x32xf32>
    %cst_130 = arith.constant dense<0.000000e+00> : vector<32x32xf32>
    %248 = tpu.matmul %246, %247, %cst_130 {dimension_numbers = #tpu.dot_dimension_numbers<[1], [0], [0], [1], [0, 0, 1, 1], [], []>} : vector<32x32xf32>, vector<32x32xf32>, vector<32x32xf32> -> vector<32x32xf32>
    %c0_131 = arith.constant 0 : index
    %c0_132 = arith.constant 0 : index
    %249 = vector.load %arg29[%c0_131, %c0_132] : memref<1x32xf32, #tpu.memory_space<vmem>>, vector<1x32xf32>
    %250 = vector.broadcast %249 : vector<1x32xf32> to vector<32x32xf32>
    %251 = arith.addf %248, %250 : vector<32x32xf32>
    %cst_133 = arith.constant 0.628318548 : f32
    %252 = vector.broadcast %cst_133 : f32 to vector<32x1xf32>
    %253 = arith.mulf %1, %252 : vector<32x1xf32>
    %254 = math.cos %253 : vector<32x1xf32>
    %cst_134 = arith.constant 5.000000e-01 : f32
    %255 = vector.broadcast %cst_134 : f32 to vector<32x1xf32>
    %256 = arith.mulf %254, %255 : vector<32x1xf32>
    %cst_135 = arith.constant 5.000000e-01 : f32
    %257 = vector.broadcast %cst_135 : f32 to vector<32x1xf32>
    %258 = arith.addf %256, %257 : vector<32x1xf32>
    %c0_136 = arith.constant 0 : index
    %c0_137 = arith.constant 0 : index
    %259 = vector.load %arg30[%c0_136, %c0_137] : memref<32x32xf32, #tpu.memory_space<vmem>>, vector<32x32xf32>
    %cst_138 = arith.constant dense<0.000000e+00> : vector<16x32xf32>
    %260 = tpu.matmul %237, %259, %cst_138 {dimension_numbers = #tpu.dot_dimension_numbers<[1], [0], [0], [1], [0, 0, 1, 1], [], []>} : vector<16x32xf32>, vector<32x32xf32>, vector<16x32xf32> -> vector<16x32xf32>
    %cst_139 = arith.constant dense<0.000000e+00> : vector<32x32xf32>
    %261 = tpu.matmul %8, %260, %cst_139 {dimension_numbers = #tpu.dot_dimension_numbers<[1], [0], [0], [1], [0, 0, 1, 1], [], []>} : vector<32x16xf32>, vector<16x32xf32>, vector<32x32xf32> -> vector<32x32xf32>
    %262 = vector.broadcast %258 : vector<32x1xf32> to vector<32x32xf32>
    %263 = arith.mulf %251, %262 : vector<32x32xf32>
    %264 = arith.mulf %261, %263 : vector<32x32xf32>
    %cst_140 = arith.constant dense<0.000000e+00> : vector<16x32xf32>
    %265 = tpu.matmul %19, %264, %cst_140 {dimension_numbers = #tpu.dot_dimension_numbers<[1], [0], [0], [1], [0, 0, 1, 1], [], []>} : vector<16x32xf32>, vector<32x32xf32>, vector<16x32xf32> -> vector<16x32xf32>
    %266 = vector.broadcast %25 : vector<16x1xf32> to vector<16x32xf32>
    %267 = arith.mulf %265, %266 : vector<16x32xf32>
    %c0_141 = arith.constant 0 : index
    %c0_142 = arith.constant 0 : index
    %268 = vector.load %arg31[%c0_141, %c0_142] : memref<32x32xf32, #tpu.memory_space<vmem>>, vector<32x32xf32>
    %cst_143 = arith.constant dense<0.000000e+00> : vector<16x32xf32>
    %269 = tpu.matmul %267, %268, %cst_143 {dimension_numbers = #tpu.dot_dimension_numbers<[1], [0], [0], [1], [0, 0, 1, 1], [], []>} : vector<16x32xf32>, vector<32x32xf32>, vector<16x32xf32> -> vector<16x32xf32>
    %c0_144 = arith.constant 0 : index
    %c0_145 = arith.constant 0 : index
    %270 = vector.load %arg32[%c0_144, %c0_145] : memref<1x32xf32, #tpu.memory_space<vmem>>, vector<1x32xf32>
    %271 = vector.broadcast %270 : vector<1x32xf32> to vector<16x32xf32>
    %272 = arith.addf %269, %271 : vector<16x32xf32>
    %273 = math.absf %272 : vector<16x32xf32>
    %cst_146 = arith.constant 0.000000e+00 : f32
    %274 = vector.broadcast %cst_146 : f32 to vector<16x32xf32>
    %275 = arith.subf %274, %273 : vector<16x32xf32>
    %276 = math.exp %275 : vector<16x32xf32>
    %cst_147 = arith.constant 1.000000e+00 : f32
    %277 = vector.broadcast %cst_147 : f32 to vector<16x32xf32>
    %278 = arith.addf %277, %276 : vector<16x32xf32>
    %279 = math.log %278 : vector<16x32xf32>
    %cst_148 = arith.constant 0.000000e+00 : f32
    %280 = vector.broadcast %cst_148 : f32 to vector<16x32xf32>
    %281 = arith.maximumf %272, %280 : vector<16x32xf32>
    %282 = arith.addf %279, %281 : vector<16x32xf32>
    %cst_149 = arith.constant 0.693147182 : f32
    %283 = vector.broadcast %cst_149 : f32 to vector<16x32xf32>
    %284 = arith.subf %282, %283 : vector<16x32xf32>
    %c0_150 = arith.constant 0 : index
    %c0_151 = arith.constant 0 : index
    %285 = vector.load %arg33[%c0_150, %c0_151] : memref<32x32xf32, #tpu.memory_space<vmem>>, vector<32x32xf32>
    %cst_152 = arith.constant dense<0.000000e+00> : vector<16x32xf32>
    %286 = tpu.matmul %284, %285, %cst_152 {dimension_numbers = #tpu.dot_dimension_numbers<[1], [0], [0], [1], [0, 0, 1, 1], [], []>} : vector<16x32xf32>, vector<32x32xf32>, vector<16x32xf32> -> vector<16x32xf32>
    %c0_153 = arith.constant 0 : index
    %c0_154 = arith.constant 0 : index
    %287 = vector.load %arg34[%c0_153, %c0_154] : memref<1x32xf32, #tpu.memory_space<vmem>>, vector<1x32xf32>
    %288 = vector.broadcast %287 : vector<1x32xf32> to vector<16x32xf32>
    %289 = arith.addf %286, %288 : vector<16x32xf32>
    %cst_155 = arith.constant 0.000000e+00 : f32
    %290 = vector.broadcast %cst_155 : f32 to vector<16x32xf32>
    %291 = arith.cmpf oge, %289, %290 : vector<16x32xf32>
    %cst_156 = arith.constant 0.00999999977 : f32
    %292 = vector.broadcast %cst_156 : f32 to vector<16x32xf32>
    %293 = arith.mulf %292, %289 : vector<16x32xf32>
    %294 = arith.select %291, %289, %293 : vector<16x32xi1>, vector<16x32xf32>
    %c0_157 = arith.constant 0 : index
    %c0_158 = arith.constant 0 : index
    %295 = vector.load %arg35[%c0_157, %c0_158] : memref<32x96xf32, #tpu.memory_space<vmem>>, vector<32x96xf32>
    %cst_159 = arith.constant dense<0.000000e+00> : vector<16x96xf32>
    %296 = tpu.matmul %294, %295, %cst_159 {dimension_numbers = #tpu.dot_dimension_numbers<[1], [0], [0], [1], [0, 0, 1, 1], [], []>} : vector<16x32xf32>, vector<32x96xf32>, vector<16x96xf32> -> vector<16x96xf32>
    %c0_160 = arith.constant 0 : index
    %c0_161 = arith.constant 0 : index
    %297 = vector.load %arg37[%c0_160, %c0_161] : memref<1x96xf32, #tpu.memory_space<vmem>>, vector<1x96xf32>
    %298 = vector.broadcast %297 : vector<1x96xf32> to vector<16x96xf32>
    %299 = arith.addf %296, %298 : vector<16x96xf32>
    %c0_162 = arith.constant 0 : index
    %c0_163 = arith.constant 0 : index
    %300 = vector.load %arg36[%c0_162, %c0_163] : memref<32x96xf32, #tpu.memory_space<vmem>>, vector<32x96xf32>
    %cst_164 = arith.constant dense<0.000000e+00> : vector<16x96xf32>
    %301 = tpu.matmul %237, %300, %cst_164 {dimension_numbers = #tpu.dot_dimension_numbers<[1], [0], [0], [1], [0, 0, 1, 1], [], []>} : vector<16x32xf32>, vector<32x96xf32>, vector<16x96xf32> -> vector<16x96xf32>
    %c0_165 = arith.constant 0 : index
    %c0_166 = arith.constant 0 : index
    %302 = vector.load %arg38[%c0_165, %c0_166] : memref<1x96xf32, #tpu.memory_space<vmem>>, vector<1x96xf32>
    %303 = vector.broadcast %302 : vector<1x96xf32> to vector<16x96xf32>
    %304 = arith.addf %301, %303 : vector<16x96xf32>
    %305 = vector.extract_strided_slice %299 {offsets = [0, 0], sizes = [16, 32], strides = [1, 1]} : vector<16x96xf32> to vector<16x32xf32>
    %306 = vector.extract_strided_slice %304 {offsets = [0, 0], sizes = [16, 32], strides = [1, 1]} : vector<16x96xf32> to vector<16x32xf32>
    %307 = arith.addf %305, %306 : vector<16x32xf32>
    %cst_167 = arith.constant 0.000000e+00 : f32
    %308 = vector.broadcast %cst_167 : f32 to vector<16x32xf32>
    %309 = arith.subf %308, %307 : vector<16x32xf32>
    %310 = math.exp %309 : vector<16x32xf32>
    %cst_168 = arith.constant 1.000000e+00 : f32
    %311 = vector.broadcast %cst_168 : f32 to vector<16x32xf32>
    %312 = arith.addf %311, %310 : vector<16x32xf32>
    %cst_169 = arith.constant 1.000000e+00 : f32
    %313 = vector.broadcast %cst_169 : f32 to vector<16x32xf32>
    %314 = arith.divf %313, %312 : vector<16x32xf32>
    %315 = vector.extract_strided_slice %299 {offsets = [0, 32], sizes = [16, 32], strides = [1, 1]} : vector<16x96xf32> to vector<16x32xf32>
    %316 = vector.extract_strided_slice %304 {offsets = [0, 32], sizes = [16, 32], strides = [1, 1]} : vector<16x96xf32> to vector<16x32xf32>
    %317 = arith.addf %315, %316 : vector<16x32xf32>
    %cst_170 = arith.constant 0.000000e+00 : f32
    %318 = vector.broadcast %cst_170 : f32 to vector<16x32xf32>
    %319 = arith.subf %318, %317 : vector<16x32xf32>
    %320 = math.exp %319 : vector<16x32xf32>
    %cst_171 = arith.constant 1.000000e+00 : f32
    %321 = vector.broadcast %cst_171 : f32 to vector<16x32xf32>
    %322 = arith.addf %321, %320 : vector<16x32xf32>
    %cst_172 = arith.constant 1.000000e+00 : f32
    %323 = vector.broadcast %cst_172 : f32 to vector<16x32xf32>
    %324 = arith.divf %323, %322 : vector<16x32xf32>
    %325 = vector.extract_strided_slice %299 {offsets = [0, 64], sizes = [16, 32], strides = [1, 1]} : vector<16x96xf32> to vector<16x32xf32>
    %326 = vector.extract_strided_slice %304 {offsets = [0, 64], sizes = [16, 32], strides = [1, 1]} : vector<16x96xf32> to vector<16x32xf32>
    %327 = arith.mulf %314, %326 : vector<16x32xf32>
    %328 = arith.addf %325, %327 : vector<16x32xf32>
    %329 = math.tanh %328 : vector<16x32xf32>
    %cst_173 = arith.constant 1.000000e+00 : f32
    %330 = vector.broadcast %cst_173 : f32 to vector<16x32xf32>
    %331 = arith.subf %330, %324 : vector<16x32xf32>
    %332 = arith.mulf %331, %329 : vector<16x32xf32>
    %333 = arith.mulf %324, %237 : vector<16x32xf32>
    %334 = arith.addf %332, %333 : vector<16x32xf32>
    %c0_174 = arith.constant 0 : index
    %c0_175 = arith.constant 0 : index
    %335 = vector.load %arg39[%c0_174, %c0_175] : memref<16x32xf32, #tpu.memory_space<vmem>>, vector<16x32xf32>
    tpu.vector_store %arg39[%c0_174, %c0_175], %334 {strides = array<i32>} : memref<16x32xf32, #tpu.memory_space<vmem>>, vector<16x32xf32>,
    return
  }
  func.func @transform_0(%arg0: i32) -> (i32, i32) {
    %c0_i32 = arith.constant 0 : i32
    %c0_i32_0 = arith.constant 0 : i32
    %c0_i32_1 = arith.constant 0 : i32
    return %c0_i32, %c0_i32_0 : i32, i32
  }
  func.func @transform_1(%arg0: i32) -> (i32, i32) {
    %c0_i32 = arith.constant 0 : i32
    %c0_i32_0 = arith.constant 0 : i32
    %c0_i32_1 = arith.constant 0 : i32
    return %c0_i32, %c0_i32_0 : i32, i32
  }
  func.func @transform_2(%arg0: i32) -> (i32, i32) {
    %c0_i32 = arith.constant 0 : i32
    %c0_i32_0 = arith.constant 0 : i32
    %c0_i32_1 = arith.constant 0 : i32
    return %c0_i32, %c0_i32_0 : i32, i32
  }
  func.func @transform_3(%arg0: i32) -> (i32, i32) {
    %c0_i32 = arith.constant 0 : i32
    %c0_i32_0 = arith.constant 0 : i32
    %c0_i32_1 = arith.constant 0 : i32
    return %c0_i32, %c0_i32_0 : i32, i32
  }
  func.func @transform_4(%arg0: i32) -> (i32, i32) {
    %c0_i32 = arith.constant 0 : i32
    %c0_i32_0 = arith.constant 0 : i32
    %c0_i32_1 = arith.constant 0 : i32
    return %c0_i32, %c0_i32_0 : i32, i32
  }
  func.func @transform_5(%arg0: i32) -> (i32, i32) {
    %c0_i32 = arith.constant 0 : i32
    %c0_i32_0 = arith.constant 0 : i32
    %c0_i32_1 = arith.constant 0 : i32
    return %c0_i32, %c0_i32_0 : i32, i32
  }
  func.func @transform_6(%arg0: i32) -> (i32, i32) {
    %c0_i32 = arith.constant 0 : i32
    %c0_i32_0 = arith.constant 0 : i32
    %c0_i32_1 = arith.constant 0 : i32
    return %c0_i32, %c0_i32_0 : i32, i32
  }
  func.func @transform_7(%arg0: i32) -> (i32, i32) {
    %c0_i32 = arith.constant 0 : i32
    %c0_i32_0 = arith.constant 0 : i32
    %c0_i32_1 = arith.constant 0 : i32
    return %c0_i32, %c0_i32_0 : i32, i32
  }
  func.func @transform_8(%arg0: i32) -> (i32, i32) {
    %c0_i32 = arith.constant 0 : i32
    %c0_i32_0 = arith.constant 0 : i32
    %c0_i32_1 = arith.constant 0 : i32
    return %c0_i32, %c0_i32_0 : i32, i32
  }
  func.func @transform_9(%arg0: i32) -> (i32, i32) {
    %c0_i32 = arith.constant 0 : i32
    %c0_i32_0 = arith.constant 0 : i32
    %c0_i32_1 = arith.constant 0 : i32
    return %c0_i32, %c0_i32_0 : i32, i32
  }
  func.func @transform_10(%arg0: i32) -> (i32, i32) {
    %c0_i32 = arith.constant 0 : i32
    %c0_i32_0 = arith.constant 0 : i32
    %c0_i32_1 = arith.constant 0 : i32
    return %c0_i32, %c0_i32_0 : i32, i32
  }
  func.func @transform_11(%arg0: i32) -> (i32, i32) {
    %c0_i32 = arith.constant 0 : i32
    %c0_i32_0 = arith.constant 0 : i32
    %c0_i32_1 = arith.constant 0 : i32
    return %c0_i32, %c0_i32_0 : i32, i32
  }
  func.func @transform_12(%arg0: i32) -> (i32, i32) {
    %c0_i32 = arith.constant 0 : i32
    %c0_i32_0 = arith.constant 0 : i32
    %c0_i32_1 = arith.constant 0 : i32
    return %c0_i32, %c0_i32_0 : i32, i32
  }
  func.func @transform_13(%arg0: i32) -> (i32, i32) {
    %c0_i32 = arith.constant 0 : i32
    %c0_i32_0 = arith.constant 0 : i32
    %c0_i32_1 = arith.constant 0 : i32
    return %c0_i32, %c0_i32_0 : i32, i32
  }
  func.func @transform_14(%arg0: i32) -> (i32, i32) {
    %c0_i32 = arith.constant 0 : i32
    %c0_i32_0 = arith.constant 0 : i32
    %c0_i32_1 = arith.constant 0 : i32
    return %c0_i32, %c0_i32_0 : i32, i32
  }
  func.func @transform_15(%arg0: i32) -> (i32, i32) {
    %c0_i32 = arith.constant 0 : i32
    %c0_i32_0 = arith.constant 0 : i32
    %c0_i32_1 = arith.constant 0 : i32
    return %c0_i32, %c0_i32_0 : i32, i32
  }
  func.func @transform_16(%arg0: i32) -> (i32, i32) {
    %c0_i32 = arith.constant 0 : i32
    %c0_i32_0 = arith.constant 0 : i32
    %c0_i32_1 = arith.constant 0 : i32
    return %c0_i32, %c0_i32_0 : i32, i32
  }
  func.func @transform_17(%arg0: i32) -> (i32, i32) {
    %c0_i32 = arith.constant 0 : i32
    %c0_i32_0 = arith.constant 0 : i32
    %c0_i32_1 = arith.constant 0 : i32
    return %c0_i32, %c0_i32_0 : i32, i32
  }
  func.func @transform_18(%arg0: i32) -> (i32, i32) {
    %c0_i32 = arith.constant 0 : i32
    %c0_i32_0 = arith.constant 0 : i32
    %c0_i32_1 = arith.constant 0 : i32
    return %c0_i32, %c0_i32_0 : i32, i32
  }
  func.func @transform_19(%arg0: i32) -> (i32, i32) {
    %c0_i32 = arith.constant 0 : i32
    %c0_i32_0 = arith.constant 0 : i32
    %c0_i32_1 = arith.constant 0 : i32
    return %c0_i32, %c0_i32_0 : i32, i32
  }
  func.func @transform_20(%arg0: i32) -> (i32, i32) {
    %c0_i32 = arith.constant 0 : i32
    %c0_i32_0 = arith.constant 0 : i32
    %c0_i32_1 = arith.constant 0 : i32
    return %c0_i32, %c0_i32_0 : i32, i32
  }
  func.func @transform_21(%arg0: i32) -> (i32, i32) {
    %c0_i32 = arith.constant 0 : i32
    %c0_i32_0 = arith.constant 0 : i32
    %c0_i32_1 = arith.constant 0 : i32
    return %c0_i32, %c0_i32_0 : i32, i32
  }
  func.func @transform_22(%arg0: i32) -> (i32, i32) {
    %c0_i32 = arith.constant 0 : i32
    %c0_i32_0 = arith.constant 0 : i32
    %c0_i32_1 = arith.constant 0 : i32
    return %c0_i32, %c0_i32_0 : i32, i32
  }
  func.func @transform_23(%arg0: i32) -> (i32, i32) {
    %c0_i32 = arith.constant 0 : i32
    %c0_i32_0 = arith.constant 0 : i32
    %c0_i32_1 = arith.constant 0 : i32
    return %c0_i32, %c0_i32_0 : i32, i32
  }
  func.func @transform_24(%arg0: i32) -> (i32, i32) {
    %c0_i32 = arith.constant 0 : i32
    %c0_i32_0 = arith.constant 0 : i32
    %c0_i32_1 = arith.constant 0 : i32
    return %c0_i32, %c0_i32_0 : i32, i32
  }
  func.func @transform_25(%arg0: i32) -> (i32, i32) {
    %c0_i32 = arith.constant 0 : i32
    %c0_i32_0 = arith.constant 0 : i32
    %c0_i32_1 = arith.constant 0 : i32
    return %c0_i32, %c0_i32_0 : i32, i32
  }
  func.func @transform_26(%arg0: i32) -> (i32, i32) {
    %c0_i32 = arith.constant 0 : i32
    %c0_i32_0 = arith.constant 0 : i32
    %c0_i32_1 = arith.constant 0 : i32
    return %c0_i32, %c0_i32_0 : i32, i32
  }
  func.func @transform_27(%arg0: i32) -> (i32, i32) {
    %c0_i32 = arith.constant 0 : i32
    %c0_i32_0 = arith.constant 0 : i32
    %c0_i32_1 = arith.constant 0 : i32
    return %c0_i32, %c0_i32_0 : i32, i32
  }
  func.func @transform_28(%arg0: i32) -> (i32, i32) {
    %c0_i32 = arith.constant 0 : i32
    %c0_i32_0 = arith.constant 0 : i32
    %c0_i32_1 = arith.constant 0 : i32
    return %c0_i32, %c0_i32_0 : i32, i32
  }
  func.func @transform_29(%arg0: i32) -> (i32, i32) {
    %c0_i32 = arith.constant 0 : i32
    %c0_i32_0 = arith.constant 0 : i32
    %c0_i32_1 = arith.constant 0 : i32
    return %c0_i32, %c0_i32_0 : i32, i32
  }
  func.func @transform_30(%arg0: i32) -> (i32, i32) {
    %c0_i32 = arith.constant 0 : i32
    %c0_i32_0 = arith.constant 0 : i32
    %c0_i32_1 = arith.constant 0 : i32
    return %c0_i32, %c0_i32_0 : i32, i32
  }
  func.func @transform_31(%arg0: i32) -> (i32, i32) {
    %c0_i32 = arith.constant 0 : i32
    %c0_i32_0 = arith.constant 0 : i32
    %c0_i32_1 = arith.constant 0 : i32
    return %c0_i32, %c0_i32_0 : i32, i32
  }
  func.func @transform_32(%arg0: i32) -> (i32, i32) {
    %c0_i32 = arith.constant 0 : i32
    %c0_i32_0 = arith.constant 0 : i32
    %c0_i32_1 = arith.constant 0 : i32
    return %c0_i32, %c0_i32_0 : i32, i32
  }
  func.func @transform_33(%arg0: i32) -> (i32, i32) {
    %c0_i32 = arith.constant 0 : i32
    %c0_i32_0 = arith.constant 0 : i32
    %c0_i32_1 = arith.constant 0 : i32
    return %c0_i32, %c0_i32_0 : i32, i32
  }
  func.func @transform_34(%arg0: i32) -> (i32, i32) {
    %c0_i32 = arith.constant 0 : i32
    %c0_i32_0 = arith.constant 0 : i32
    %c0_i32_1 = arith.constant 0 : i32
    return %c0_i32, %c0_i32_0 : i32, i32
  }
  func.func @transform_35(%arg0: i32) -> (i32, i32) {
    %c0_i32 = arith.constant 0 : i32
    %c0_i32_0 = arith.constant 0 : i32
    %c0_i32_1 = arith.constant 0 : i32
    return %c0_i32, %c0_i32_0 : i32, i32
  }
  func.func @transform_36(%arg0: i32) -> (i32, i32) {
    %c0_i32 = arith.constant 0 : i32
    %c0_i32_0 = arith.constant 0 : i32
    %c0_i32_1 = arith.constant 0 : i32
    return %c0_i32, %c0_i32_0 : i32, i32
  }
  func.func @transform_37(%arg0: i32) -> (i32, i32) {
    %c0_i32 = arith.constant 0 : i32
    %c0_i32_0 = arith.constant 0 : i32
    %c0_i32_1 = arith.constant 0 : i32
    return %c0_i32, %c0_i32_0 : i32, i32
  }
  func.func @transform_38(%arg0: i32) -> (i32, i32) {
    %c0_i32 = arith.constant 0 : i32
    %c0_i32_0 = arith.constant 0 : i32
    %c0_i32_1 = arith.constant 0 : i32
    return %c0_i32, %c0_i32_0 : i32, i32
  }
}

module attributes {stable_mosaic.version = 11 : i64} {
  func.func @_readout_kernel(%arg0: i32, %arg1: memref<16x32xf32, #tpu.memory_space<vmem>>, %arg2: memref<16x1xf32, #tpu.memory_space<vmem>>, %arg3: memref<1x16xi32, #tpu.memory_space<vmem>>, %arg4: memref<32x128xf32, #tpu.memory_space<vmem>>, %arg5: memref<32x128xf32, #tpu.memory_space<vmem>>, %arg6: memref<32x128xf32, #tpu.memory_space<vmem>>, %arg7: memref<1x128xf32, #tpu.memory_space<vmem>>, %arg8: memref<32x32xf32, #tpu.memory_space<vmem>>, %arg9: memref<32x32xf32, #tpu.memory_space<vmem>>, %arg10: memref<1x32xf32, #tpu.memory_space<vmem>>, %arg11: memref<32x1xf32, #tpu.memory_space<vmem>>, %arg12: memref<1x1xf32, #tpu.memory_space<vmem>>, %arg13: memref<32x32xf32, #tpu.memory_space<vmem>>, %arg14: memref<1x32xf32, #tpu.memory_space<vmem>>, %arg15: memref<32x3xf32, #tpu.memory_space<vmem>>, %arg16: memref<1x3xf32, #tpu.memory_space<vmem>>, %arg17: memref<32x6xf32, #tpu.memory_space<vmem>>, %arg18: memref<1x6xf32, #tpu.memory_space<vmem>>, %arg19: memref<2x1xf32, #tpu.memory_space<vmem>>, %arg20: memref<16x3xf32, #tpu.memory_space<vmem>>, %arg21: memref<2x6xf32, #tpu.memory_space<vmem>>) attributes {dimension_semantics = [#tpu.dimension_semantics<arbitrary>], iteration_bounds = array<i64: 1>, scalar_prefetch = 0 : i64, scratch_operands = 0 : i64, tpu.core_type = #tpu.core_type<tc>, window_params = [{pipeline_mode = #tpu.pipeline_mode<synchronous>, transform_indices = @transform_0, window_bounds = array<i64: 16, 32>}, {pipeline_mode = #tpu.pipeline_mode<synchronous>, transform_indices = @transform_1, window_bounds = array<i64: 16, 1>}, {pipeline_mode = #tpu.pipeline_mode<synchronous>, transform_indices = @transform_2, window_bounds = array<i64: 1, 16>}, {pipeline_mode = #tpu.pipeline_mode<synchronous>, transform_indices = @transform_3, window_bounds = array<i64: 32, 128>}, {pipeline_mode = #tpu.pipeline_mode<synchronous>, transform_indices = @transform_4, window_bounds = array<i64: 32, 128>}, {pipeline_mode = #tpu.pipeline_mode<synchronous>, transform_indices = @transform_5, window_bounds = array<i64: 32, 128>}, {pipeline_mode = #tpu.pipeline_mode<synchronous>, transform_indices = @transform_6, window_bounds = array<i64: 1, 128>}, {pipeline_mode = #tpu.pipeline_mode<synchronous>, transform_indices = @transform_7, window_bounds = array<i64: 32, 32>}, {pipeline_mode = #tpu.pipeline_mode<synchronous>, transform_indices = @transform_8, window_bounds = array<i64: 32, 32>}, {pipeline_mode = #tpu.pipeline_mode<synchronous>, transform_indices = @transform_9, window_bounds = array<i64: 1, 32>}, {pipeline_mode = #tpu.pipeline_mode<synchronous>, transform_indices = @transform_10, window_bounds = array<i64: 32, 1>}, {pipeline_mode = #tpu.pipeline_mode<synchronous>, transform_indices = @transform_11, window_bounds = array<i64: 1, 1>}, {pipeline_mode = #tpu.pipeline_mode<synchronous>, transform_indices = @transform_12, window_bounds = array<i64: 32, 32>}, {pipeline_mode = #tpu.pipeline_mode<synchronous>, transform_indices = @transform_13, window_bounds = array<i64: 1, 32>}, {pipeline_mode = #tpu.pipeline_mode<synchronous>, transform_indices = @transform_14, window_bounds = array<i64: 32, 3>}, {pipeline_mode = #tpu.pipeline_mode<synchronous>, transform_indices = @transform_15, window_bounds = array<i64: 1, 3>}, {pipeline_mode = #tpu.pipeline_mode<synchronous>, transform_indices = @transform_16, window_bounds = array<i64: 32, 6>}, {pipeline_mode = #tpu.pipeline_mode<synchronous>, transform_indices = @transform_17, window_bounds = array<i64: 1, 6>}, {pipeline_mode = #tpu.pipeline_mode<synchronous>, transform_indices = @transform_18, window_bounds = array<i64: 2, 1>}, {pipeline_mode = #tpu.pipeline_mode<synchronous>, transform_indices = @transform_19, window_bounds = array<i64: 16, 3>}, {pipeline_mode = #tpu.pipeline_mode<synchronous>, transform_indices = @transform_20, window_bounds = array<i64: 2, 6>}]} {
    %c0 = arith.constant 0 : index
    %c0_0 = arith.constant 0 : index
    %0 = vector.load %arg1[%c0, %c0_0] : memref<16x32xf32, #tpu.memory_space<vmem>>, vector<16x32xf32>
    %c0_1 = arith.constant 0 : index
    %c0_2 = arith.constant 0 : index
    %1 = vector.load %arg2[%c0_1, %c0_2] : memref<16x1xf32, #tpu.memory_space<vmem>>, vector<16x1xf32>
    %2 = vector.broadcast %1 : vector<16x1xf32> to vector<16x32xf32>
    %3 = arith.addf %0, %2 : vector<16x32xf32>
    %4 = tpu.iota {dimensions = array<i32: 0>} : vector<2x16xi32>
    %c0_3 = arith.constant 0 : index
    %c0_4 = arith.constant 0 : index
    %5 = vector.load %arg3[%c0_3, %c0_4] : memref<1x16xi32, #tpu.memory_space<vmem>>, vector<1x16xi32>
    %6 = vector.broadcast %5 : vector<1x16xi32> to vector<2x16xi32>
    %7 = arith.cmpi eq, %6, %4 : vector<2x16xi32>
    %8 = arith.extui %7 : vector<2x16xi1> to vector<2x16xi32>
    %9 = arith.sitofp %8 : vector<2x16xi32> to vector<2x16xf32>
    %cst = arith.constant dense<0.000000e+00> : vector<2xf32>
    %10 = vector.multi_reduction <add>, %9, %cst [1] : vector<2x16xf32> to vector<2xf32>
    %11 = vector.shape_cast %10 : vector<2xf32> to vector<2x1xf32>
    %cst_5 = arith.constant 1.000000e+00 : f32
    %12 = vector.broadcast %cst_5 : f32 to vector<2x1xf32>
    %13 = arith.maximumf %11, %12 : vector<2x1xf32>
    %14 = tpu.transpose %3, [1, 0] : vector<16x32xf32> -> vector<32x16xf32>
    %cst_6 = arith.constant 0.000000e+00 : f32
    %15 = vector.broadcast %cst_6 : f32 to vector<2x32xf32>
    %cst_7 = arith.constant 0.000000e+00 : f32
    %16 = vector.broadcast %cst_7 : f32 to vector<2x32xf32>
    %cst_8 = arith.constant 0.000000e+00 : f32
    %17 = vector.broadcast %cst_8 : f32 to vector<2x32xf32>
    %cst_9 = arith.constant 0.000000e+00 : f32
    %18 = vector.broadcast %cst_9 : f32 to vector<2x32xf32>
    %c0_10 = arith.constant 0 : index
    %c0_11 = arith.constant 0 : index
    %19 = vector.load %arg4[%c0_10, %c0_11] : memref<32x128xf32, #tpu.memory_space<vmem>>, vector<32x128xf32>
    %cst_12 = arith.constant dense<0.000000e+00> : vector<2x128xf32>
    %20 = tpu.matmul %15, %19, %cst_12 {dimension_numbers = #tpu.dot_dimension_numbers<[1], [0], [0], [1], [0, 0, 1, 1], [], []>} : vector<2x32xf32>, vector<32x128xf32>, vector<2x128xf32> -> vector<2x128xf32>
    %c0_13 = arith.constant 0 : index
    %c0_14 = arith.constant 0 : index
    %21 = vector.load %arg5[%c0_13, %c0_14] : memref<32x128xf32, #tpu.memory_space<vmem>>, vector<32x128xf32>
    %cst_15 = arith.constant dense<0.000000e+00> : vector<2x128xf32>
    %22 = tpu.matmul %16, %21, %cst_15 {dimension_numbers = #tpu.dot_dimension_numbers<[1], [0], [0], [1], [0, 0, 1, 1], [], []>} : vector<2x32xf32>, vector<32x128xf32>, vector<2x128xf32> -> vector<2x128xf32>
    %23 = arith.addf %20, %22 : vector<2x128xf32>
    %c0_16 = arith.constant 0 : index
    %c0_17 = arith.constant 0 : index
    %24 = vector.load %arg6[%c0_16, %c0_17] : memref<32x128xf32, #tpu.memory_space<vmem>>, vector<32x128xf32>
    %cst_18 = arith.constant dense<0.000000e+00> : vector<2x128xf32>
    %25 = tpu.matmul %17, %24, %cst_18 {dimension_numbers = #tpu.dot_dimension_numbers<[1], [0], [0], [1], [0, 0, 1, 1], [], []>} : vector<2x32xf32>, vector<32x128xf32>, vector<2x128xf32> -> vector<2x128xf32>
    %26 = arith.addf %23, %25 : vector<2x128xf32>
    %c0_19 = arith.constant 0 : index
    %c0_20 = arith.constant 0 : index
    %27 = vector.load %arg7[%c0_19, %c0_20] : memref<1x128xf32, #tpu.memory_space<vmem>>, vector<1x128xf32>
    %28 = vector.broadcast %27 : vector<1x128xf32> to vector<2x128xf32>
    %29 = arith.addf %26, %28 : vector<2x128xf32>
    %30 = vector.extract_strided_slice %29 {offsets = [0, 0], sizes = [2, 32], strides = [1, 1]} : vector<2x128xf32> to vector<2x32xf32>
    %cst_21 = arith.constant 0.000000e+00 : f32
    %31 = vector.broadcast %cst_21 : f32 to vector<2x32xf32>
    %32 = arith.subf %31, %30 : vector<2x32xf32>
    %33 = math.exp %32 : vector<2x32xf32>
    %cst_22 = arith.constant 1.000000e+00 : f32
    %34 = vector.broadcast %cst_22 : f32 to vector<2x32xf32>
    %35 = arith.addf %34, %33 : vector<2x32xf32>
    %cst_23 = arith.constant 1.000000e+00 : f32
    %36 = vector.broadcast %cst_23 : f32 to vector<2x32xf32>
    %37 = arith.divf %36, %35 : vector<2x32xf32>
    %38 = vector.extract_strided_slice %29 {offsets = [0, 32], sizes = [2, 32], strides = [1, 1]} : vector<2x128xf32> to vector<2x32xf32>
    %cst_24 = arith.constant 0.000000e+00 : f32
    %39 = vector.broadcast %cst_24 : f32 to vector<2x32xf32>
    %40 = arith.subf %39, %38 : vector<2x32xf32>
    %41 = math.exp %40 : vector<2x32xf32>
    %cst_25 = arith.constant 1.000000e+00 : f32
    %42 = vector.broadcast %cst_25 : f32 to vector<2x32xf32>
    %43 = arith.addf %42, %41 : vector<2x32xf32>
    %cst_26 = arith.constant 1.000000e+00 : f32
    %44 = vector.broadcast %cst_26 : f32 to vector<2x32xf32>
    %45 = arith.divf %44, %43 : vector<2x32xf32>
    %46 = vector.extract_strided_slice %29 {offsets = [0, 64], sizes = [2, 32], strides = [1, 1]} : vector<2x128xf32> to vector<2x32xf32>
    %47 = math.tanh %46 : vector<2x32xf32>
    %48 = vector.extract_strided_slice %29 {offsets = [0, 96], sizes = [2, 32], strides = [1, 1]} : vector<2x128xf32> to vector<2x32xf32>
    %cst_27 = arith.constant 0.000000e+00 : f32
    %49 = vector.broadcast %cst_27 : f32 to vector<2x32xf32>
    %50 = arith.subf %49, %48 : vector<2x32xf32>
    %51 = math.exp %50 : vector<2x32xf32>
    %cst_28 = arith.constant 1.000000e+00 : f32
    %52 = vector.broadcast %cst_28 : f32 to vector<2x32xf32>
    %53 = arith.addf %52, %51 : vector<2x32xf32>
    %cst_29 = arith.constant 1.000000e+00 : f32
    %54 = vector.broadcast %cst_29 : f32 to vector<2x32xf32>
    %55 = arith.divf %54, %53 : vector<2x32xf32>
    %56 = arith.mulf %45, %18 : vector<2x32xf32>
    %57 = arith.mulf %37, %47 : vector<2x32xf32>
    %58 = arith.addf %56, %57 : vector<2x32xf32>
    %59 = math.tanh %58 : vector<2x32xf32>
    %60 = arith.mulf %55, %59 : vector<2x32xf32>
    %cst_30 = arith.constant dense<0.000000e+00> : vector<2x16xf32>
    %61 = tpu.matmul %60, %14, %cst_30 {dimension_numbers = #tpu.dot_dimension_numbers<[1], [0], [0], [1], [0, 0, 1, 1], [], []>} : vector<2x32xf32>, vector<32x16xf32>, vector<2x16xf32> -> vector<2x16xf32>
    %cst_31 = arith.constant 0.000000e+00 : f32
    %62 = vector.broadcast %cst_31 : f32 to vector<2x16xf32>
    %63 = arith.cmpf ogt, %9, %62 : vector<2x16xf32>
    %cst_32 = arith.constant -1.000000e+30 : f32
    %64 = vector.broadcast %cst_32 : f32 to vector<2x16xf32>
    %65 = arith.select %63, %61, %64 : vector<2x16xi1>, vector<2x16xf32>
    %cst_33 = arith.constant dense<0xFF800000> : vector<2xf32>
    %66 = vector.multi_reduction <maximumf>, %65, %cst_33 [1] : vector<2x16xf32> to vector<2xf32>
    %67 = vector.shape_cast %66 : vector<2xf32> to vector<2x1xf32>
    %68 = vector.broadcast %67 : vector<2x1xf32> to vector<2x16xf32>
    %69 = arith.subf %65, %68 : vector<2x16xf32>
    %70 = math.exp %69 : vector<2x16xf32>
    %cst_34 = arith.constant dense<0.000000e+00> : vector<2xf32>
    %71 = vector.multi_reduction <add>, %70, %cst_34 [1] : vector<2x16xf32> to vector<2xf32>
    %72 = vector.shape_cast %71 : vector<2xf32> to vector<2x1xf32>
    %73 = vector.broadcast %72 : vector<2x1xf32> to vector<2x16xf32>
    %74 = arith.divf %70, %73 : vector<2x16xf32>
    %cst_35 = arith.constant dense<0.000000e+00> : vector<2x32xf32>
    %75 = tpu.matmul %74, %3, %cst_35 {dimension_numbers = #tpu.dot_dimension_numbers<[1], [0], [0], [1], [0, 0, 1, 1], [], []>} : vector<2x16xf32>, vector<16x32xf32>, vector<2x32xf32> -> vector<2x32xf32>
    %c0_36 = arith.constant 0 : index
    %c0_37 = arith.constant 0 : index
    %76 = vector.load %arg4[%c0_36, %c0_37] : memref<32x128xf32, #tpu.memory_space<vmem>>, vector<32x128xf32>
    %cst_38 = arith.constant dense<0.000000e+00> : vector<2x128xf32>
    %77 = tpu.matmul %60, %76, %cst_38 {dimension_numbers = #tpu.dot_dimension_numbers<[1], [0], [0], [1], [0, 0, 1, 1], [], []>} : vector<2x32xf32>, vector<32x128xf32>, vector<2x128xf32> -> vector<2x128xf32>
    %c0_39 = arith.constant 0 : index
    %c0_40 = arith.constant 0 : index
    %78 = vector.load %arg5[%c0_39, %c0_40] : memref<32x128xf32, #tpu.memory_space<vmem>>, vector<32x128xf32>
    %cst_41 = arith.constant dense<0.000000e+00> : vector<2x128xf32>
    %79 = tpu.matmul %75, %78, %cst_41 {dimension_numbers = #tpu.dot_dimension_numbers<[1], [0], [0], [1], [0, 0, 1, 1], [], []>} : vector<2x32xf32>, vector<32x128xf32>, vector<2x128xf32> -> vector<2x128xf32>
    %80 = arith.addf %77, %79 : vector<2x128xf32>
    %c0_42 = arith.constant 0 : index
    %c0_43 = arith.constant 0 : index
    %81 = vector.load %arg6[%c0_42, %c0_43] : memref<32x128xf32, #tpu.memory_space<vmem>>, vector<32x128xf32>
    %cst_44 = arith.constant dense<0.000000e+00> : vector<2x128xf32>
    %82 = tpu.matmul %60, %81, %cst_44 {dimension_numbers = #tpu.dot_dimension_numbers<[1], [0], [0], [1], [0, 0, 1, 1], [], []>} : vector<2x32xf32>, vector<32x128xf32>, vector<2x128xf32> -> vector<2x128xf32>
    %83 = arith.addf %80, %82 : vector<2x128xf32>
    %c0_45 = arith.constant 0 : index
    %c0_46 = arith.constant 0 : index
    %84 = vector.load %arg7[%c0_45, %c0_46] : memref<1x128xf32, #tpu.memory_space<vmem>>, vector<1x128xf32>
    %85 = vector.broadcast %84 : vector<1x128xf32> to vector<2x128xf32>
    %86 = arith.addf %83, %85 : vector<2x128xf32>
    %87 = vector.extract_strided_slice %86 {offsets = [0, 0], sizes = [2, 32], strides = [1, 1]} : vector<2x128xf32> to vector<2x32xf32>
    %cst_47 = arith.constant 0.000000e+00 : f32
    %88 = vector.broadcast %cst_47 : f32 to vector<2x32xf32>
    %89 = arith.subf %88, %87 : vector<2x32xf32>
    %90 = math.exp %89 : vector<2x32xf32>
    %cst_48 = arith.constant 1.000000e+00 : f32
    %91 = vector.broadcast %cst_48 : f32 to vector<2x32xf32>
    %92 = arith.addf %91, %90 : vector<2x32xf32>
    %cst_49 = arith.constant 1.000000e+00 : f32
    %93 = vector.broadcast %cst_49 : f32 to vector<2x32xf32>
    %94 = arith.divf %93, %92 : vector<2x32xf32>
    %95 = vector.extract_strided_slice %86 {offsets = [0, 32], sizes = [2, 32], strides = [1, 1]} : vector<2x128xf32> to vector<2x32xf32>
    %cst_50 = arith.constant 0.000000e+00 : f32
    %96 = vector.broadcast %cst_50 : f32 to vector<2x32xf32>
    %97 = arith.subf %96, %95 : vector<2x32xf32>
    %98 = math.exp %97 : vector<2x32xf32>
    %cst_51 = arith.constant 1.000000e+00 : f32
    %99 = vector.broadcast %cst_51 : f32 to vector<2x32xf32>
    %100 = arith.addf %99, %98 : vector<2x32xf32>
    %cst_52 = arith.constant 1.000000e+00 : f32
    %101 = vector.broadcast %cst_52 : f32 to vector<2x32xf32>
    %102 = arith.divf %101, %100 : vector<2x32xf32>
    %103 = vector.extract_strided_slice %86 {offsets = [0, 64], sizes = [2, 32], strides = [1, 1]} : vector<2x128xf32> to vector<2x32xf32>
    %104 = math.tanh %103 : vector<2x32xf32>
    %105 = vector.extract_strided_slice %86 {offsets = [0, 96], sizes = [2, 32], strides = [1, 1]} : vector<2x128xf32> to vector<2x32xf32>
    %cst_53 = arith.constant 0.000000e+00 : f32
    %106 = vector.broadcast %cst_53 : f32 to vector<2x32xf32>
    %107 = arith.subf %106, %105 : vector<2x32xf32>
    %108 = math.exp %107 : vector<2x32xf32>
    %cst_54 = arith.constant 1.000000e+00 : f32
    %109 = vector.broadcast %cst_54 : f32 to vector<2x32xf32>
    %110 = arith.addf %109, %108 : vector<2x32xf32>
    %cst_55 = arith.constant 1.000000e+00 : f32
    %111 = vector.broadcast %cst_55 : f32 to vector<2x32xf32>
    %112 = arith.divf %111, %110 : vector<2x32xf32>
    %113 = arith.mulf %102, %58 : vector<2x32xf32>
    %114 = arith.mulf %94, %104 : vector<2x32xf32>
    %115 = arith.addf %113, %114 : vector<2x32xf32>
    %116 = math.tanh %115 : vector<2x32xf32>
    %117 = arith.mulf %112, %116 : vector<2x32xf32>
    %cst_56 = arith.constant dense<0.000000e+00> : vector<2x16xf32>
    %118 = tpu.matmul %117, %14, %cst_56 {dimension_numbers = #tpu.dot_dimension_numbers<[1], [0], [0], [1], [0, 0, 1, 1], [], []>} : vector<2x32xf32>, vector<32x16xf32>, vector<2x16xf32> -> vector<2x16xf32>
    %cst_57 = arith.constant 0.000000e+00 : f32
    %119 = vector.broadcast %cst_57 : f32 to vector<2x16xf32>
    %120 = arith.cmpf ogt, %9, %119 : vector<2x16xf32>
    %cst_58 = arith.constant -1.000000e+30 : f32
    %121 = vector.broadcast %cst_58 : f32 to vector<2x16xf32>
    %122 = arith.select %120, %118, %121 : vector<2x16xi1>, vector<2x16xf32>
    %cst_59 = arith.constant dense<0xFF800000> : vector<2xf32>
    %123 = vector.multi_reduction <maximumf>, %122, %cst_59 [1] : vector<2x16xf32> to vector<2xf32>
    %124 = vector.shape_cast %123 : vector<2xf32> to vector<2x1xf32>
    %125 = vector.broadcast %124 : vector<2x1xf32> to vector<2x16xf32>
    %126 = arith.subf %122, %125 : vector<2x16xf32>
    %127 = math.exp %126 : vector<2x16xf32>
    %cst_60 = arith.constant dense<0.000000e+00> : vector<2xf32>
    %128 = vector.multi_reduction <add>, %127, %cst_60 [1] : vector<2x16xf32> to vector<2xf32>
    %129 = vector.shape_cast %128 : vector<2xf32> to vector<2x1xf32>
    %130 = vector.broadcast %129 : vector<2x1xf32> to vector<2x16xf32>
    %131 = arith.divf %127, %130 : vector<2x16xf32>
    %cst_61 = arith.constant dense<0.000000e+00> : vector<2x32xf32>
    %132 = tpu.matmul %131, %3, %cst_61 {dimension_numbers = #tpu.dot_dimension_numbers<[1], [0], [0], [1], [0, 0, 1, 1], [], []>} : vector<2x16xf32>, vector<16x32xf32>, vector<2x32xf32> -> vector<2x32xf32>
    %c0_62 = arith.constant 0 : index
    %c0_63 = arith.constant 0 : index
    %133 = vector.load %arg4[%c0_62, %c0_63] : memref<32x128xf32, #tpu.memory_space<vmem>>, vector<32x128xf32>
    %cst_64 = arith.constant dense<0.000000e+00> : vector<2x128xf32>
    %134 = tpu.matmul %117, %133, %cst_64 {dimension_numbers = #tpu.dot_dimension_numbers<[1], [0], [0], [1], [0, 0, 1, 1], [], []>} : vector<2x32xf32>, vector<32x128xf32>, vector<2x128xf32> -> vector<2x128xf32>
    %c0_65 = arith.constant 0 : index
    %c0_66 = arith.constant 0 : index
    %135 = vector.load %arg5[%c0_65, %c0_66] : memref<32x128xf32, #tpu.memory_space<vmem>>, vector<32x128xf32>
    %cst_67 = arith.constant dense<0.000000e+00> : vector<2x128xf32>
    %136 = tpu.matmul %132, %135, %cst_67 {dimension_numbers = #tpu.dot_dimension_numbers<[1], [0], [0], [1], [0, 0, 1, 1], [], []>} : vector<2x32xf32>, vector<32x128xf32>, vector<2x128xf32> -> vector<2x128xf32>
    %137 = arith.addf %134, %136 : vector<2x128xf32>
    %c0_68 = arith.constant 0 : index
    %c0_69 = arith.constant 0 : index
    %138 = vector.load %arg6[%c0_68, %c0_69] : memref<32x128xf32, #tpu.memory_space<vmem>>, vector<32x128xf32>
    %cst_70 = arith.constant dense<0.000000e+00> : vector<2x128xf32>
    %139 = tpu.matmul %117, %138, %cst_70 {dimension_numbers = #tpu.dot_dimension_numbers<[1], [0], [0], [1], [0, 0, 1, 1], [], []>} : vector<2x32xf32>, vector<32x128xf32>, vector<2x128xf32> -> vector<2x128xf32>
    %140 = arith.addf %137, %139 : vector<2x128xf32>
    %c0_71 = arith.constant 0 : index
    %c0_72 = arith.constant 0 : index
    %141 = vector.load %arg7[%c0_71, %c0_72] : memref<1x128xf32, #tpu.memory_space<vmem>>, vector<1x128xf32>
    %142 = vector.broadcast %141 : vector<1x128xf32> to vector<2x128xf32>
    %143 = arith.addf %140, %142 : vector<2x128xf32>
    %144 = vector.extract_strided_slice %143 {offsets = [0, 0], sizes = [2, 32], strides = [1, 1]} : vector<2x128xf32> to vector<2x32xf32>
    %cst_73 = arith.constant 0.000000e+00 : f32
    %145 = vector.broadcast %cst_73 : f32 to vector<2x32xf32>
    %146 = arith.subf %145, %144 : vector<2x32xf32>
    %147 = math.exp %146 : vector<2x32xf32>
    %cst_74 = arith.constant 1.000000e+00 : f32
    %148 = vector.broadcast %cst_74 : f32 to vector<2x32xf32>
    %149 = arith.addf %148, %147 : vector<2x32xf32>
    %cst_75 = arith.constant 1.000000e+00 : f32
    %150 = vector.broadcast %cst_75 : f32 to vector<2x32xf32>
    %151 = arith.divf %150, %149 : vector<2x32xf32>
    %152 = vector.extract_strided_slice %143 {offsets = [0, 32], sizes = [2, 32], strides = [1, 1]} : vector<2x128xf32> to vector<2x32xf32>
    %cst_76 = arith.constant 0.000000e+00 : f32
    %153 = vector.broadcast %cst_76 : f32 to vector<2x32xf32>
    %154 = arith.subf %153, %152 : vector<2x32xf32>
    %155 = math.exp %154 : vector<2x32xf32>
    %cst_77 = arith.constant 1.000000e+00 : f32
    %156 = vector.broadcast %cst_77 : f32 to vector<2x32xf32>
    %157 = arith.addf %156, %155 : vector<2x32xf32>
    %cst_78 = arith.constant 1.000000e+00 : f32
    %158 = vector.broadcast %cst_78 : f32 to vector<2x32xf32>
    %159 = arith.divf %158, %157 : vector<2x32xf32>
    %160 = vector.extract_strided_slice %143 {offsets = [0, 64], sizes = [2, 32], strides = [1, 1]} : vector<2x128xf32> to vector<2x32xf32>
    %161 = math.tanh %160 : vector<2x32xf32>
    %162 = vector.extract_strided_slice %143 {offsets = [0, 96], sizes = [2, 32], strides = [1, 1]} : vector<2x128xf32> to vector<2x32xf32>
    %cst_79 = arith.constant 0.000000e+00 : f32
    %163 = vector.broadcast %cst_79 : f32 to vector<2x32xf32>
    %164 = arith.subf %163, %162 : vector<2x32xf32>
    %165 = math.exp %164 : vector<2x32xf32>
    %cst_80 = arith.constant 1.000000e+00 : f32
    %166 = vector.broadcast %cst_80 : f32 to vector<2x32xf32>
    %167 = arith.addf %166, %165 : vector<2x32xf32>
    %cst_81 = arith.constant 1.000000e+00 : f32
    %168 = vector.broadcast %cst_81 : f32 to vector<2x32xf32>
    %169 = arith.divf %168, %167 : vector<2x32xf32>
    %170 = arith.mulf %159, %115 : vector<2x32xf32>
    %171 = arith.mulf %151, %161 : vector<2x32xf32>
    %172 = arith.addf %170, %171 : vector<2x32xf32>
    %173 = math.tanh %172 : vector<2x32xf32>
    %174 = arith.mulf %169, %173 : vector<2x32xf32>
    %cst_82 = arith.constant dense<0.000000e+00> : vector<2x16xf32>
    %175 = tpu.matmul %174, %14, %cst_82 {dimension_numbers = #tpu.dot_dimension_numbers<[1], [0], [0], [1], [0, 0, 1, 1], [], []>} : vector<2x32xf32>, vector<32x16xf32>, vector<2x16xf32> -> vector<2x16xf32>
    %cst_83 = arith.constant 0.000000e+00 : f32
    %176 = vector.broadcast %cst_83 : f32 to vector<2x16xf32>
    %177 = arith.cmpf ogt, %9, %176 : vector<2x16xf32>
    %cst_84 = arith.constant -1.000000e+30 : f32
    %178 = vector.broadcast %cst_84 : f32 to vector<2x16xf32>
    %179 = arith.select %177, %175, %178 : vector<2x16xi1>, vector<2x16xf32>
    %cst_85 = arith.constant dense<0xFF800000> : vector<2xf32>
    %180 = vector.multi_reduction <maximumf>, %179, %cst_85 [1] : vector<2x16xf32> to vector<2xf32>
    %181 = vector.shape_cast %180 : vector<2xf32> to vector<2x1xf32>
    %182 = vector.broadcast %181 : vector<2x1xf32> to vector<2x16xf32>
    %183 = arith.subf %179, %182 : vector<2x16xf32>
    %184 = math.exp %183 : vector<2x16xf32>
    %cst_86 = arith.constant dense<0.000000e+00> : vector<2xf32>
    %185 = vector.multi_reduction <add>, %184, %cst_86 [1] : vector<2x16xf32> to vector<2xf32>
    %186 = vector.shape_cast %185 : vector<2xf32> to vector<2x1xf32>
    %187 = vector.broadcast %186 : vector<2x1xf32> to vector<2x16xf32>
    %188 = arith.divf %184, %187 : vector<2x16xf32>
    %cst_87 = arith.constant dense<0.000000e+00> : vector<2x32xf32>
    %189 = tpu.matmul %188, %3, %cst_87 {dimension_numbers = #tpu.dot_dimension_numbers<[1], [0], [0], [1], [0, 0, 1, 1], [], []>} : vector<2x16xf32>, vector<16x32xf32>, vector<2x32xf32> -> vector<2x32xf32>
    %c0_88 = arith.constant 0 : index
    %c0_89 = arith.constant 0 : index
    %190 = vector.load %arg8[%c0_88, %c0_89] : memref<32x32xf32, #tpu.memory_space<vmem>>, vector<32x32xf32>
    %cst_90 = arith.constant dense<0.000000e+00> : vector<2x32xf32>
    %191 = tpu.matmul %174, %190, %cst_90 {dimension_numbers = #tpu.dot_dimension_numbers<[1], [0], [0], [1], [0, 0, 1, 1], [], []>} : vector<2x32xf32>, vector<32x32xf32>, vector<2x32xf32> -> vector<2x32xf32>
    %c0_91 = arith.constant 0 : index
    %c0_92 = arith.constant 0 : index
    %192 = vector.load %arg9[%c0_91, %c0_92] : memref<32x32xf32, #tpu.memory_space<vmem>>, vector<32x32xf32>
    %cst_93 = arith.constant dense<0.000000e+00> : vector<2x32xf32>
    %193 = tpu.matmul %189, %192, %cst_93 {dimension_numbers = #tpu.dot_dimension_numbers<[1], [0], [0], [1], [0, 0, 1, 1], [], []>} : vector<2x32xf32>, vector<32x32xf32>, vector<2x32xf32> -> vector<2x32xf32>
    %194 = arith.addf %191, %193 : vector<2x32xf32>
    %c0_94 = arith.constant 0 : index
    %c0_95 = arith.constant 0 : index
    %195 = vector.load %arg10[%c0_94, %c0_95] : memref<1x32xf32, #tpu.memory_space<vmem>>, vector<1x32xf32>
    %196 = vector.broadcast %195 : vector<1x32xf32> to vector<2x32xf32>
    %197 = arith.addf %194, %196 : vector<2x32xf32>
    %cst_96 = arith.constant 0.000000e+00 : f32
    %198 = vector.broadcast %cst_96 : f32 to vector<2x32xf32>
    %199 = arith.cmpf oge, %197, %198 : vector<2x32xf32>
    %cst_97 = arith.constant 0.00999999977 : f32
    %200 = vector.broadcast %cst_97 : f32 to vector<2x32xf32>
    %201 = arith.mulf %200, %197 : vector<2x32xf32>
    %202 = arith.select %199, %197, %201 : vector<2x32xi1>, vector<2x32xf32>
    %c0_98 = arith.constant 0 : index
    %c0_99 = arith.constant 0 : index
    %203 = vector.load %arg11[%c0_98, %c0_99] : memref<32x1xf32, #tpu.memory_space<vmem>>, vector<32x1xf32>
    %cst_100 = arith.constant dense<0.000000e+00> : vector<2x1xf32>
    %204 = tpu.matmul %202, %203, %cst_100 {dimension_numbers = #tpu.dot_dimension_numbers<[1], [0], [0], [1], [0, 0, 1, 1], [], []>} : vector<2x32xf32>, vector<32x1xf32>, vector<2x1xf32> -> vector<2x1xf32>
    %c0_101 = arith.constant 0 : index
    %c0_102 = arith.constant 0 : index
    %205 = vector.load %arg12[%c0_101, %c0_102] : memref<1x1xf32, #tpu.memory_space<vmem>>, vector<1x1xf32>
    %206 = vector.broadcast %205 : vector<1x1xf32> to vector<2x1xf32>
    %207 = arith.addf %204, %206 : vector<2x1xf32>
    %c0_103 = arith.constant 0 : index
    %c0_104 = arith.constant 0 : index
    %208 = vector.load %arg19[%c0_103, %c0_104] : memref<2x1xf32, #tpu.memory_space<vmem>>, vector<2x1xf32>
    tpu.vector_store %arg19[%c0_103, %c0_104], %207 {strides = array<i32>} : memref<2x1xf32, #tpu.memory_space<vmem>>, vector<2x1xf32>,
    %c0_105 = arith.constant 0 : index
    %c0_106 = arith.constant 0 : index
    %209 = vector.load %arg13[%c0_105, %c0_106] : memref<32x32xf32, #tpu.memory_space<vmem>>, vector<32x32xf32>
    %cst_107 = arith.constant dense<0.000000e+00> : vector<16x32xf32>
    %210 = tpu.matmul %0, %209, %cst_107 {dimension_numbers = #tpu.dot_dimension_numbers<[1], [0], [0], [1], [0, 0, 1, 1], [], []>} : vector<16x32xf32>, vector<32x32xf32>, vector<16x32xf32> -> vector<16x32xf32>
    %c0_108 = arith.constant 0 : index
    %c0_109 = arith.constant 0 : index
    %211 = vector.load %arg14[%c0_108, %c0_109] : memref<1x32xf32, #tpu.memory_space<vmem>>, vector<1x32xf32>
    %212 = vector.broadcast %211 : vector<1x32xf32> to vector<16x32xf32>
    %213 = arith.addf %210, %212 : vector<16x32xf32>
    %214 = math.absf %213 : vector<16x32xf32>
    %cst_110 = arith.constant 0.000000e+00 : f32
    %215 = vector.broadcast %cst_110 : f32 to vector<16x32xf32>
    %216 = arith.subf %215, %214 : vector<16x32xf32>
    %217 = math.exp %216 : vector<16x32xf32>
    %cst_111 = arith.constant 1.000000e+00 : f32
    %218 = vector.broadcast %cst_111 : f32 to vector<16x32xf32>
    %219 = arith.addf %218, %217 : vector<16x32xf32>
    %220 = math.log %219 : vector<16x32xf32>
    %cst_112 = arith.constant 0.000000e+00 : f32
    %221 = vector.broadcast %cst_112 : f32 to vector<16x32xf32>
    %222 = arith.maximumf %213, %221 : vector<16x32xf32>
    %223 = arith.addf %220, %222 : vector<16x32xf32>
    %cst_113 = arith.constant 0.693147182 : f32
    %224 = vector.broadcast %cst_113 : f32 to vector<16x32xf32>
    %225 = arith.subf %223, %224 : vector<16x32xf32>
    %c0_114 = arith.constant 0 : index
    %c0_115 = arith.constant 0 : index
    %226 = vector.load %arg15[%c0_114, %c0_115] : memref<32x3xf32, #tpu.memory_space<vmem>>, vector<32x3xf32>
    %cst_116 = arith.constant dense<0.000000e+00> : vector<16x3xf32>
    %227 = tpu.matmul %225, %226, %cst_116 {dimension_numbers = #tpu.dot_dimension_numbers<[1], [0], [0], [1], [0, 0, 1, 1], [], []>} : vector<16x32xf32>, vector<32x3xf32>, vector<16x3xf32> -> vector<16x3xf32>
    %c0_117 = arith.constant 0 : index
    %c0_118 = arith.constant 0 : index
    %228 = vector.load %arg16[%c0_117, %c0_118] : memref<1x3xf32, #tpu.memory_space<vmem>>, vector<1x3xf32>
    %229 = vector.broadcast %228 : vector<1x3xf32> to vector<16x3xf32>
    %230 = arith.addf %227, %229 : vector<16x3xf32>
    %c0_119 = arith.constant 0 : index
    %c0_120 = arith.constant 0 : index
    %231 = vector.load %arg20[%c0_119, %c0_120] : memref<16x3xf32, #tpu.memory_space<vmem>>, vector<16x3xf32>
    tpu.vector_store %arg20[%c0_119, %c0_120], %230 {strides = array<i32>} : memref<16x3xf32, #tpu.memory_space<vmem>>, vector<16x3xf32>,
    %c0_121 = arith.constant 0 : index
    %c0_122 = arith.constant 0 : index
    %232 = vector.load %arg17[%c0_121, %c0_122] : memref<32x6xf32, #tpu.memory_space<vmem>>, vector<32x6xf32>
    %cst_123 = arith.constant dense<0.000000e+00> : vector<16x6xf32>
    %233 = tpu.matmul %0, %232, %cst_123 {dimension_numbers = #tpu.dot_dimension_numbers<[1], [0], [0], [1], [0, 0, 1, 1], [], []>} : vector<16x32xf32>, vector<32x6xf32>, vector<16x6xf32> -> vector<16x6xf32>
    %c0_124 = arith.constant 0 : index
    %c0_125 = arith.constant 0 : index
    %234 = vector.load %arg18[%c0_124, %c0_125] : memref<1x6xf32, #tpu.memory_space<vmem>>, vector<1x6xf32>
    %235 = vector.broadcast %234 : vector<1x6xf32> to vector<16x6xf32>
    %236 = arith.addf %233, %235 : vector<16x6xf32>
    %cst_126 = arith.constant dense<0.000000e+00> : vector<2x6xf32>
    %237 = tpu.matmul %9, %236, %cst_126 {dimension_numbers = #tpu.dot_dimension_numbers<[1], [0], [0], [1], [0, 0, 1, 1], [], []>} : vector<2x16xf32>, vector<16x6xf32>, vector<2x6xf32> -> vector<2x6xf32>
    %238 = vector.broadcast %13 : vector<2x1xf32> to vector<2x6xf32>
    %239 = arith.divf %237, %238 : vector<2x6xf32>
    %c0_127 = arith.constant 0 : index
    %c0_128 = arith.constant 0 : index
    %240 = vector.load %arg21[%c0_127, %c0_128] : memref<2x6xf32, #tpu.memory_space<vmem>>, vector<2x6xf32>
    tpu.vector_store %arg21[%c0_127, %c0_128], %239 {strides = array<i32>} : memref<2x6xf32, #tpu.memory_space<vmem>>, vector<2x6xf32>,
    return
  }
  func.func @transform_0(%arg0: i32) -> (i32, i32) {
    %c0_i32 = arith.constant 0 : i32
    %c0_i32_0 = arith.constant 0 : i32
    %c0_i32_1 = arith.constant 0 : i32
    return %c0_i32, %c0_i32_0 : i32, i32
  }
  func.func @transform_1(%arg0: i32) -> (i32, i32) {
    %c0_i32 = arith.constant 0 : i32
    %c0_i32_0 = arith.constant 0 : i32
    %c0_i32_1 = arith.constant 0 : i32
    return %c0_i32, %c0_i32_0 : i32, i32
  }
  func.func @transform_2(%arg0: i32) -> (i32, i32) {
    %c0_i32 = arith.constant 0 : i32
    %c0_i32_0 = arith.constant 0 : i32
    %c0_i32_1 = arith.constant 0 : i32
    return %c0_i32, %c0_i32_0 : i32, i32
  }
  func.func @transform_3(%arg0: i32) -> (i32, i32) {
    %c0_i32 = arith.constant 0 : i32
    %c0_i32_0 = arith.constant 0 : i32
    %c0_i32_1 = arith.constant 0 : i32
    return %c0_i32, %c0_i32_0 : i32, i32
  }
  func.func @transform_4(%arg0: i32) -> (i32, i32) {
    %c0_i32 = arith.constant 0 : i32
    %c0_i32_0 = arith.constant 0 : i32
    %c0_i32_1 = arith.constant 0 : i32
    return %c0_i32, %c0_i32_0 : i32, i32
  }
  func.func @transform_5(%arg0: i32) -> (i32, i32) {
    %c0_i32 = arith.constant 0 : i32
    %c0_i32_0 = arith.constant 0 : i32
    %c0_i32_1 = arith.constant 0 : i32
    return %c0_i32, %c0_i32_0 : i32, i32
  }
  func.func @transform_6(%arg0: i32) -> (i32, i32) {
    %c0_i32 = arith.constant 0 : i32
    %c0_i32_0 = arith.constant 0 : i32
    %c0_i32_1 = arith.constant 0 : i32
    return %c0_i32, %c0_i32_0 : i32, i32
  }
  func.func @transform_7(%arg0: i32) -> (i32, i32) {
    %c0_i32 = arith.constant 0 : i32
    %c0_i32_0 = arith.constant 0 : i32
    %c0_i32_1 = arith.constant 0 : i32
    return %c0_i32, %c0_i32_0 : i32, i32
  }
  func.func @transform_8(%arg0: i32) -> (i32, i32) {
    %c0_i32 = arith.constant 0 : i32
    %c0_i32_0 = arith.constant 0 : i32
    %c0_i32_1 = arith.constant 0 : i32
    return %c0_i32, %c0_i32_0 : i32, i32
  }
  func.func @transform_9(%arg0: i32) -> (i32, i32) {
    %c0_i32 = arith.constant 0 : i32
    %c0_i32_0 = arith.constant 0 : i32
    %c0_i32_1 = arith.constant 0 : i32
    return %c0_i32, %c0_i32_0 : i32, i32
  }
  func.func @transform_10(%arg0: i32) -> (i32, i32) {
    %c0_i32 = arith.constant 0 : i32
    %c0_i32_0 = arith.constant 0 : i32
    %c0_i32_1 = arith.constant 0 : i32
    return %c0_i32, %c0_i32_0 : i32, i32
  }
  func.func @transform_11(%arg0: i32) -> (i32, i32) {
    %c0_i32 = arith.constant 0 : i32
    %c0_i32_0 = arith.constant 0 : i32
    %c0_i32_1 = arith.constant 0 : i32
    return %c0_i32, %c0_i32_0 : i32, i32
  }
  func.func @transform_12(%arg0: i32) -> (i32, i32) {
    %c0_i32 = arith.constant 0 : i32
    %c0_i32_0 = arith.constant 0 : i32
    %c0_i32_1 = arith.constant 0 : i32
    return %c0_i32, %c0_i32_0 : i32, i32
  }
  func.func @transform_13(%arg0: i32) -> (i32, i32) {
    %c0_i32 = arith.constant 0 : i32
    %c0_i32_0 = arith.constant 0 : i32
    %c0_i32_1 = arith.constant 0 : i32
    return %c0_i32, %c0_i32_0 : i32, i32
  }
  func.func @transform_14(%arg0: i32) -> (i32, i32) {
    %c0_i32 = arith.constant 0 : i32
    %c0_i32_0 = arith.constant 0 : i32
    %c0_i32_1 = arith.constant 0 : i32
    return %c0_i32, %c0_i32_0 : i32, i32
  }
  func.func @transform_15(%arg0: i32) -> (i32, i32) {
    %c0_i32 = arith.constant 0 : i32
    %c0_i32_0 = arith.constant 0 : i32
    %c0_i32_1 = arith.constant 0 : i32
    return %c0_i32, %c0_i32_0 : i32, i32
  }
  func.func @transform_16(%arg0: i32) -> (i32, i32) {
    %c0_i32 = arith.constant 0 : i32
    %c0_i32_0 = arith.constant 0 : i32
    %c0_i32_1 = arith.constant 0 : i32
    return %c0_i32, %c0_i32_0 : i32, i32
  }
  func.func @transform_17(%arg0: i32) -> (i32, i32) {
    %c0_i32 = arith.constant 0 : i32
    %c0_i32_0 = arith.constant 0 : i32
    %c0_i32_1 = arith.constant 0 : i32
    return %c0_i32, %c0_i32_0 : i32, i32
  }
  func.func @transform_18(%arg0: i32) -> (i32, i32) {
    %c0_i32 = arith.constant 0 : i32
    %c0_i32_0 = arith.constant 0 : i32
    %c0_i32_1 = arith.constant 0 : i32
    return %c0_i32, %c0_i32_0 : i32, i32
  }
  func.func @transform_19(%arg0: i32) -> (i32, i32) {
    %c0_i32 = arith.constant 0 : i32
    %c0_i32_0 = arith.constant 0 : i32
    %c0_i32_1 = arith.constant 0 : i32
    return %c0_i32, %c0_i32_0 : i32, i32
  }
  func.func @transform_20(%arg0: i32) -> (i32, i32) {
    %c0_i32 = arith.constant 0 : i32
    %c0_i32_0 = arith.constant 0 : i32
    %c0_i32_1 = arith.constant 0 : i32
    return %c0_i32, %c0_i32_0 : i32, i32
  }
}

</mosaic_0001>

<llo_original>
// kernel: cggru_forward.2
$region0: #{cggru_forward.2}
  #allocation0 [shape = 'u32[]', space=smem, size = 0x4, offset = 0x4, fixed_abs, tag = 'smem constant byte address 0x4 - core index']
  #allocation1 [shape = 'u32[72,128]{1,0:T(1,128)}', space=vmem, size = 0x9000, scoped, tag = 'internal scratch']
  %s0 = inlined_call_operand.smem [shape: u32[39], index: -1, kind: input, shape index: {}]
  %s1 = sld [smem:[%s0]]
  %s2 = scalar_lea.smem %s0, 1
  %s3 = sld [smem:[%s2]]
  %s4 = scalar_lea.smem %s0, 2
  %s5 = sld [smem:[%s4]]
  %s6 = scalar_lea.smem %s0, 3
  %s7 = sld [smem:[%s6]]
  %s8 = scalar_lea.smem %s0, 4
  %s9 = sld [smem:[%s8]]
  %s10 = scalar_lea.smem %s0, 5
  %s11 = sld [smem:[%s10]]
  %s12 = scalar_lea.smem %s0, 6
  %s13 = sld [smem:[%s12]]
  %s14 = scalar_lea.smem %s0, 7
  %s15 = sld [smem:[%s14]]
  %s16 = scalar_lea.smem %s0, 8
  %s17 = sld [smem:[%s16]]
  %s18 = scalar_lea.smem %s0, 9
  %s19 = sld [smem:[%s18]]
  %s20 = scalar_lea.smem %s0, 10
  %s21 = sld [smem:[%s20]]
  %s22 = scalar_lea.smem %s0, 11
  %s23 = sld [smem:[%s22]]
  %s24 = scalar_lea.smem %s0, 12
  %s25 = sld [smem:[%s24]]
  %s26 = scalar_lea.smem %s0, 13
  %s27 = sld [smem:[%s26]]
  %s28 = scalar_lea.smem %s0, 14
  %s29 = sld [smem:[%s28]]
  %s30 = scalar_lea.smem %s0, 15
  %s31 = sld [smem:[%s30]]
  %s32 = scalar_lea.smem %s0, 16
  %s33 = sld [smem:[%s32]]
  %s34 = scalar_lea.smem %s0, 17
  %s35 = sld [smem:[%s34]]
  %s36 = scalar_lea.smem %s0, 18
  %s37 = sld [smem:[%s36]]
  %s38 = scalar_lea.smem %s0, 19
  %s39 = sld [smem:[%s38]]
  %s40 = scalar_lea.smem %s0, 20
  %s41 = sld [smem:[%s40]]
  %s42 = scalar_lea.smem %s0, 21
  %s43 = sld [smem:[%s42]]
  %s44 = scalar_lea.smem %s0, 22
  %s45 = sld [smem:[%s44]]
  %s46 = scalar_lea.smem %s0, 23
  %s47 = sld [smem:[%s46]]
  %s48 = scalar_lea.smem %s0, 24
  %s49 = sld [smem:[%s48]]
  %s50 = scalar_lea.smem %s0, 25
  %s51 = sld [smem:[%s50]]
  %s52 = scalar_lea.smem %s0, 26
  %s53 = sld [smem:[%s52]]
  %s54 = scalar_lea.smem %s0, 27
  %s55 = sld [smem:[%s54]]
  %s56 = scalar_lea.smem %s0, 28
  %s57 = sld [smem:[%s56]]
  %s58 = scalar_lea.smem %s0, 29
  %s59 = sld [smem:[%s58]]
  %s60 = scalar_lea.smem %s0, 30
  %s61 = sld [smem:[%s60]]
  %s62 = scalar_lea.smem %s0, 31
  %s63 = sld [smem:[%s62]]
  %s64 = scalar_lea.smem %s0, 32
  %s65 = sld [smem:[%s64]]
  %s66 = scalar_lea.smem %s0, 33
  %s67 = sld [smem:[%s66]]
  %s68 = scalar_lea.smem %s0, 34
  %s69 = sld [smem:[%s68]]
  %s70 = scalar_lea.smem %s0, 35
  %s71 = sld [smem:[%s70]]
  %s72 = scalar_lea.smem %s0, 36
  %s73 = sld [smem:[%s72]]
  %s74 = scalar_lea.smem %s0, 37
  %s75 = sld [smem:[%s74]]
  %s76 = scalar_lea.smem %s0, 38
  %s77 = sld [smem:[%s76]]
  %s78 = sld [smem:[#allocation0]]
  $region242: #{cggru_forward.2} parent=0
    _
  %s80 = ssub.s32 1, %s78
  %s81 = scalar_select 0, %s80, %s78
  $region1: #{cggru_forward.2} parent=0
    #allocation2 [shape = 'u8[12288]{0}', space=vmem, size = 0x3000, scoped, tag = 'input window, operand 6, single buffered']
    #allocation3 [shape = 's32[1]{0}', space=sflag, size = 0x4, scoped, tag = 'scoped memory for cggru_forward.2']
    #allocation4 [shape = 'u8[512]{0}', space=vmem, size = 0x400, scoped, tag = 'input window, operand 16, single buffered']
    #allocation5 [shape = 's32[1]{0}', space=sflag, size = 0x4, scoped, tag = 'scoped memory for cggru_forward.2']
    #allocation6 [shape = 'u8[512]{0}', space=vmem, size = 0x400, scoped, tag = 'input window, operand 17, single buffered']
    #allocation7 [shape = 'u8[512]{0}', space=vmem, size = 0x400, scoped, tag = 'input window, operand 19, single buffered']
    #allocation8 [shape = 's32[1]{0}', space=sflag, size = 0x4, scoped, tag = 'scoped memory for cggru_forward.2']
    #allocation9 [shape = 'u8[512]{0}', space=vmem, size = 0x400, scoped, tag = 'input window, operand 22, single buffered']
    #allocation10 [shape = 'u8[16384]{0}', space=vmem, size = 0x4000, scoped, tag = 'input window, operand 23, single buffered']
    #allocation11 [shape = 's32[1]{0}', space=sflag, size = 0x4, scoped, tag = 'scoped memory for cggru_forward.2']
    #allocation12 [shape = 'u8[512]{0}', space=vmem, size = 0x400, scoped, tag = 'input window, operand 24, single buffered']
    #allocation13 [shape = 'u8[512]{0}', space=vmem, size = 0x400, scoped, tag = 'input window, operand 25, single buffered']
    #allocation14 [shape = 's32[1]{0}', space=sflag, size = 0x4, scoped, tag = 'scoped memory for cggru_forward.2']
    #allocation15 [shape = 'u8[512]{0}', space=vmem, size = 0x400, scoped, tag = 'input window, operand 26, single buffered']
    #allocation16 [shape = 'u8[16384]{0}', space=vmem, size = 0x4000, scoped, tag = 'input window, operand 27, single buffered']
    #allocation17 [shape = 's32[1]{0}', space=sflag, size = 0x4, scoped, tag = 'scoped memory for cggru_forward.2']
    #allocation18 [shape = 'u8[512]{0}', space=vmem, size = 0x400, scoped, tag = 'input window, operand 28, single buffered']
    #allocation19 [shape = 'u8[16384]{0}', space=vmem, size = 0x4000, scoped, tag = 'input window, operand 29, single buffered']
    #allocation20 [shape = 's32[1]{0}', space=sflag, size = 0x4, scoped, tag = 'scoped memory for cggru_forward.2']
    #allocation21 [shape = 'u8[16384]{0}', space=vmem, size = 0x4000, scoped, tag = 'input window, operand 30, single buffered']
    #allocation22 [shape = 'u8[512]{0}', space=vmem, size = 0x400, scoped, tag = 'input window, operand 31, single buffered']
    #allocation23 [shape = 's32[1]{0}', space=sflag, size = 0x4, scoped, tag = 'scoped memory for cggru_forward.2']
    #allocation24 [shape = 'u8[16384]{0}', space=vmem, size = 0x4000, scoped, tag = 'input window, operand 32, single buffered']
    #allocation25 [shape = 'u8[512]{0}', space=vmem, size = 0x400, scoped, tag = 'input window, operand 33, single buffered']
    #allocation26 [shape = 's32[1]{0}', space=sflag, size = 0x4, scoped, tag = 'scoped memory for cggru_forward.2']
    #allocation27 [shape = 'u8[16384]{0}', space=vmem, size = 0x4000, scoped, tag = 'input window, operand 34, single buffered']
    #allocation28 [shape = 'u8[16384]{0}', space=vmem, size = 0x4000, scoped, tag = 'input window, operand 35, single buffered']
    #allocation29 [shape = 's32[1]{0}', space=sflag, size = 0x4, scoped, tag = 'scoped memory for cggru_forward.2']
    #allocation30 [shape = 'u8[512]{0}', space=vmem, size = 0x400, scoped, tag = 'input window, operand 36, single buffered']
    #allocation31 [shape = 'u8[512]{0}', space=vmem, size = 0x400, scoped, tag = 'input window, operand 37, single buffered']
    #allocation32 [shape = 's32[1]{0}', space=sflag, size = 0x4, scoped, tag = 'scoped memory for cggru_forward.2']
    %82 = vsyncpa [#allocation3], 0
    %83 = vsyncpa [#allocation5], 0
    %84 = vsyncpa [#allocation8], 0
    %85 = vsyncpa [#allocation11], 0
    %86 = vsyncpa [#allocation14], 0
    %87 = vsyncpa [#allocation17], 0
    %88 = vsyncpa [#allocation20], 0
    %89 = vsyncpa [#allocation23], 0
    %90 = vsyncpa [#allocation26], 0
    %91 = vsyncpa [#allocation29], 0
    %92 = vsyncpa [#allocation32], 0
    // Predicated region
    $region2: #{cggru_forward.2} parent=1 // pred_check
      _
    $region3: #{cggru_forward.2} parent=1 // pred_check_branch
      %94 = sbr.rel (0) target = $region5
    $region4: #{cggru_forward.2} parent=1 // pred_region
      _
    $region5: #{cggru_forward.2} parent=1 // pred_fallthru
      _
    // Predicated region
    $region6: #{cggru_forward.2} parent=1 // pred_check
      _
    $region7: #{cggru_forward.2} parent=1 // pred_check_branch
      %96 = sbr.rel (0) target = $region9
    $region8: #{cggru_forward.2} parent=1 // pred_region
      _
    $region9: #{cggru_forward.2} parent=1 // pred_fallthru
      _
    // Predicated region
    $region10: #{cggru_forward.2} parent=1 // pred_check
      _
    $region11: #{cggru_forward.2} parent=1 // pred_check_branch
      %98 = sbr.rel (0) target = $region13
    $region12: #{cggru_forward.2} parent=1 // pred_region
      _
    $region13: #{cggru_forward.2} parent=1 // pred_fallthru
      _
    // Predicated region
    $region14: #{cggru_forward.2} parent=1 // pred_check
      _
    $region15: #{cggru_forward.2} parent=1 // pred_check_branch
      %100 = sbr.rel (0) target = $region17
    $region16: #{cggru_forward.2} parent=1 // pred_region
      _
    $region17: #{cggru_forward.2} parent=1 // pred_fallthru
      _
    // Predicated region
    $region18: #{cggru_forward.2} parent=1 // pred_check
      _
    $region19: #{cggru_forward.2} parent=1 // pred_check_branch
      %102 = sbr.rel (0) target = $region21
    $region20: #{cggru_forward.2} parent=1 // pred_region
      _
    $region21: #{cggru_forward.2} parent=1 // pred_fallthru
      _
    // Predicated region
    $region22: #{cggru_forward.2} parent=1 // pred_check
      _
    $region23: #{cggru_forward.2} parent=1 // pred_check_branch
      %104 = sbr.rel (0) target = $region25
    $region24: #{cggru_forward.2} parent=1 // pred_region
      _
    $region25: #{cggru_forward.2} parent=1 // pred_fallthru
      _
    // Predicated region
    $region26: #{cggru_forward.2} parent=1 // pred_check
      _
    $region27: #{cggru_forward.2} parent=1 // pred_check_branch
      %106 = sbr.rel (0) target = $region29
    $region28: #{cggru_forward.2} parent=1 // pred_region
      %108 = vsyncadd [#allocation3], 0
      %s109 = sshll.u32 %s13, 4
      %s110 = int_to_ptr.hbm [resolvable:$true] %s109
      %s111 = sshll.u32 [#allocation2], 4
      %s112 = int_to_ptr.vmem [resolvable:$true] %s111
      %117 = dma.hbm_to_vmem [thread:$0]  %s110, 384, %s112, [#allocation3], 128, 128, 8
    $region29: #{cggru_forward.2} parent=1 // pred_fallthru
      _
    // Predicated region
    $region30: #{cggru_forward.2} parent=1 // pred_check
      _
    $region31: #{cggru_forward.2} parent=1 // pred_check_branch
      %119 = sbr.rel (0) target = $region33
    $region32: #{cggru_forward.2} parent=1 // pred_region
      _
    $region33: #{cggru_forward.2} parent=1 // pred_fallthru
      _
    // Predicated region
    $region34: #{cggru_forward.2} parent=1 // pred_check
      _
    $region35: #{cggru_forward.2} parent=1 // pred_check_branch
      %121 = sbr.rel (0) target = $region37
    $region36: #{cggru_forward.2} parent=1 // pred_region
      _
    $region37: #{cggru_forward.2} parent=1 // pred_fallthru
      _
    // Predicated region
    $region38: #{cggru_forward.2} parent=1 // pred_check
      _
    $region39: #{cggru_forward.2} parent=1 // pred_check_branch
      %123 = sbr.rel (0) target = $region41
    $region40: #{cggru_forward.2} parent=1 // pred_region
      _
    $region41: #{cggru_forward.2} parent=1 // pred_fallthru
      _
    // Predicated region
    $region42: #{cggru_forward.2} parent=1 // pred_check
      _
    $region43: #{cggru_forward.2} parent=1 // pred_check_branch
      %125 = sbr.rel (0) target = $region45
    $region44: #{cggru_forward.2} parent=1 // pred_region
      _
    $region45: #{cggru_forward.2} parent=1 // pred_fallthru
      _
    // Predicated region
    $region46: #{cggru_forward.2} parent=1 // pred_check
      _
    $region47: #{cggru_forward.2} parent=1 // pred_check_branch
      %127 = sbr.rel (0) target = $region49
    $region48: #{cggru_forward.2} parent=1 // pred_region
      _
    $region49: #{cggru_forward.2} parent=1 // pred_fallthru
      _
    // Predicated region
    $region50: #{cggru_forward.2} parent=1 // pred_check
      _
    $region51: #{cggru_forward.2} parent=1 // pred_check_branch
      %129 = sbr.rel (0) target = $region53
    $region52: #{cggru_forward.2} parent=1 // pred_region
      _
    $region53: #{cggru_forward.2} parent=1 // pred_fallthru
      _
    // Predicated region
    $region54: #{cggru_forward.2} parent=1 // pred_check
      _
    $region55: #{cggru_forward.2} parent=1 // pred_check_branch
      %131 = sbr.rel (0) target = $region57
    $region56: #{cggru_forward.2} parent=1 // pred_region
      _
    $region57: #{cggru_forward.2} parent=1 // pred_fallthru
      _
    // Predicated region
    $region58: #{cggru_forward.2} parent=1 // pred_check
      _
    $region59: #{cggru_forward.2} parent=1 // pred_check_branch
      %133 = sbr.rel (0) target = $region61
    $region60: #{cggru_forward.2} parent=1 // pred_region
      _
    $region61: #{cggru_forward.2} parent=1 // pred_fallthru
      _
    // Predicated region
    $region62: #{cggru_forward.2} parent=1 // pred_check
      _
    $region63: #{cggru_forward.2} parent=1 // pred_check_branch
      %135 = sbr.rel (0) target = $region65
    $region64: #{cggru_forward.2} parent=1 // pred_region
      _
    $region65: #{cggru_forward.2} parent=1 // pred_fallthru
      _
    // Predicated region
    $region66: #{cggru_forward.2} parent=1 // pred_check
      _
    $region67: #{cggru_forward.2} parent=1 // pred_check_branch
      %137 = sbr.rel (0) target = $region69
    $region68: #{cggru_forward.2} parent=1 // pred_region
      %139 = vsyncadd [#allocation5], 0
      %s141 = sshll.u32 %s33, 4
      %s142 = int_to_ptr.hbm [resolvable:$true] %s141
      %s143 = sshll.u32 [#allocation4], 4
      %s144 = int_to_ptr.vmem [resolvable:$true] %s143
      %146 = dma.hbm_to_vmem [thread:$0]  %s142, 16, %s144, [#allocation5]
    $region69: #{cggru_forward.2} parent=1 // pred_fallthru
      _
    // Predicated region
    $region70: #{cggru_forward.2} parent=1 // pred_check
      _
    $region71: #{cggru_forward.2} parent=1 // pred_check_branch
      %148 = sbr.rel (0) target = $region73
    $region72: #{cggru_forward.2} parent=1 // pred_region
      %150 = vsyncadd [#allocation5], 0
      %s152 = sshll.u32 %s35, 4
      %s153 = int_to_ptr.hbm [resolvable:$true] %s152
      %s154 = sshll.u32 [#allocation6], 4
      %s155 = int_to_ptr.vmem [resolvable:$true] %s154
      %157 = dma.hbm_to_vmem [thread:$0]  %s153, 16, %s155, [#allocation5]
    $region73: #{cggru_forward.2} parent=1 // pred_fallthru
      _
    // Predicated region
    $region74: #{cggru_forward.2} parent=1 // pred_check
      _
    $region75: #{cggru_forward.2} parent=1 // pred_check_branch
      %159 = sbr.rel (0) target = $region77
    $region76: #{cggru_forward.2} parent=1 // pred_region
      _
    $region77: #{cggru_forward.2} parent=1 // pred_fallthru
      _
    // Predicated region
    $region78: #{cggru_forward.2} parent=1 // pred_check
      _
    $region79: #{cggru_forward.2} parent=1 // pred_check_branch
      %161 = sbr.rel (0) target = $region81
    $region80: #{cggru_forward.2} parent=1 // pred_region
      %163 = vsyncadd [#allocation8], 0
      %s165 = sshll.u32 %s39, 4
      %s166 = int_to_ptr.hbm [resolvable:$true] %s165
      %s167 = sshll.u32 [#allocation7], 4
      %s168 = int_to_ptr.vmem [resolvable:$true] %s167
      %170 = dma.hbm_to_vmem [thread:$0]  %s166, 16, %s168, [#allocation8]
    $region81: #{cggru_forward.2} parent=1 // pred_fallthru
      _
    // Predicated region
    $region82: #{cggru_forward.2} parent=1 // pred_check
      _
    $region83: #{cggru_forward.2} parent=1 // pred_check_branch
      %172 = sbr.rel (0) target = $region85
    $region84: #{cggru_forward.2} parent=1 // pred_region
      _
    $region85: #{cggru_forward.2} parent=1 // pred_fallthru
      _
    // Predicated region
    $region86: #{cggru_forward.2} parent=1 // pred_check
      _
    $region87: #{cggru_forward.2} parent=1 // pred_check_branch
      %174 = sbr.rel (0) target = $region89
    $region88: #{cggru_forward.2} parent=1 // pred_region
      _
    $region89: #{cggru_forward.2} parent=1 // pred_fallthru
      _
    // Predicated region
    $region90: #{cggru_forward.2} parent=1 // pred_check
      _
    $region91: #{cggru_forward.2} parent=1 // pred_check_branch
      %176 = sbr.rel (0) target = $region93
    $region92: #{cggru_forward.2} parent=1 // pred_region
      %178 = vsyncadd [#allocation8], 0
      %s180 = sshll.u32 %s45, 4
      %s181 = int_to_ptr.hbm [resolvable:$true] %s180
      %s182 = sshll.u32 [#allocation9], 4
      %s183 = int_to_ptr.vmem [resolvable:$true] %s182
      %185 = dma.hbm_to_vmem [thread:$0]  %s181, 16, %s183, [#allocation8]
    $region93: #{cggru_forward.2} parent=1 // pred_fallthru
      _
    // Predicated region
    $region94: #{cggru_forward.2} parent=1 // pred_check
      _
    $region95: #{cggru_forward.2} parent=1 // pred_check_branch
      %187 = sbr.rel (0) target = $region97
    $region96: #{cggru_forward.2} parent=1 // pred_region
      %189 = vsyncadd [#allocation11], 0
      %s190 = sshll.u32 %s47, 4
      %s191 = int_to_ptr.hbm [resolvable:$true] %s190
      %s192 = sshll.u32 [#allocation10], 4
      %s193 = int_to_ptr.vmem [resolvable:$true] %s192
      %198 = dma.hbm_to_vmem [thread:$0]  %s191, 512, %s193, [#allocation11], 128, 128, 8
    $region97: #{cggru_forward.2} parent=1 // pred_fallthru
      _
    // Predicated region
    $region98: #{cggru_forward.2} parent=1 // pred_check
      _
    $region99: #{cggru_forward.2} parent=1 // pred_check_branch
      %200 = sbr.rel (0) target = $region101
    $region100: #{cggru_forward.2} parent=1 // pred_region
      %202 = vsyncadd [#allocation11], 0
      %s204 = sshll.u32 %s49, 4
      %s205 = int_to_ptr.hbm [resolvable:$true] %s204
      %s206 = sshll.u32 [#allocation12], 4
      %s207 = int_to_ptr.vmem [resolvable:$true] %s206
      %209 = dma.hbm_to_vmem [thread:$0]  %s205, 16, %s207, [#allocation11]
    $region101: #{cggru_forward.2} parent=1 // pred_fallthru
      _
    // Predicated region
    $region102: #{cggru_forward.2} parent=1 // pred_check
      _
    $region103: #{cggru_forward.2} parent=1 // pred_check_branch
      %211 = sbr.rel (0) target = $region105
    $region104: #{cggru_forward.2} parent=1 // pred_region
      %213 = vsyncadd [#allocation14], 0
      %s215 = sshll.u32 %s51, 4
      %s216 = int_to_ptr.hbm [resolvable:$true] %s215
      %s217 = sshll.u32 [#allocation13], 4
      %s218 = int_to_ptr.vmem [resolvable:$true] %s217
      %220 = dma.hbm_to_vmem [thread:$0]  %s216, 16, %s218, [#allocation14]
    $region105: #{cggru_forward.2} parent=1 // pred_fallthru
      _
    // Predicated region
    $region106: #{cggru_forward.2} parent=1 // pred_check
      _
    $region107: #{cggru_forward.2} parent=1 // pred_check_branch
      %222 = sbr.rel (0) target = $region109
    $region108: #{cggru_forward.2} parent=1 // pred_region
      %224 = vsyncadd [#allocation14], 0
      %s226 = sshll.u32 %s53, 4
      %s227 = int_to_ptr.hbm [resolvable:$true] %s226
      %s228 = sshll.u32 [#allocation15], 4
      %s229 = int_to_ptr.vmem [resolvable:$true] %s228
      %231 = dma.hbm_to_vmem [thread:$0]  %s227, 16, %s229, [#allocation14]
    $region109: #{cggru_forward.2} parent=1 // pred_fallthru
      _
    // Predicated region
    $region110: #{cggru_forward.2} parent=1 // pred_check
      _
    $region111: #{cggru_forward.2} parent=1 // pred_check_branch
      %233 = sbr.rel (0) target = $region113
    $region112: #{cggru_forward.2} parent=1 // pred_region
      %235 = vsyncadd [#allocation17], 0
      %s236 = sshll.u32 %s55, 4
      %s237 = int_to_ptr.hbm [resolvable:$true] %s236
      %s238 = sshll.u32 [#allocation16], 4
      %s239 = int_to_ptr.vmem [resolvable:$true] %s238
      %244 = dma.hbm_to_vmem [thread:$0]  %s237, 512, %s239, [#allocation17], 128, 128, 8
    $region113: #{cggru_forward.2} parent=1 // pred_fallthru
      _
    // Predicated region
    $region114: #{cggru_forward.2} parent=1 // pred_check
      _
    $region115: #{cggru_forward.2} parent=1 // pred_check_branch
      %246 = sbr.rel (0) target = $region117
    $region116: #{cggru_forward.2} parent=1 // pred_region
      %248 = vsyncadd [#allocation17], 0
      %s250 = sshll.u32 %s57, 4
      %s251 = int_to_ptr.hbm [resolvable:$true] %s250
      %s252 = sshll.u32 [#allocation18], 4
      %s253 = int_to_ptr.vmem [resolvable:$true] %s252
      %255 = dma.hbm_to_vmem [thread:$0]  %s251, 16, %s253, [#allocation17]
    $region117: #{cggru_forward.2} parent=1 // pred_fallthru
      _
    // Predicated region
    $region118: #{cggru_forward.2} parent=1 // pred_check
      _
    $region119: #{cggru_forward.2} parent=1 // pred_check_branch
      %257 = sbr.rel (0) target = $region121
    $region120: #{cggru_forward.2} parent=1 // pred_region
      %259 = vsyncadd [#allocation20], 0
      %s260 = sshll.u32 %s59, 4
      %s261 = int_to_ptr.hbm [resolvable:$true] %s260
      %s262 = sshll.u32 [#allocation19], 4
      %s263 = int_to_ptr.vmem [resolvable:$true] %s262
      %268 = dma.hbm_to_vmem [thread:$0]  %s261, 512, %s263, [#allocation20], 128, 128, 8
    $region121: #{cggru_forward.2} parent=1 // pred_fallthru
      _
    // Predicated region
    $region122: #{cggru_forward.2} parent=1 // pred_check
      _
    $region123: #{cggru_forward.2} parent=1 // pred_check_branch
      %270 = sbr.rel (0) target = $region125
    $region124: #{cggru_forward.2} parent=1 // pred_region
      %272 = vsyncadd [#allocation20], 0
      %s273 = sshll.u32 %s61, 4
      %s274 = int_to_ptr.hbm [resolvable:$true] %s273
      %s275 = sshll.u32 [#allocation21], 4
      %s276 = int_to_ptr.vmem [resolvable:$true] %s275
      %281 = dma.hbm_to_vmem [thread:$0]  %s274, 512, %s276, [#allocation20], 128, 128, 8
    $region125: #{cggru_forward.2} parent=1 // pred_fallthru
      _
    // Predicated region
    $region126: #{cggru_forward.2} parent=1 // pred_check
      _
    $region127: #{cggru_forward.2} parent=1 // pred_check_branch
      %283 = sbr.rel (0) target = $region129
    $region128: #{cggru_forward.2} parent=1 // pred_region
      %285 = vsyncadd [#allocation23], 0
      %s287 = sshll.u32 %s63, 4
      %s288 = int_to_ptr.hbm [resolvable:$true] %s287
      %s289 = sshll.u32 [#allocation22], 4
      %s290 = int_to_ptr.vmem [resolvable:$true] %s289
      %292 = dma.hbm_to_vmem [thread:$0]  %s288, 16, %s290, [#allocation23]
    $region129: #{cggru_forward.2} parent=1 // pred_fallthru
      _
    // Predicated region
    $region130: #{cggru_forward.2} parent=1 // pred_check
      _
    $region131: #{cggru_forward.2} parent=1 // pred_check_branch
      %294 = sbr.rel (0) target = $region133
    $region132: #{cggru_forward.2} parent=1 // pred_region
      %296 = vsyncadd [#allocation23], 0
      %s297 = sshll.u32 %s65, 4
      %s298 = int_to_ptr.hbm [resolvable:$true] %s297
      %s299 = sshll.u32 [#allocation24], 4
      %s300 = int_to_ptr.vmem [resolvable:$true] %s299
      %305 = dma.hbm_to_vmem [thread:$0]  %s298, 512, %s300, [#allocation23], 128, 128, 8
    $region133: #{cggru_forward.2} parent=1 // pred_fallthru
      _
    // Predicated region
    $region134: #{cggru_forward.2} parent=1 // pred_check
      _
    $region135: #{cggru_forward.2} parent=1 // pred_check_branch
      %307 = sbr.rel (0) target = $region137
    $region136: #{cggru_forward.2} parent=1 // pred_region
      %309 = vsyncadd [#allocation26], 0
      %s311 = sshll.u32 %s67, 4
      %s312 = int_to_ptr.hbm [resolvable:$true] %s311
      %s313 = sshll.u32 [#allocation25], 4
      %s314 = int_to_ptr.vmem [resolvable:$true] %s313
      %316 = dma.hbm_to_vmem [thread:$0]  %s312, 16, %s314, [#allocation26]
    $region137: #{cggru_forward.2} parent=1 // pred_fallthru
      _
    // Predicated region
    $region138: #{cggru_forward.2} parent=1 // pred_check
      _
    $region139: #{cggru_forward.2} parent=1 // pred_check_branch
      %318 = sbr.rel (0) target = $region141
    $region140: #{cggru_forward.2} parent=1 // pred_region
      %320 = vsyncadd [#allocation26], 0
      %s321 = sshll.u32 %s69, 4
      %s322 = int_to_ptr.hbm [resolvable:$true] %s321
      %s323 = sshll.u32 [#allocation27], 4
      %s324 = int_to_ptr.vmem [resolvable:$true] %s323
      %329 = dma.hbm_to_vmem [thread:$0]  %s322, 512, %s324, [#allocation26], 128, 128, 8
    $region141: #{cggru_forward.2} parent=1 // pred_fallthru
      _
    // Predicated region
    $region142: #{cggru_forward.2} parent=1 // pred_check
      _
    $region143: #{cggru_forward.2} parent=1 // pred_check_branch
      %331 = sbr.rel (0) target = $region145
    $region144: #{cggru_forward.2} parent=1 // pred_region
      %333 = vsyncadd [#allocation29], 0
      %s334 = sshll.u32 %s71, 4
      %s335 = int_to_ptr.hbm [resolvable:$true] %s334
      %s336 = sshll.u32 [#allocation28], 4
      %s337 = int_to_ptr.vmem [resolvable:$true] %s336
      %342 = dma.hbm_to_vmem [thread:$0]  %s335, 512, %s337, [#allocation29], 128, 128, 8
    $region145: #{cggru_forward.2} parent=1 // pred_fallthru
      _
    // Predicated region
    $region146: #{cggru_forward.2} parent=1 // pred_check
      _
    $region147: #{cggru_forward.2} parent=1 // pred_check_branch
      %344 = sbr.rel (0) target = $region149
    $region148: #{cggru_forward.2} parent=1 // pred_region
      %346 = vsyncadd [#allocation29], 0
      %s348 = sshll.u32 %s73, 4
      %s349 = int_to_ptr.hbm [resolvable:$true] %s348
      %s350 = sshll.u32 [#allocation30], 4
      %s351 = int_to_ptr.vmem [resolvable:$true] %s350
      %353 = dma.hbm_to_vmem [thread:$0]  %s349, 16, %s351, [#allocation29]
    $region149: #{cggru_forward.2} parent=1 // pred_fallthru
      _
    // Predicated region
    $region150: #{cggru_forward.2} parent=1 // pred_check
      _
    $region151: #{cggru_forward.2} parent=1 // pred_check_branch
      %355 = sbr.rel (0) target = $region153
    $region152: #{cggru_forward.2} parent=1 // pred_region
      %357 = vsyncadd [#allocation32], 0
      %s359 = sshll.u32 %s75, 4
      %s360 = int_to_ptr.hbm [resolvable:$true] %s359
      %s361 = sshll.u32 [#allocation31], 4
      %s362 = int_to_ptr.vmem [resolvable:$true] %s361
      %364 = dma.hbm_to_vmem [thread:$0]  %s360, 16, %s362, [#allocation32]
    $region153: #{cggru_forward.2} parent=1 // pred_fallthru
      _
    // Predicated region
    $region154: #{cggru_forward.2} parent=1 // pred_check
      _
    $region155: #{cggru_forward.2} parent=1 // pred_check_branch
      %366 = sbr.rel (0) target = $region157
    $region156: #{cggru_forward.2} parent=1 // pred_region
      %368 = dma.done [#allocation3], 384
    $region157: #{cggru_forward.2} parent=1 // pred_fallthru
      _
    // Predicated region
    $region158: #{cggru_forward.2} parent=1 // pred_check
      _
    $region159: #{cggru_forward.2} parent=1 // pred_check_branch
      %370 = sbr.rel (0) target = $region161
    $region160: #{cggru_forward.2} parent=1 // pred_region
      %372 = dma.done [#allocation5], 16
    $region161: #{cggru_forward.2} parent=1 // pred_fallthru
      _
    // Predicated region
    $region162: #{cggru_forward.2} parent=1 // pred_check
      _
    $region163: #{cggru_forward.2} parent=1 // pred_check_branch
      %374 = sbr.rel (0) target = $region165
    $region164: #{cggru_forward.2} parent=1 // pred_region
      %376 = dma.done [#allocation5], 16
    $region165: #{cggru_forward.2} parent=1 // pred_fallthru
      _
    // Predicated region
    $region166: #{cggru_forward.2} parent=1 // pred_check
      _
    $region167: #{cggru_forward.2} parent=1 // pred_check_branch
      %378 = sbr.rel (0) target = $region169
    $region168: #{cggru_forward.2} parent=1 // pred_region
      %380 = dma.done [#allocation8], 16
    $region169: #{cggru_forward.2} parent=1 // pred_fallthru
      _
    // Predicated region
    $region170: #{cggru_forward.2} parent=1 // pred_check
      _
    $region171: #{cggru_forward.2} parent=1 // pred_check_branch
      %382 = sbr.rel (0) target = $region173
    $region172: #{cggru_forward.2} parent=1 // pred_region
      %384 = dma.done [#allocation8], 16
    $region173: #{cggru_forward.2} parent=1 // pred_fallthru
      _
    // Predicated region
    $region174: #{cggru_forward.2} parent=1 // pred_check
      _
    $region175: #{cggru_forward.2} parent=1 // pred_check_branch
      %386 = sbr.rel (0) target = $region177
    $region176: #{cggru_forward.2} parent=1 // pred_region
      %388 = dma.done [#allocation11], 512
    $region177: #{cggru_forward.2} parent=1 // pred_fallthru
      _
    // Predicated region
    $region178: #{cggru_forward.2} parent=1 // pred_check
      _
    $region179: #{cggru_forward.2} parent=1 // pred_check_branch
      %390 = sbr.rel (0) target = $region181
    $region180: #{cggru_forward.2} parent=1 // pred_region
      %392 = dma.done [#allocation11], 16
    $region181: #{cggru_forward.2} parent=1 // pred_fallthru
      _
    // Predicated region
    $region182: #{cggru_forward.2} parent=1 // pred_check
      _
    $region183: #{cggru_forward.2} parent=1 // pred_check_branch
      %394 = sbr.rel (0) target = $region185
    $region184: #{cggru_forward.2} parent=1 // pred_region
      %396 = dma.done [#allocation14], 16
    $region185: #{cggru_forward.2} parent=1 // pred_fallthru
      _
    // Predicated region
    $region186: #{cggru_forward.2} parent=1 // pred_check
      _
    $region187: #{cggru_forward.2} parent=1 // pred_check_branch
      %398 = sbr.rel (0) target = $region189
    $region188: #{cggru_forward.2} parent=1 // pred_region
      %400 = dma.done [#allocation14], 16
    $region189: #{cggru_forward.2} parent=1 // pred_fallthru
      _
    // Predicated region
    $region190: #{cggru_forward.2} parent=1 // pred_check
      _
    $region191: #{cggru_forward.2} parent=1 // pred_check_branch
      %402 = sbr.rel (0) target = $region193
    $region192: #{cggru_forward.2} parent=1 // pred_region
      %404 = dma.done [#allocation17], 512
    $region193: #{cggru_forward.2} parent=1 // pred_fallthru
      _
    // Predicated region
    $region194: #{cggru_forward.2} parent=1 // pred_check
      _
    $region195: #{cggru_forward.2} parent=1 // pred_check_branch
      %406 = sbr.rel (0) target = $region197
    $region196: #{cggru_forward.2} parent=1 // pred_region
      %408 = dma.done [#allocation17], 16
    $region197: #{cggru_forward.2} parent=1 // pred_fallthru
      _
    // Predicated region
    $region198: #{cggru_forward.2} parent=1 // pred_check
      _
    $region199: #{cggru_forward.2} parent=1 // pred_check_branch
      %410 = sbr.rel (0) target = $region201
    $region200: #{cggru_forward.2} parent=1 // pred_region
      %412 = dma.done [#allocation20], 512
    $region201: #{cggru_forward.2} parent=1 // pred_fallthru
      _
    // Predicated region
    $region202: #{cggru_forward.2} parent=1 // pred_check
      _
    $region203: #{cggru_forward.2} parent=1 // pred_check_branch
      %414 = sbr.rel (0) target = $region205
    $region204: #{cggru_forward.2} parent=1 // pred_region
      %416 = dma.done [#allocation20], 512
    $region205: #{cggru_forward.2} parent=1 // pred_fallthru
      _
    // Predicated region
    $region206: #{cggru_forward.2} parent=1 // pred_check
      _
    $region207: #{cggru_forward.2} parent=1 // pred_check_branch
      %418 = sbr.rel (0) target = $region209
    $region208: #{cggru_forward.2} parent=1 // pred_region
      %420 = dma.done [#allocation23], 16
    $region209: #{cggru_forward.2} parent=1 // pred_fallthru
      _
    // Predicated region
    $region210: #{cggru_forward.2} parent=1 // pred_check
      _
    $region211: #{cggru_forward.2} parent=1 // pred_check_branch
      %422 = sbr.rel (0) target = $region213
    $region212: #{cggru_forward.2} parent=1 // pred_region
      %424 = dma.done [#allocation23], 512
    $region213: #{cggru_forward.2} parent=1 // pred_fallthru
      _
    // Predicated region
    $region214: #{cggru_forward.2} parent=1 // pred_check
      _
    $region215: #{cggru_forward.2} parent=1 // pred_check_branch
      %426 = sbr.rel (0) target = $region217
    $region216: #{cggru_forward.2} parent=1 // pred_region
      %428 = dma.done [#allocation26], 16
    $region217: #{cggru_forward.2} parent=1 // pred_fallthru
      _
    // Predicated region
    $region218: #{cggru_forward.2} parent=1 // pred_check
      _
    $region219: #{cggru_forward.2} parent=1 // pred_check_branch
      %430 = sbr.rel (0) target = $region221
    $region220: #{cggru_forward.2} parent=1 // pred_region
      %432 = dma.done [#allocation26], 512
    $region221: #{cggru_forward.2} parent=1 // pred_fallthru
      _
    // Predicated region
    $region222: #{cggru_forward.2} parent=1 // pred_check
      _
    $region223: #{cggru_forward.2} parent=1 // pred_check_branch
      %434 = sbr.rel (0) target = $region225
    $region224: #{cggru_forward.2} parent=1 // pred_region
      %436 = dma.done [#allocation29], 512
    $region225: #{cggru_forward.2} parent=1 // pred_fallthru
      _
    // Predicated region
    $region226: #{cggru_forward.2} parent=1 // pred_check
      _
    $region227: #{cggru_forward.2} parent=1 // pred_check_branch
      %438 = sbr.rel (0) target = $region229
    $region228: #{cggru_forward.2} parent=1 // pred_region
      %440 = dma.done [#allocation29], 16
    $region229: #{cggru_forward.2} parent=1 // pred_fallthru
      _
    // Predicated region
    $region230: #{cggru_forward.2} parent=1 // pred_check
      _
    $region231: #{cggru_forward.2} parent=1 // pred_check_branch
      %442 = sbr.rel (0) target = $region233
    $region232: #{cggru_forward.2} parent=1 // pred_region
      %444 = dma.done [#allocation32], 16
    $region233: #{cggru_forward.2} parent=1 // pred_fallthru
      _
    %v445 = vld [vmem:[%s1] sm:$0xff]
    %v446 = vld [vmem:[%s1 + $0x8] sm:$0xff]
    %v447 = vld [vmem:[%s3] sm:$0xff]
    %v448 = vld [vmem:[%s3 + $0x8] sm:$0xff]
    %v449 = vld [vmem:[%s3 + $0x10] sm:$0xff]
    %v450 = vld [vmem:[%s3 + $0x18] sm:$0xff]
    %v451 = vld [vmem:[%s5] sm:$0xff]
    %v452 = vld [vmem:[%s5 + $0x8] sm:$0xff]
    %v453 = vld [vmem:[%s5 + $0x10] sm:$0xff]
    %v454 = vld [vmem:[%s5 + $0x18] sm:$0xff]
    %v455 = vlaneseq
    %v456 = vand.u32 %v455, 127
    %v457 = vld [vmem:[%s7] sm:$0xff]
    %v458 = vld [vmem:[%s7 + $0x8] sm:$0xff]
    %v459 = vld [vmem:[%s7 + $0x10] sm:$0xff]
    %v460 = vld [vmem:[%s7 + $0x18] sm:$0xff]
    %461 = vset.pattern.permute.xlu0 0
    %462 = vperm.xlu0 %461, %v457
    %v463 = vpop.permute.xlu0 %462
    %464 = vset.pattern.permute.xlu0 0
    %465 = vperm.xlu0 %464, %v458
    %v466 = vpop.permute.xlu0 %465
    %467 = vset.pattern.permute.xlu0 0
    %468 = vperm.xlu0 %467, %v459
    %v469 = vpop.permute.xlu0 %468
    %470 = vset.pattern.permute.xlu0 0
    %471 = vperm.xlu0 %470, %v460
    %v472 = vpop.permute.xlu0 %471
    %vm473 = vcmp.eq.s32.totalorder %v463, %v456
    %vm474 = vcmp.eq.s32.totalorder %v466, %v456
    %vm475 = vcmp.eq.s32.totalorder %v469, %v456
    %vm476 = vcmp.eq.s32.totalorder %v472, %v456
    %v477 = vsel %vm473, 1, 0
    %v478 = vsel %vm474, 1, 0
    %v479 = vsel %vm475, 1, 0
    %v480 = vsel %vm476, 1, 0
    %v481 = vcvt.s32.f32 %v477
    %v482 = vcvt.s32.f32 %v478
    %v483 = vcvt.s32.f32 %v479
    %v484 = vcvt.s32.f32 %v480
    %v485 = vld [vmem:[%s9] sm:$0xff]
    %v486 = vld [vmem:[%s9 + $0x8] sm:$0xff]
    %v487 = vld [vmem:[%s9 + $0x10] sm:$0xff]
    %v488 = vld [vmem:[%s9 + $0x18] sm:$0xff]
    %489 = vset.pattern.permute.xlu0 0
    %490 = vperm.xlu0 %489, %v485
    %v491 = vpop.permute.xlu0 %490
    %492 = vset.pattern.permute.xlu0 0
    %493 = vperm.xlu0 %492, %v486
    %v494 = vpop.permute.xlu0 %493
    %495 = vset.pattern.permute.xlu0 0
    %496 = vperm.xlu0 %495, %v487
    %v497 = vpop.permute.xlu0 %496
    %498 = vset.pattern.permute.xlu0 0
    %499 = vperm.xlu0 %498, %v488
    %v500 = vpop.permute.xlu0 %499
    %vm501 = vcmp.eq.s32.totalorder %v491, %v456
    %vm502 = vcmp.eq.s32.totalorder %v494, %v456
    %vm503 = vcmp.eq.s32.totalorder %v497, %v456
    %vm504 = vcmp.eq.s32.totalorder %v500, %v456
    %v505 = vsel %vm501, 1, 0
    %v506 = vsel %vm502, 1, 0
    %v507 = vsel %vm503, 1, 0
    %v508 = vsel %vm504, 1, 0
    %v509 = vcvt.s32.f32 %v505
    %v510 = vcvt.s32.f32 %v506
    %v511 = vcvt.s32.f32 %v507
    %v512 = vcvt.s32.f32 %v508
    %v513 = vlaneseq
    %v514 = vshrl.u32 %v513, 7
    %v515 = vadd.s32 %v514, 8
    %v516 = vld [vmem:[%s11] sm:$0x1]
    %v517 = vperm.slane %v516, 0
    %vm518 = vcmp.eq.s32.totalorder %v517, %v514
    %vm519 = vcmp.eq.s32.totalorder %v517, %v515
    %v520 = vsel %vm518, 1, 0
    %v521 = vsel %vm519, 1, 0
    %v522 = vcvt.s32.f32 %v520
    %v523 = vcvt.s32.f32 %v521
    %vm524 = vcmask 261120
    %v525 = vsel %vm524, %v522, 0.0
    %526 = vadd.xlane.f32.xlu0 %v525
    %v527 = vpop.xlane.xlu0 %526
    %v528 = vsel %vm524, %v523, 0.0
    %529 = vadd.xlane.f32.xlu0 %v528
    %v530 = vpop.xlane.xlu0 %529
    %v531 = vmax.f32 %v527, 1.0
    %v532 = vmax.f32 %v530, 1.0
    %v533 = vrcp.pop %v531
    %v534 = vmul.f32 %v531, %v533
    %v535 = vsub.f32 1.0, %v534
    %v536 = vmul.f32 %v533, %v535
    %v537 = vadd.f32 %v533, %v536
    %vm538 = vweird.f32 %v531
    %vm539 = vweird.f32 %v533
    %vm540 = vmor %vm538, %vm539
    %v541 = vsel %vm540, %v533, %v537
    %v542 = vand.u32 2147483647, %v531
    %vm543 = vcmp.eq.f32.partialorder %v542, 8.507059e+37
    %v544 = vand.u32 %v531, 2147483648
    %v545 = vor.u32 1.1754944e-38, %v544
    %v546 = vsel %vm543, %v545, %v541
    %v547 = vmul.f32 1.0, %v546
    %v548 = vrcp.pop %v532
    %v549 = vmul.f32 %v532, %v548
    %v550 = vsub.f32 1.0, %v549
    %v551 = vmul.f32 %v548, %v550
    %v552 = vadd.f32 %v548, %v551
    %vm553 = vweird.f32 %v532
    %vm554 = vweird.f32 %v548
    %vm555 = vmor %vm553, %vm554
    %v556 = vsel %vm555, %v548, %v552
    %v557 = vand.u32 2147483647, %v532
    %vm558 = vcmp.eq.f32.partialorder %v557, 8.507059e+37
    %v559 = vand.u32 %v532, 2147483648
    %v560 = vor.u32 1.1754944e-38, %v559
    %v561 = vsel %vm558, %v560, %v556
    %v562 = vmul.f32 1.0, %v561
    %v563 = vld [vmem:[#allocation2] sm:$0xff]
    %v564 = vld [vmem:[#allocation2 + $0x8] sm:$0xff]
    %v565 = vld [vmem:[#allocation2 + $0x10] sm:$0x7]
    %v566 = vld [vmem:[%s15] sm:$0x1]
    %v568 = vperm.slane %v566, 0
    %vm570 = vcmask 154624
    %v572 = vsel %vm570, %v445, 0
    %v575 = vsel %vm570, %v446, 0
    %vm577 = vcmask 1042432
    %v579 = vsel %vm577, %v565, 0
    %581 = vmatpush.msra.mxu0 0.0
    %582 = vmatpush.msra.mxu0 0.0
    %583 = vmatpush.msra.mxu0 0.0
    %584 = vmatpush.msra.mxu0 0.0
    %585 = vmatpush.msra.mxu0 0.0
    %586 = vmatpush.msra.mxu0 0.0
    %587 = vmatpush.msra.mxu0 0.0
    %588 = vmatpush.msra.mxu0 0.0
    %589 = vmatpush.msra.mxu0 0.0
    %590 = vmatpush.msra.mxu0 0.0
    %591 = vmatpush.msra.mxu0 0.0
    %592 = vmatpush.msra.mxu0 0.0
    %593 = vmatpush.msra.mxu0 0.0
    %594 = vmatpush.msra.mxu0 %v579
    %595 = vmatpush.msra.mxu0 %v564
    %596 = vmatpush.msra.mxu0 %v563
    %597 = vmatmul.f32.gmra.mxu0 %v572
    %v598 = vpop.f32.mrf.mxu0
    %v599 = vadd.f32 %v568, %v598
    %600 = vmatmul.f32.gmra.mxu0 %v575
    %v601 = vpop.f32.mrf.mxu0
    %v602 = vadd.f32 %v568, %v601
    %603 = vdwg.mxu0
    %vm604 = vcmp.ge.f32.partialorder %v599, 0.0
    %vm605 = vcmp.ge.f32.partialorder %v602, 0.0
    %v606 = vmul.f32 %v599, 0.01
    %v607 = vmul.f32 %v602, 0.01
    %v608 = vsel %vm604, %v599, %v606
    %v609 = vsel %vm605, %v602, %v607
    %vm610 = vcmask 130048
    %v612 = vsel %vm610, %v509, 0
    %v615 = vsel %vm610, %v510, 0
    %v618 = vsel %vm610, %v511, 0
    %v621 = vsel %vm610, %v512, 0
    %623 = vmatpush.msra.mxu0 0.0
    %624 = vmatpush.msra.mxu0 0.0
    %625 = vmatpush.msra.mxu0 0.0
    %626 = vmatpush.msra.mxu0 0.0
    %627 = vmatpush.msra.mxu0 0.0
    %628 = vmatpush.msra.mxu0 0.0
    %629 = vmatpush.msra.mxu0 0.0
    %630 = vmatpush.msra.mxu0 0.0
    %631 = vmatpush.msra.mxu0 0.0
    %632 = vmatpush.msra.mxu0 0.0
    %633 = vmatpush.msra.mxu0 0.0
    %634 = vmatpush.msra.mxu0 0.0
    %635 = vmatpush.msra.mxu0 0.0
    %636 = vmatpush.msra.mxu0 0.0
    %637 = vmatpush.msra.mxu0 %v609
    %638 = vmatpush.msra.mxu0 %v608
    %639 = vmatmul.f32.gmra.mxu0 %v612
    %v640 = vpop.f32.mrf.mxu0
    %v641 = vadd.f32 0.0, %v640
    %642 = vmatmul.f32.gmra.mxu0 %v615
    %v643 = vpop.f32.mrf.mxu0
    %v644 = vadd.f32 0.0, %v643
    %645 = vmatmul.f32.gmra.mxu0 %v618
    %v646 = vpop.f32.mrf.mxu0
    %v647 = vadd.f32 0.0, %v646
    %648 = vmatmul.f32.gmra.mxu0 %v621
    %v649 = vpop.f32.mrf.mxu0
    %v650 = vadd.f32 0.0, %v649
    %651 = vdwg.mxu0
    %v653 = vsel %vm610, %v481, 0
    %v656 = vsel %vm610, %v482, 0
    %v659 = vsel %vm610, %v483, 0
    %v662 = vsel %vm610, %v484, 0
    %664 = vmatpush.msra.mxu0 0.0
    %665 = vmatpush.msra.mxu0 0.0
    %666 = vmatpush.msra.mxu0 0.0
    %667 = vmatpush.msra.mxu0 0.0
    %668 = vmatpush.msra.mxu0 0.0
    %669 = vmatpush.msra.mxu0 0.0
    %670 = vmatpush.msra.mxu0 0.0
    %671 = vmatpush.msra.mxu0 0.0
    %672 = vmatpush.msra.mxu0 0.0
    %673 = vmatpush.msra.mxu0 0.0
    %674 = vmatpush.msra.mxu0 0.0
    %675 = vmatpush.msra.mxu0 0.0
    %676 = vmatpush.msra.mxu0 0.0
    %677 = vmatpush.msra.mxu0 0.0
    %678 = vmatpush.msra.mxu0 %v609
    %679 = vmatpush.msra.mxu0 %v608
    %680 = vmatmul.f32.gmra.mxu0 %v653
    %v681 = vpop.f32.mrf.mxu0
    %v682 = vadd.f32 0.0, %v681
    %683 = vmatmul.f32.gmra.mxu0 %v656
    %v684 = vpop.f32.mrf.mxu0
    %v685 = vadd.f32 0.0, %v684
    %686 = vmatmul.f32.gmra.mxu0 %v659
    %v687 = vpop.f32.mrf.mxu0
    %v688 = vadd.f32 0.0, %v687
    %689 = vmatmul.f32.gmra.mxu0 %v662
    %v690 = vpop.f32.mrf.mxu0
    %v691 = vadd.f32 0.0, %v690
    %692 = vdwg.mxu0
    %v693 = vsub.f32 %v447, 1.5
    %v694 = vsub.f32 %v448, 1.5
    %v695 = vsub.f32 %v449, 1.5
    %v696 = vsub.f32 %v450, 1.5
    %v697 = vmul.f32 %v693, -2.0
    %v698 = vmul.f32 %v694, -2.0
    %v699 = vmul.f32 %v695, -2.0
    %v700 = vmul.f32 %v696, -2.0
    %v701 = vmul.f32 %v697, 1.442695
    %v702 = vpow.pop %v701
    %v703 = vmul.f32 %v698, 1.442695
    %v704 = vpow.pop %v703
    %v705 = vmul.f32 %v699, 1.442695
    %v706 = vpow.pop %v705
    %v707 = vmul.f32 %v700, 1.442695
    %v708 = vpow.pop %v707
    %v709 = vmul.f32 %v693, -1.0
    %v710 = vmul.f32 %v694, -1.0
    %v711 = vmul.f32 %v695, -1.0
    %v712 = vmul.f32 %v696, -1.0
    %v713 = vmul.f32 %v709, 1.442695
    %v714 = vpow.pop %v713
    %v715 = vmul.f32 %v710, 1.442695
    %v716 = vpow.pop %v715
    %v717 = vmul.f32 %v711, 1.442695
    %v718 = vpow.pop %v717
    %v719 = vmul.f32 %v712, 1.442695
    %v720 = vpow.pop %v719
    %v721 = vmul.f32 %v714, 2.0
    %v722 = vmul.f32 %v716, 2.0
    %v723 = vmul.f32 %v718, 2.0
    %v724 = vmul.f32 %v720, 2.0
    %v725 = vsub.f32 %v702, %v721
    %v726 = vsub.f32 %v704, %v722
    %v727 = vsub.f32 %v706, %v723
    %v728 = vsub.f32 %v708, %v724
    %v729 = vrcp.pop 1.000005
    %v730 = vmul.f32 1.000005, %v729
    %v731 = vsub.f32 1.0, %v730
    %v732 = vmul.f32 %v729, %v731
    %v733 = vadd.f32 %v729, %v732
    %vm734 = vweird.f32 %v729
    %v735 = vsel %vm734, %v729, %v733
    %v736 = vmul.f32 %v725, %v735
    %v737 = vmul.f32 %v726, %v735
    %v738 = vmul.f32 %v727, %v735
    %v739 = vmul.f32 %v728, %v735
    %v740 = vld [vmem:[%s17] sm:$0xff]
    %v741 = vld [vmem:[%s17 + $0x8] sm:$0xff]
    %v742 = vld [vmem:[%s17 + $0x10] sm:$0xff]
    %v743 = vld [vmem:[%s17 + $0x18] sm:$0xff]
    %v744 = vld [vmem:[%s19] sm:$0xff]
    %v745 = vld [vmem:[%s19 + $0x8] sm:$0xff]
    %v746 = vld [vmem:[%s19 + $0x10] sm:$0xff]
    %v747 = vld [vmem:[%s19 + $0x18] sm:$0xff]
    %v749 = vsel %vm524, %v682, 0
    %v752 = vsel %vm524, %v685, 0
    %v755 = vsel %vm524, %v688, 0
    %v758 = vsel %vm524, %v691, 0
    %760 = vmatpush.msra.mxu0 0.0
    %761 = vmatpush.msra.mxu0 0.0
    %762 = vmatpush.msra.mxu0 0.0
    %763 = vmatpush.msra.mxu0 0.0
    %764 = vmatpush.msra.mxu0 0.0
    %765 = vmatpush.msra.mxu0 0.0
    %766 = vmatpush.msra.mxu0 0.0
    %767 = vmatpush.msra.mxu0 0.0
    %768 = vmatpush.msra.mxu0 0.0
    %769 = vmatpush.msra.mxu0 0.0
    %770 = vmatpush.msra.mxu0 0.0
    %771 = vmatpush.msra.mxu0 0.0
    %772 = vmatpush.msra.mxu0 %v747
    %773 = vmatpush.msra.mxu0 %v746
    %774 = vmatpush.msra.mxu0 %v745
    %775 = vmatpush.msra.mxu0 %v744
    %776 = vmatmul.f32.gmra.mxu0 %v749
    %v777 = vpop.f32.mrf.mxu0
    %v778 = vadd.f32 0.0, %v777
    %779 = vmatmul.f32.gmra.mxu0 %v752
    %v780 = vpop.f32.mrf.mxu0
    %v781 = vadd.f32 0.0, %v780
    %782 = vmatmul.f32.gmra.mxu0 %v755
    %v783 = vpop.f32.mrf.mxu0
    %v784 = vadd.f32 0.0, %v783
    %785 = vmatmul.f32.gmra.mxu0 %v758
    %v786 = vpop.f32.mrf.mxu0
    %v787 = vadd.f32 0.0, %v786
    %788 = vdwg.mxu0
    %v790 = vsel %vm524, %v641, 0
    %v793 = vsel %vm524, %v644, 0
    %v796 = vsel %vm524, %v647, 0
    %v799 = vsel %vm524, %v650, 0
    %801 = vmatpush.msra.mxu0 0.0
    %802 = vmatpush.msra.mxu0 0.0
    %803 = vmatpush.msra.mxu0 0.0
    %804 = vmatpush.msra.mxu0 0.0
    %805 = vmatpush.msra.mxu0 0.0
    %806 = vmatpush.msra.mxu0 0.0
    %807 = vmatpush.msra.mxu0 0.0
    %808 = vmatpush.msra.mxu0 0.0
    %809 = vmatpush.msra.mxu0 0.0
    %810 = vmatpush.msra.mxu0 0.0
    %811 = vmatpush.msra.mxu0 0.0
    %812 = vmatpush.msra.mxu0 0.0
    %813 = vmatpush.msra.mxu0 %v743
    %814 = vmatpush.msra.mxu0 %v742
    %815 = vmatpush.msra.mxu0 %v741
    %816 = vmatpush.msra.mxu0 %v740
    %817 = vmatmul.f32.gmra.mxu0 %v790
    %v818 = vpop.f32.mrf.mxu0
    %v819 = vadd.f32 %v778, %v818
    %820 = vmatmul.f32.gmra.mxu0 %v793
    %v821 = vpop.f32.mrf.mxu0
    %v822 = vadd.f32 %v781, %v821
    %823 = vmatmul.f32.gmra.mxu0 %v796
    %v824 = vpop.f32.mrf.mxu0
    %v825 = vadd.f32 %v784, %v824
    %826 = vmatmul.f32.gmra.mxu0 %v799
    %v827 = vpop.f32.mrf.mxu0
    %v828 = vadd.f32 %v787, %v827
    %829 = vdwg.mxu0
    %v830 = vld [vmem:[%s21] sm:$0x1]
    %832 = vset.pattern.permute.xlu0 0
    %833 = vperm.xlu0 %832, %v447
    %v834 = vpop.permute.xlu0 %833
    %837 = vset.pattern.permute.xlu0 0
    %838 = vperm.xlu0 %837, %v448
    %v839 = vpop.permute.xlu0 %838
    %842 = vset.pattern.permute.xlu0 0
    %843 = vperm.xlu0 %842, %v449
    %v844 = vpop.permute.xlu0 %843
    %847 = vset.pattern.permute.xlu0 0
    %848 = vperm.xlu0 %847, %v450
    %v849 = vpop.permute.xlu0 %848
    %v852 = vperm.slane %v830, 0
    %v854 = vmul.f32 %v834, %v852
    %v855 = vmul.f32 %v839, %v852
    %v856 = vmul.f32 %v844, %v852
    %v857 = vmul.f32 %v849, %v852
    %v858 = vadd.f32 %v819, %v854
    %v859 = vadd.f32 %v822, %v855
    %v860 = vadd.f32 %v825, %v856
    %v861 = vadd.f32 %v828, %v857
    %v862 = vld [vmem:[%s23] sm:$0x1]
    %864 = vset.pattern.permute.xlu0 0
    %865 = vperm.xlu0 %864, %v451
    %v866 = vpop.permute.xlu0 %865
    %869 = vset.pattern.permute.xlu0 0
    %870 = vperm.xlu0 %869, %v452
    %v871 = vpop.permute.xlu0 %870
    %874 = vset.pattern.permute.xlu0 0
    %875 = vperm.xlu0 %874, %v453
    %v876 = vpop.permute.xlu0 %875
    %879 = vset.pattern.permute.xlu0 0
    %880 = vperm.xlu0 %879, %v454
    %v881 = vpop.permute.xlu0 %880
    %v884 = vperm.slane %v862, 0
    %v886 = vmul.f32 %v866, %v884
    %v887 = vmul.f32 %v871, %v884
    %v888 = vmul.f32 %v876, %v884
    %v889 = vmul.f32 %v881, %v884
    %v890 = vadd.f32 %v858, %v886
    %v891 = vadd.f32 %v859, %v887
    %v892 = vadd.f32 %v860, %v888
    %v893 = vadd.f32 %v861, %v889
    %895 = vset.pattern.permute.xlu0 0
    %896 = vperm.xlu0 %895, %v736
    %v897 = vpop.permute.xlu0 %896
    %900 = vset.pattern.permute.xlu0 0
    %901 = vperm.xlu0 %900, %v737
    %v902 = vpop.permute.xlu0 %901
    %905 = vset.pattern.permute.xlu0 0
    %906 = vperm.xlu0 %905, %v738
    %v907 = vpop.permute.xlu0 %906
    %910 = vset.pattern.permute.xlu0 0
    %911 = vperm.xlu0 %910, %v739
    %v912 = vpop.permute.xlu0 %911
    %v914 = vmul.f32 %v890, %v897
    %v915 = vmul.f32 %v891, %v902
    %v916 = vmul.f32 %v892, %v907
    %v917 = vmul.f32 %v893, %v912
    %v919 = vsel %vm524, %v522, 0
    %v922 = vsel %vm524, %v523, 0
    %924 = vmatpush.msra.mxu0 0.0
    %925 = vmatpush.msra.mxu0 0.0
    %926 = vmatpush.msra.mxu0 0.0
    %927 = vmatpush.msra.mxu0 0.0
    %928 = vmatpush.msra.mxu0 0.0
    %929 = vmatpush.msra.mxu0 0.0
    %930 = vmatpush.msra.mxu0 0.0
    %931 = vmatpush.msra.mxu0 0.0
    %932 = vmatpush.msra.mxu0 0.0
    %933 = vmatpush.msra.mxu0 0.0
    %934 = vmatpush.msra.mxu0 0.0
    %935 = vmatpush.msra.mxu0 0.0
    %936 = vmatpush.msra.mxu0 %v917
    %937 = vmatpush.msra.mxu0 %v916
    %938 = vmatpush.msra.mxu0 %v915
    %939 = vmatpush.msra.mxu0 %v914
    %940 = vmatmul.f32.gmra.mxu0 %v919
    %v941 = vpop.f32.mrf.mxu0
    %v942 = vadd.f32 0.0, %v941
    %943 = vmatmul.f32.gmra.mxu0 %v922
    %v944 = vpop.f32.mrf.mxu0
    %v945 = vadd.f32 0.0, %v944
    %946 = vdwg.mxu0
    %v947 = vmul.f32 %v942, %v547
    %v948 = vmul.f32 %v945, %v562
    %v949 = vld [vmem:[%s25] sm:$0xff]
    %v950 = vld [vmem:[%s25 + $0x8] sm:$0xff]
    %v951 = vld [vmem:[%s25 + $0x10] sm:$0xff]
    %v952 = vld [vmem:[%s25 + $0x18] sm:$0xff]
    %v953 = vld [vmem:[%s25 + $0x20] sm:$0xff]
    %v954 = vld [vmem:[%s25 + $0x28] sm:$0xff]
    %v955 = vld [vmem:[%s25 + $0x30] sm:$0xff]
    %v956 = vld [vmem:[%s25 + $0x38] sm:$0xff]
    %v957 = vld [vmem:[%s27] sm:$0x1]
    %v959 = vperm.slane %v957, 0
    %vm961 = vcmask 523264
    %v963 = vsel %vm961, %v947, 0
    %v966 = vsel %vm961, %v948, 0
    %968 = vmatpush.msra.mxu0 0.0
    %969 = vmatpush.msra.mxu0 0.0
    %970 = vmatpush.msra.mxu0 0.0
    %971 = vmatpush.msra.mxu0 0.0
    %972 = vmatpush.msra.mxu0 0.0
    %973 = vmatpush.msra.mxu0 0.0
    %974 = vmatpush.msra.mxu0 0.0
    %975 = vmatpush.msra.mxu0 0.0
    %976 = vmatpush.msra.mxu0 %v956
    %977 = vmatpush.msra.mxu0 %v955
    %978 = vmatpush.msra.mxu0 %v954
    %979 = vmatpush.msra.mxu0 %v953
    %980 = vmatpush.msra.mxu0 %v952
    %981 = vmatpush.msra.mxu0 %v951
    %982 = vmatpush.msra.mxu0 %v950
    %983 = vmatpush.msra.mxu0 %v949
    %984 = vmatmul.f32.gmra.mxu0 %v963
    %v985 = vpop.f32.mrf.mxu0
    %v986 = vadd.f32 %v959, %v985
    %987 = vmatmul.f32.gmra.mxu0 %v966
    %v988 = vpop.f32.mrf.mxu0
    %v989 = vadd.f32 %v959, %v988
    %990 = vdwg.mxu0
    %v991 = vand.u32 2147483647, %v986
    %v992 = vand.u32 2147483647, %v989
    %v993 = vsub.f32 0.0, %v991
    %v994 = vsub.f32 0.0, %v992
    %v995 = vmul.f32 %v993, 1.442695
    %v996 = vpow.pop %v995
    %v997 = vmul.f32 %v994, 1.442695
    %v998 = vpow.pop %v997
    %v999 = vadd.f32 %v996, 1.0
    %v1000 = vadd.f32 %v998, 1.0
    %v1001 = vlog2.pop %v999
    %v1002 = vmul.f32 %v1001, 0.6931472
    %v1003 = vlog2.pop %v1000
    %v1004 = vmul.f32 %v1003, 0.6931472
    %v1005 = vmax.f32 %v986, 0.0
    %v1006 = vmax.f32 %v989, 0.0
    %v1007 = vadd.f32 %v1002, %v1005
    %v1008 = vadd.f32 %v1004, %v1006
    %v1009 = vsub.f32 %v1007, 0.6931472
    %v1010 = vsub.f32 %v1008, 0.6931472
    %v1011 = vld [vmem:[%s29] sm:$0xff]
    %v1012 = vld [vmem:[%s29 + $0x8] sm:$0xff]
    %v1013 = vld [vmem:[%s29 + $0x10] sm:$0xff]
    %v1014 = vld [vmem:[%s29 + $0x18] sm:$0xff]
    %v1015 = vld [vmem:[%s29 + $0x20] sm:$0xff]
    %v1016 = vld [vmem:[%s29 + $0x28] sm:$0xff]
    %v1017 = vld [vmem:[%s29 + $0x30] sm:$0xff]
    %v1018 = vld [vmem:[%s29 + $0x38] sm:$0xff]
    %v1019 = vld [vmem:[%s31] sm:$0x1]
    %v1021 = vperm.slane %v1019, 0
    %v1024 = vsel %vm961, %v1009, 0
    %v1027 = vsel %vm961, %v1010, 0
    %1029 = vmatpush.msra.mxu0 0.0
    %1030 = vmatpush.msra.mxu0 0.0
    %1031 = vmatpush.msra.mxu0 0.0
    %1032 = vmatpush.msra.mxu0 0.0
    %1033 = vmatpush.msra.mxu0 0.0
    %1034 = vmatpush.msra.mxu0 0.0
    %1035 = vmatpush.msra.mxu0 0.0
    %1036 = vmatpush.msra.mxu0 0.0
    %1037 = vmatpush.msra.mxu0 %v1018
    %1038 = vmatpush.msra.mxu0 %v1017
    %1039 = vmatpush.msra.mxu0 %v1016
    %1040 = vmatpush.msra.mxu0 %v1015
    %1041 = vmatpush.msra.mxu0 %v1014
    %1042 = vmatpush.msra.mxu0 %v1013
    %1043 = vmatpush.msra.mxu0 %v1012
    %1044 = vmatpush.msra.mxu0 %v1011
    %1045 = vmatmul.f32.gmra.mxu0 %v1024
    %v1046 = vpop.f32.mrf.mxu0
    %v1047 = vadd.f32 %v1021, %v1046
    %1048 = vmatmul.f32.gmra.mxu0 %v1027
    %v1049 = vpop.f32.mrf.mxu0
    %v1050 = vadd.f32 %v1021, %v1049
    %1051 = vdwg.mxu0
    %vm1052 = vcmp.ge.f32.partialorder %v1047, 0.0
    %vm1053 = vcmp.ge.f32.partialorder %v1050, 0.0
    %v1054 = vmul.f32 %v1047, 0.01
    %v1055 = vmul.f32 %v1050, 0.01
    %v1056 = vsel %vm1052, %v1047, %v1054
    %v1057 = vsel %vm1053, %v1050, %v1055
    %v1058 = vld [vmem:[#allocation27] sm:$0xff]
    %v1059 = vld [vmem:[#allocation27 + $0x8] sm:$0xff]
    %v1060 = vld [vmem:[#allocation27 + $0x10] sm:$0xff]
    %v1061 = vld [vmem:[#allocation27 + $0x18] sm:$0xff]
    %v1062 = vld [vmem:[#allocation30] sm:$0x1]
    %v1064 = vperm.slane %v1062, 0
    %v1067 = vsel %vm524, %v1056, 0
    %v1070 = vsel %vm524, %v1057, 0
    %1072 = vmatpush.msra.mxu0 0.0
    %1073 = vmatpush.msra.mxu0 0.0
    %1074 = vmatpush.msra.mxu0 0.0
    %1075 = vmatpush.msra.mxu0 0.0
    %1076 = vmatpush.msra.mxu0 0.0
    %1077 = vmatpush.msra.mxu0 0.0
    %1078 = vmatpush.msra.mxu0 0.0
    %1079 = vmatpush.msra.mxu0 0.0
    %1080 = vmatpush.msra.mxu0 0.0
    %1081 = vmatpush.msra.mxu0 0.0
    %1082 = vmatpush.msra.mxu0 0.0
    %1083 = vmatpush.msra.mxu0 0.0
    %1084 = vmatpush.msra.mxu0 %v1061
    %1085 = vmatpush.msra.mxu0 %v1060
    %1086 = vmatpush.msra.mxu0 %v1059
    %1087 = vmatpush.msra.mxu0 %v1058
    %1088 = vmatmul.f32.gmra.mxu0 %v1067
    %v1089 = vpop.f32.mrf.mxu0
    %v1090 = vadd.f32 %v1064, %v1089
    %1091 = vmatmul.f32.gmra.mxu0 %v1070
    %v1092 = vpop.f32.mrf.mxu0
    %v1093 = vadd.f32 %v1064, %v1092
    %1094 = vdwg.mxu0
    %v1095 = vld [vmem:[#allocation28] sm:$0xff]
    %v1096 = vld [vmem:[#allocation28 + $0x8] sm:$0xff]
    %v1097 = vld [vmem:[#allocation28 + $0x10] sm:$0xff]
    %v1098 = vld [vmem:[#allocation28 + $0x18] sm:$0xff]
    %v1099 = vld [vmem:[#allocation31] sm:$0x1]
    %v1101 = vperm.slane %v1099, 0
    %v1104 = vsel %vm524, %v608, 0
    %v1107 = vsel %vm524, %v609, 0
    %1109 = vmatpush.msra.mxu0 0.0
    %1110 = vmatpush.msra.mxu0 0.0
    %1111 = vmatpush.msra.mxu0 0.0
    %1112 = vmatpush.msra.mxu0 0.0
    %1113 = vmatpush.msra.mxu0 0.0
    %1114 = vmatpush.msra.mxu0 0.0
    %1115 = vmatpush.msra.mxu0 0.0
    %1116 = vmatpush.msra.mxu0 0.0
    %1117 = vmatpush.msra.mxu0 0.0
    %1118 = vmatpush.msra.mxu0 0.0
    %1119 = vmatpush.msra.mxu0 0.0
    %1120 = vmatpush.msra.mxu0 0.0
    %1121 = vmatpush.msra.mxu0 %v1098
    %1122 = vmatpush.msra.mxu0 %v1097
    %1123 = vmatpush.msra.mxu0 %v1096
    %1124 = vmatpush.msra.mxu0 %v1095
    %1125 = vmatmul.f32.gmra.mxu0 %v1104
    %v1126 = vpop.f32.mrf.mxu0
    %v1127 = vadd.f32 %v1101, %v1126
    %1128 = vmatmul.f32.gmra.mxu0 %v1107
    %v1129 = vpop.f32.mrf.mxu0
    %v1130 = vadd.f32 %v1101, %v1129
    %1131 = vdwg.mxu0
    %v1132 = vadd.f32 %v1090, %v1127
    %v1133 = vadd.f32 %v1093, %v1130
    %v1134 = vsub.f32 0.0, %v1132
    %v1135 = vsub.f32 0.0, %v1133
    %v1136 = vmul.f32 %v1134, 1.442695
    %v1137 = vpow.pop %v1136
    %v1138 = vmul.f32 %v1135, 1.442695
    %v1139 = vpow.pop %v1138
    %v1140 = vadd.f32 %v1137, 1.0
    %v1141 = vadd.f32 %v1139, 1.0
    %v1142 = vrcp.pop %v1140
    %v1143 = vmul.f32 %v1140, %v1142
    %v1144 = vsub.f32 1.0, %v1143
    %v1145 = vmul.f32 %v1142, %v1144
    %v1146 = vadd.f32 %v1142, %v1145
    %vm1147 = vweird.f32 %v1140
    %vm1148 = vweird.f32 %v1142
    %vm1149 = vmor %vm1147, %vm1148
    %v1150 = vsel %vm1149, %v1142, %v1146
    %v1151 = vand.u32 2147483647, %v1140
    %vm1152 = vcmp.eq.f32.partialorder %v1151, 8.507059e+37
    %v1153 = vand.u32 %v1140, 2147483648
    %v1154 = vor.u32 1.1754944e-38, %v1153
    %v1155 = vsel %vm1152, %v1154, %v1150
    %v1156 = vmul.f32 1.0, %v1155
    %v1157 = vrcp.pop %v1141
    %v1158 = vmul.f32 %v1141, %v1157
    %v1159 = vsub.f32 1.0, %v1158
    %v1160 = vmul.f32 %v1157, %v1159
    %v1161 = vadd.f32 %v1157, %v1160
    %vm1162 = vweird.f32 %v1141
    %vm1163 = vweird.f32 %v1157
    %vm1164 = vmor %vm1162, %vm1163
    %v1165 = vsel %vm1164, %v1157, %v1161
    %v1166 = vand.u32 2147483647, %v1141
    %vm1167 = vcmp.eq.f32.partialorder %v1166, 8.507059e+37
    %v1168 = vand.u32 %v1141, 2147483648
    %v1169 = vor.u32 1.1754944e-38, %v1168
    %v1170 = vsel %vm1167, %v1169, %v1165
    %v1171 = vmul.f32 1.0, %v1170
    %1174 = vrot.lane.b32.xlu0 %v1127, 64
    %v1175 = vpop.permute.xlu0 %1174
    %1176 = vrot.lane.b32.xlu0 %v1130, 64
    %v1177 = vpop.permute.xlu0 %1176
    %v1180 = vmul.f32 %v1156, %v1175
    %v1181 = vmul.f32 %v1171, %v1177
    %1184 = vrot.lane.b32.xlu0 %v1180, 64
    %v1185 = vpop.permute.xlu0 %1184
    %1186 = vrot.lane.b32.xlu0 %v1181, 64
    %v1187 = vpop.permute.xlu0 %1186
    %v1190 = vadd.f32 %v1090, %v1185
    %v1191 = vadd.f32 %v1093, %v1187
    %v1192 = vtanh.pop %v1190
    %v1193 = vtanh.pop %v1191
    %v1194 = vsub.f32 1.0, %v1156
    %v1195 = vsub.f32 1.0, %v1171
    %1198 = vrot.lane.b32.xlu0 %v1192, 96
    %v1199 = vpop.permute.xlu0 %1198
    %1200 = vrot.lane.b32.xlu0 %v1193, 96
    %v1201 = vpop.permute.xlu0 %1200
    %v1204 = vmul.f32 %v1194, %v1199
    %v1205 = vmul.f32 %v1195, %v1201
    %1206 = vrot.lane.b32.xlu0 %v608, 32
    %v1207 = vpop.permute.xlu0 %1206
    %1208 = vrot.lane.b32.xlu0 %v609, 32
    %v1209 = vpop.permute.xlu0 %1208
    %v1212 = vmul.f32 %v1156, %v1207
    %v1213 = vmul.f32 %v1171, %v1209
    %v1214 = vadd.f32 %v1204, %v1212
    %v1215 = vadd.f32 %v1205, %v1213
    %v1216 = vld [vmem:[#allocation4] sm:$0x1]
    %v1218 = vperm.slane %v1216, 0
    %v1220 = vmul.f32 %v866, %v1218
    %v1221 = vmul.f32 %v871, %v1218
    %v1222 = vmul.f32 %v876, %v1218
    %v1223 = vmul.f32 %v881, %v1218
    %v1224 = vld [vmem:[#allocation6] sm:$0x1]
    %v1226 = vperm.slane %v1224, 0
    %v1228 = vadd.f32 %v1220, %v1226
    %v1229 = vadd.f32 %v1221, %v1226
    %v1230 = vadd.f32 %v1222, %v1226
    %v1231 = vadd.f32 %v1223, %v1226
    %v1232 = vmax.f32 %v1228, 0.0
    %v1233 = vmax.f32 %v1229, 0.0
    %v1234 = vmax.f32 %v1230, 0.0
    %v1235 = vmax.f32 %v1231, 0.0
    %v1236 = vld [vmem:[%s37] sm:$0xff]
    %v1237 = vld [vmem:[%s37 + $0x8] sm:$0xff]
    %v1238 = vld [vmem:[%s37 + $0x10] sm:$0xff]
    %v1239 = vld [vmem:[%s37 + $0x18] sm:$0xff]
    %v1240 = vld [vmem:[#allocation7] sm:$0x1]
    %v1242 = vperm.slane %v1240, 0
    %v1245 = vsel %vm524, %v1232, 0
    %v1248 = vsel %vm524, %v1233, 0
    %v1251 = vsel %vm524, %v1234, 0
    %v1254 = vsel %vm524, %v1235, 0
    %1256 = vmatpush.msra.mxu0 0.0
    %1257 = vmatpush.msra.mxu0 0.0
    %1258 = vmatpush.msra.mxu0 0.0
    %1259 = vmatpush.msra.mxu0 0.0
    %1260 = vmatpush.msra.mxu0 0.0
    %1261 = vmatpush.msra.mxu0 0.0
    %1262 = vmatpush.msra.mxu0 0.0
    %1263 = vmatpush.msra.mxu0 0.0
    %1264 = vmatpush.msra.mxu0 0.0
    %1265 = vmatpush.msra.mxu0 0.0
    %1266 = vmatpush.msra.mxu0 0.0
    %1267 = vmatpush.msra.mxu0 0.0
    %1268 = vmatpush.msra.mxu0 %v1239
    %1269 = vmatpush.msra.mxu0 %v1238
    %1270 = vmatpush.msra.mxu0 %v1237
    %1271 = vmatpush.msra.mxu0 %v1236
    %1272 = vmatmul.f32.gmra.mxu0 %v1245
    %v1273 = vpop.f32.mrf.mxu0
    %v1274 = vadd.f32 %v1242, %v1273
    %1275 = vmatmul.f32.gmra.mxu0 %v1248
    %v1276 = vpop.f32.mrf.mxu0
    %v1277 = vadd.f32 %v1242, %v1276
    %1278 = vmatmul.f32.gmra.mxu0 %v1251
    %v1279 = vpop.f32.mrf.mxu0
    %v1280 = vadd.f32 %v1242, %v1279
    %1281 = vmatmul.f32.gmra.mxu0 %v1254
    %v1282 = vpop.f32.mrf.mxu0
    %v1283 = vadd.f32 %v1242, %v1282
    %1284 = vdwg.mxu0
    %v1285 = vmul.f32 %v447, 0.62831855
    %v1286 = vmul.f32 %v448, 0.62831855
    %v1287 = vmul.f32 %v449, 0.62831855
    %v1288 = vmul.f32 %v450, 0.62831855
    %v1289 = vand.u32 2147483647, %v1285
    %vm1290 = vcmp.le.f32.partialorder %v1289, 0.7853982
    %vm1291 = vcmp.lt.s32.totalorder %v1285, 0
    %v1292 = vand.u32 %v1285, 2139095040
    %v1293 = vshrl.u32 %v1292, 23
    %v1294 = vsub.s32 %v1293, 127
    %v1295 = vand.u32 2147483647, %v1285
    %v1296 = vand.u32 %v1295, 8388607
    %v1297 = vor.u32 %v1296, 8388608
    %v1298 = vsub.s32 0, %v1297
    %v1299 = vadd.s32 %v1294, 1
    %vm1300 = vcmp.gt.s32.totalorder %v1299, 0
    %v1301 = vsel %vm1300, %v1299, 0
    %v1302 = vshrl.u32 %v1301, 5
    %v1303 = vand.u32 %v1301, 31
    %v1304 = vsub.s32 32, %v1303
    %v1305 = vshrl.u32 683565275, %v1304
    %v1306 = vshll.u32 683565275, %v1303
    %v1307 = vshrl.u32 2475754826, %v1304
    %v1308 = vor.u32 %v1306, %v1307
    %v1309 = vshll.u32 2475754826, %v1303
    %v1310 = vshrl.u32 2131351028, %v1304
    %v1311 = vor.u32 %v1309, %v1310
    %v1312 = vshll.u32 2131351028, %v1303
    %v1313 = vshrl.u32 2102212464, %v1304
    %v1314 = vor.u32 %v1312, %v1313
    %v1315 = vshll.u32 2102212464, %v1303
    %v1316 = vshrl.u32 920167782, %v1304
    %v1317 = vor.u32 %v1315, %v1316
    %v1318 = vshll.u32 920167782, %v1303
    %v1319 = vshrl.u32 1326507024, %v1304
    %v1320 = vor.u32 %v1318, %v1319
    %vm1321 = vcmp.lt.s32.totalorder %v1302, 1
    %vm1322 = vcmp.lt.s32.totalorder %v1302, 2
    %vm1323 = vcmp.lt.s32.totalorder %v1302, 3
    %vm1324 = vcmp.lt.s32.totalorder %v1302, 4
    %v1325 = vsel %vm1321, %v1305, %v1308
    %v1326 = vsel %vm1324, %v1314, 2102212464
    %v1327 = vsel %vm1323, %v1311, %v1326
    %v1328 = vsel %vm1322, %v1325, %v1327
    %v1329 = vsel %vm1321, %v1308, %v1311
    %v1330 = vsel %vm1324, %v1317, 920167782
    %v1331 = vsel %vm1323, %v1314, %v1330
    %v1332 = vsel %vm1322, %v1329, %v1331
    %v1333 = vsel %vm1321, %v1311, %v1314
    %v1334 = vsel %vm1324, %v1320, 1326507024
    %v1335 = vsel %vm1323, %v1317, %v1334
    %v1336 = vsel %vm1322, %v1333, %v1335
    %v1337 = vshll.u32 %v1297, 8
    %v1338 = vand.u32 %v1337, 65535
    %v1339 = vshrl.u32 %v1337, 16
    %v1340 = vand.u32 %v1336, 65535
    %v1341 = vshrl.u32 %v1336, 16
    %v1342 = vmul.u32 %v1338, %v1340
    %v1343 = vmul.u32 %v1338, %v1341
    %v1344 = vmul.u32 %v1339, %v1340
    %v1345 = vmul.u32 %v1339, %v1341
    %v1346 = vshll.u32 %v1343, 16
    %v1347 = vshrl.u32 %v1343, 16
    %v1348 = vshll.u32 %v1344, 16
    %v1349 = vshrl.u32 %v1344, 16
    %vm1350 = vc.u32 %v1342, %v1346
    %v1351 = vsel %vm1350, 1, 0
    %v1352 = vadd.s32 %v1342, %v1346
    %v1353 = vadd.s32 %v1345, %v1351
    %vm1354 = vc.u32 %v1352, %v1348
    %v1355 = vsel %vm1354, 1, 0
    %v1356 = vadd.s32 %v1352, %v1348
    %v1357 = vadd.s32 %v1353, %v1355
    %v1358 = vadd.s32 %v1357, %v1347
    %v1359 = vadd.s32 %v1358, %v1349
    %v1360 = vand.u32 %v1337, 65535
    %v1361 = vshrl.u32 %v1337, 16
    %v1362 = vand.u32 %v1332, 65535
    %v1363 = vshrl.u32 %v1332, 16
    %v1364 = vmul.u32 %v1360, %v1362
    %v1365 = vmul.u32 %v1360, %v1363
    %v1366 = vmul.u32 %v1361, %v1362
    %v1367 = vmul.u32 %v1361, %v1363
    %v1368 = vshll.u32 %v1365, 16
    %v1369 = vshrl.u32 %v1365, 16
    %v1370 = vshll.u32 %v1366, 16
    %v1371 = vshrl.u32 %v1366, 16
    %vm1372 = vc.u32 %v1364, %v1368
    %v1373 = vsel %vm1372, 1, 0
    %v1374 = vadd.s32 %v1364, %v1368
    %v1375 = vadd.s32 %v1367, %v1373
    %vm1376 = vc.u32 %v1374, %v1370
    %v1377 = vsel %vm1376, 1, 0
    %v1378 = vadd.s32 %v1374, %v1370
    %v1379 = vadd.s32 %v1375, %v1377
    %v1380 = vadd.s32 %v1379, %v1369
    %v1381 = vadd.s32 %v1380, %v1371
    %v1382 = vmul.u32 %v1337, %v1328
    %v1383 = vadd.s32 %v1359, %v1378
    %vm1384 = vc.u32 %v1359, %v1378
    %v1385 = vadd.s32 %v1381, 1
    %v1386 = vsel %vm1384, %v1385, %v1381
    %v1387 = vadd.s32 %v1382, %v1386
    %v1388 = vadd.s32 %v1387, 536870912
    %v1389 = vshrl.u32 %v1388, 30
    %v1390 = vshll.u32 %v1389, 30
    %v1391 = vsub.s32 %v1387, %v1390
    %vm1392 = vcmp.lt.s32.totalorder %v1391, 0
    %v1393 = vsub.s32 0, %v1391
    %v1394 = vsel %vm1392, %v1393, %v1391
    %v1395 = vclz %v1394
    %v1396 = vsub.s32 %v1395, 2
    %vm1397 = vcmp.gt.s32.totalorder 0, %v1396
    %v1398 = vsel %vm1397, 0, %v1396
    %v1399 = vsub.s32 32, %v1398
    %v1400 = vshll.u32 %v1391, %v1398
    %v1401 = vshrl.u32 %v1383, %v1399
    %v1402 = vor.u32 %v1400, %v1401
    %v1403 = vsub.s32 4294967266, %v1398
    %v1404 = vadd.s32 %v1403, 127
    %v1405 = vshll.u32 %v1404, 23
    %v1406 = vor.u32 4788187, %v1405
    %v1407 = vand.u32 2147483647, %v1406
    %v1409 = vcvt.s32.f32 %v1402
    %v1410 = vmul.f32 %v1409, %v1407
    %v1411 = vxor.u32 %v1410, 2147483648
    %v1412 = vsel %vm1291, %v1411, %v1410
    %v1413 = vsub.s32 4, %v1389
    %v1414 = vsel %vm1291, %v1413, %v1389
    %v1415 = vsel %vm1290, %v1285, %v1412
    %v1416 = vsel %vm1290, 0, %v1414
    %v1417 = vmul.f32 %v1415, %v1415
    %v1418 = vmul.f32 %v1417, -0.001358992
    %v1419 = vadd.f32 %v1418, 0.041655596
    %v1420 = vmul.f32 %v1417, %v1419
    %v1421 = vadd.f32 %v1420, -0.4999988
    %v1422 = vmul.f32 %v1417, %v1421
    %v1423 = vadd.f32 1.0, %v1422
    %v1424 = vmul.f32 %v1415, %v1415
    %v1425 = vmul.f32 %v1424, -0.00019511016
    %v1426 = vadd.f32 %v1425, 0.008332121
    %v1427 = vmul.f32 %v1424, %v1426
    %v1428 = vadd.f32 %v1427, -0.16666654
    %v1429 = vmul.f32 %v1424, %v1428
    %v1430 = vadd.f32 %v1429, 1.0
    %v1431 = vmul.f32 %v1430, %v1415
    %vm1432 = vweird.f32 %v1285
    %v1433 = vand.u32 %v1416, 3
    %vm1434 = vcmp.lt.s32.totalorder %v1433, 2
    %vm1435 = vcmp.eq.s32.totalorder %v1433, 0
    %v1436 = vxor.u32 %v1431, 2147483648
    %v1437 = vsel %vm1435, %v1423, %v1436
    %vm1438 = vcmp.eq.s32.totalorder %v1433, 2
    %v1439 = vxor.u32 %v1423, 2147483648
    %v1440 = vsel %vm1438, %v1439, %v1431
    %v1441 = vsel %vm1434, %v1437, %v1440
    %v1442 = vsel %vm1432, nan, %v1441
    %v1443 = vand.u32 2147483647, %v1286
    %vm1444 = vcmp.le.f32.partialorder %v1443, 0.7853982
    %vm1445 = vcmp.lt.s32.totalorder %v1286, 0
    %v1446 = vand.u32 %v1286, 2139095040
    %v1447 = vshrl.u32 %v1446, 23
    %v1448 = vsub.s32 %v1447, 127
    %v1449 = vand.u32 2147483647, %v1286
    %v1450 = vand.u32 %v1449, 8388607
    %v1451 = vor.u32 %v1450, 8388608
    %v1452 = vsub.s32 0, %v1451
    %v1453 = vadd.s32 %v1448, 1
    %vm1454 = vcmp.gt.s32.totalorder %v1453, 0
    %v1455 = vsel %vm1454, %v1453, 0
    %v1456 = vshrl.u32 %v1455, 5
    %v1457 = vand.u32 %v1455, 31
    %v1458 = vsub.s32 32, %v1457
    %v1459 = vshrl.u32 683565275, %v1458
    %v1460 = vshll.u32 683565275, %v1457
    %v1461 = vshrl.u32 2475754826, %v1458
    %v1462 = vor.u32 %v1460, %v1461
    %v1463 = vshll.u32 2475754826, %v1457
    %v1464 = vshrl.u32 2131351028, %v1458
    %v1465 = vor.u32 %v1463, %v1464
    %v1466 = vshll.u32 2131351028, %v1457
    %v1467 = vshrl.u32 2102212464, %v1458
    %v1468 = vor.u32 %v1466, %v1467
    %v1469 = vshll.u32 2102212464, %v1457
    %v1470 = vshrl.u32 920167782, %v1458
    %v1471 = vor.u32 %v1469, %v1470
    %v1472 = vshll.u32 920167782, %v1457
    %v1473 = vshrl.u32 1326507024, %v1458
    %v1474 = vor.u32 %v1472, %v1473
    %vm1475 = vcmp.lt.s32.totalorder %v1456, 1
    %vm1476 = vcmp.lt.s32.totalorder %v1456, 2
    %vm1477 = vcmp.lt.s32.totalorder %v1456, 3
    %vm1478 = vcmp.lt.s32.totalorder %v1456, 4
    %v1479 = vsel %vm1475, %v1459, %v1462
    %v1480 = vsel %vm1478, %v1468, 2102212464
    %v1481 = vsel %vm1477, %v1465, %v1480
    %v1482 = vsel %vm1476, %v1479, %v1481
    %v1483 = vsel %vm1475, %v1462, %v1465
    %v1484 = vsel %vm1478, %v1471, 920167782
    %v1485 = vsel %vm1477, %v1468, %v1484
    %v1486 = vsel %vm1476, %v1483, %v1485
    %v1487 = vsel %vm1475, %v1465, %v1468
    %v1488 = vsel %vm1478, %v1474, 1326507024
    %v1489 = vsel %vm1477, %v1471, %v1488
    %v1490 = vsel %vm1476, %v1487, %v1489
    %v1491 = vshll.u32 %v1451, 8
    %v1492 = vand.u32 %v1491, 65535
    %v1493 = vshrl.u32 %v1491, 16
    %v1494 = vand.u32 %v1490, 65535
    %v1495 = vshrl.u32 %v1490, 16
    %v1496 = vmul.u32 %v1492, %v1494
    %v1497 = vmul.u32 %v1492, %v1495
    %v1498 = vmul.u32 %v1493, %v1494
    %v1499 = vmul.u32 %v1493, %v1495
    %v1500 = vshll.u32 %v1497, 16
    %v1501 = vshrl.u32 %v1497, 16
    %v1502 = vshll.u32 %v1498, 16
    %v1503 = vshrl.u32 %v1498, 16
    %vm1504 = vc.u32 %v1496, %v1500
    %v1505 = vsel %vm1504, 1, 0
    %v1506 = vadd.s32 %v1496, %v1500
    %v1507 = vadd.s32 %v1499, %v1505
    %vm1508 = vc.u32 %v1506, %v1502
    %v1509 = vsel %vm1508, 1, 0
    %v1510 = vadd.s32 %v1506, %v1502
    %v1511 = vadd.s32 %v1507, %v1509
    %v1512 = vadd.s32 %v1511, %v1501
    %v1513 = vadd.s32 %v1512, %v1503
    %v1514 = vand.u32 %v1491, 65535
    %v1515 = vshrl.u32 %v1491, 16
    %v1516 = vand.u32 %v1486, 65535
    %v1517 = vshrl.u32 %v1486, 16
    %v1518 = vmul.u32 %v1514, %v1516
    %v1519 = vmul.u32 %v1514, %v1517
    %v1520 = vmul.u32 %v1515, %v1516
    %v1521 = vmul.u32 %v1515, %v1517
    %v1522 = vshll.u32 %v1519, 16
    %v1523 = vshrl.u32 %v1519, 16
    %v1524 = vshll.u32 %v1520, 16
    %v1525 = vshrl.u32 %v1520, 16
    %vm1526 = vc.u32 %v1518, %v1522
    %v1527 = vsel %vm1526, 1, 0
    %v1528 = vadd.s32 %v1518, %v1522
    %v1529 = vadd.s32 %v1521, %v1527
    %vm1530 = vc.u32 %v1528, %v1524
    %v1531 = vsel %vm1530, 1, 0
    %v1532 = vadd.s32 %v1528, %v1524
    %v1533 = vadd.s32 %v1529, %v1531
    %v1534 = vadd.s32 %v1533, %v1523
    %v1535 = vadd.s32 %v1534, %v1525
    %v1536 = vmul.u32 %v1491, %v1482
    %v1537 = vadd.s32 %v1513, %v1532
    %vm1538 = vc.u32 %v1513, %v1532
    %v1539 = vadd.s32 %v1535, 1
    %v1540 = vsel %vm1538, %v1539, %v1535
    %v1541 = vadd.s32 %v1536, %v1540
    %v1542 = vadd.s32 %v1541, 536870912
    %v1543 = vshrl.u32 %v1542, 30
    %v1544 = vshll.u32 %v1543, 30
    %v1545 = vsub.s32 %v1541, %v1544
    %vm1546 = vcmp.lt.s32.totalorder %v1545, 0
    %v1547 = vsub.s32 0, %v1545
    %v1548 = vsel %vm1546, %v1547, %v1545
    %v1549 = vclz %v1548
    %v1550 = vsub.s32 %v1549, 2
    %vm1551 = vcmp.gt.s32.totalorder 0, %v1550
    %v1552 = vsel %vm1551, 0, %v1550
    %v1553 = vsub.s32 32, %v1552
    %v1554 = vshll.u32 %v1545, %v1552
    %v1555 = vshrl.u32 %v1537, %v1553
    %v1556 = vor.u32 %v1554, %v1555
    %v1557 = vsub.s32 4294967266, %v1552
    %v1558 = vadd.s32 %v1557, 127
    %v1559 = vshll.u32 %v1558, 23
    %v1560 = vor.u32 4788187, %v1559
    %v1561 = vand.u32 2147483647, %v1560
    %v1563 = vcvt.s32.f32 %v1556
    %v1564 = vmul.f32 %v1563, %v1561
    %v1565 = vxor.u32 %v1564, 2147483648
    %v1566 = vsel %vm1445, %v1565, %v1564
    %v1567 = vsub.s32 4, %v1543
    %v1568 = vsel %vm1445, %v1567, %v1543
    %v1569 = vsel %vm1444, %v1286, %v1566
    %v1570 = vsel %vm1444, 0, %v1568
    %v1571 = vmul.f32 %v1569, %v1569
    %v1572 = vmul.f32 %v1571, -0.001358992
    %v1573 = vadd.f32 %v1572, 0.041655596
    %v1574 = vmul.f32 %v1571, %v1573
    %v1575 = vadd.f32 %v1574, -0.4999988
    %v1576 = vmul.f32 %v1571, %v1575
    %v1577 = vadd.f32 1.0, %v1576
    %v1578 = vmul.f32 %v1569, %v1569
    %v1579 = vmul.f32 %v1578, -0.00019511016
    %v1580 = vadd.f32 %v1579, 0.008332121
    %v1581 = vmul.f32 %v1578, %v1580
    %v1582 = vadd.f32 %v1581, -0.16666654
    %v1583 = vmul.f32 %v1578, %v1582
    %v1584 = vadd.f32 %v1583, 1.0
    %v1585 = vmul.f32 %v1584, %v1569
    %vm1586 = vweird.f32 %v1286
    %v1587 = vand.u32 %v1570, 3
    %vm1588 = vcmp.lt.s32.totalorder %v1587, 2
    %vm1589 = vcmp.eq.s32.totalorder %v1587, 0
    %v1590 = vxor.u32 %v1585, 2147483648
    %v1591 = vsel %vm1589, %v1577, %v1590
    %vm1592 = vcmp.eq.s32.totalorder %v1587, 2
    %v1593 = vxor.u32 %v1577, 2147483648
    %v1594 = vsel %vm1592, %v1593, %v1585
    %v1595 = vsel %vm1588, %v1591, %v1594
    %v1596 = vsel %vm1586, nan, %v1595
    %v1597 = vand.u32 2147483647, %v1287
    %vm1598 = vcmp.le.f32.partialorder %v1597, 0.7853982
    %vm1599 = vcmp.lt.s32.totalorder %v1287, 0
    %v1600 = vand.u32 %v1287, 2139095040
    %v1601 = vshrl.u32 %v1600, 23
    %v1602 = vsub.s32 %v1601, 127
    %v1603 = vand.u32 2147483647, %v1287
    %v1604 = vand.u32 %v1603, 8388607
    %v1605 = vor.u32 %v1604, 8388608
    %v1606 = vsub.s32 0, %v1605
    %v1607 = vadd.s32 %v1602, 1
    %vm1608 = vcmp.gt.s32.totalorder %v1607, 0
    %v1609 = vsel %vm1608, %v1607, 0
    %v1610 = vshrl.u32 %v1609, 5
    %v1611 = vand.u32 %v1609, 31
    %v1612 = vsub.s32 32, %v1611
    %v1613 = vshrl.u32 683565275, %v1612
    %v1614 = vshll.u32 683565275, %v1611
    %v1615 = vshrl.u32 2475754826, %v1612
    %v1616 = vor.u32 %v1614, %v1615
    %v1617 = vshll.u32 2475754826, %v1611
    %v1618 = vshrl.u32 2131351028, %v1612
    %v1619 = vor.u32 %v1617, %v1618
    %v1620 = vshll.u32 2131351028, %v1611
    %v1621 = vshrl.u32 2102212464, %v1612
    %v1622 = vor.u32 %v1620, %v1621
    %v1623 = vshll.u32 2102212464, %v1611
    %v1624 = vshrl.u32 920167782, %v1612
    %v1625 = vor.u32 %v1623, %v1624
    %v1626 = vshll.u32 920167782, %v1611
    %v1627 = vshrl.u32 1326507024, %v1612
    %v1628 = vor.u32 %v1626, %v1627
    %vm1629 = vcmp.lt.s32.totalorder %v1610, 1
    %vm1630 = vcmp.lt.s32.totalorder %v1610, 2
    %vm1631 = vcmp.lt.s32.totalorder %v1610, 3
    %vm1632 = vcmp.lt.s32.totalorder %v1610, 4
    %v1633 = vsel %vm1629, %v1613, %v1616
    %v1634 = vsel %vm1632, %v1622, 2102212464
    %v1635 = vsel %vm1631, %v1619, %v1634
    %v1636 = vsel %vm1630, %v1633, %v1635
    %v1637 = vsel %vm1629, %v1616, %v1619
    %v1638 = vsel %vm1632, %v1625, 920167782
    %v1639 = vsel %vm1631, %v1622, %v1638
    %v1640 = vsel %vm1630, %v1637, %v1639
    %v1641 = vsel %vm1629, %v1619, %v1622
    %v1642 = vsel %vm1632, %v1628, 1326507024
    %v1643 = vsel %vm1631, %v1625, %v1642
    %v1644 = vsel %vm1630, %v1641, %v1643
    %v1645 = vshll.u32 %v1605, 8
    %v1646 = vand.u32 %v1645, 65535
    %v1647 = vshrl.u32 %v1645, 16
    %v1648 = vand.u32 %v1644, 65535
    %v1649 = vshrl.u32 %v1644, 16
    %v1650 = vmul.u32 %v1646, %v1648
    %v1651 = vmul.u32 %v1646, %v1649
    %v1652 = vmul.u32 %v1647, %v1648
    %v1653 = vmul.u32 %v1647, %v1649
    %v1654 = vshll.u32 %v1651, 16
    %v1655 = vshrl.u32 %v1651, 16
    %v1656 = vshll.u32 %v1652, 16
    %v1657 = vshrl.u32 %v1652, 16
    %vm1658 = vc.u32 %v1650, %v1654
    %v1659 = vsel %vm1658, 1, 0
    %v1660 = vadd.s32 %v1650, %v1654
    %v1661 = vadd.s32 %v1653, %v1659
    %vm1662 = vc.u32 %v1660, %v1656
    %v1663 = vsel %vm1662, 1, 0
    %v1664 = vadd.s32 %v1660, %v1656
    %v1665 = vadd.s32 %v1661, %v1663
    %v1666 = vadd.s32 %v1665, %v1655
    %v1667 = vadd.s32 %v1666, %v1657
    %v1668 = vand.u32 %v1645, 65535
    %v1669 = vshrl.u32 %v1645, 16
    %v1670 = vand.u32 %v1640, 65535
    %v1671 = vshrl.u32 %v1640, 16
    %v1672 = vmul.u32 %v1668, %v1670
    %v1673 = vmul.u32 %v1668, %v1671
    %v1674 = vmul.u32 %v1669, %v1670
    %v1675 = vmul.u32 %v1669, %v1671
    %v1676 = vshll.u32 %v1673, 16
    %v1677 = vshrl.u32 %v1673, 16
    %v1678 = vshll.u32 %v1674, 16
    %v1679 = vshrl.u32 %v1674, 16
    %vm1680 = vc.u32 %v1672, %v1676
    %v1681 = vsel %vm1680, 1, 0
    %v1682 = vadd.s32 %v1672, %v1676
    %v1683 = vadd.s32 %v1675, %v1681
    %vm1684 = vc.u32 %v1682, %v1678
    %v1685 = vsel %vm1684, 1, 0
    %v1686 = vadd.s32 %v1682, %v1678
    %v1687 = vadd.s32 %v1683, %v1685
    %v1688 = vadd.s32 %v1687, %v1677
    %v1689 = vadd.s32 %v1688, %v1679
    %v1690 = vmul.u32 %v1645, %v1636
    %v1691 = vadd.s32 %v1667, %v1686
    %vm1692 = vc.u32 %v1667, %v1686
    %v1693 = vadd.s32 %v1689, 1
    %v1694 = vsel %vm1692, %v1693, %v1689
    %v1695 = vadd.s32 %v1690, %v1694
    %v1696 = vadd.s32 %v1695, 536870912
    %v1697 = vshrl.u32 %v1696, 30
    %v1698 = vshll.u32 %v1697, 30
    %v1699 = vsub.s32 %v1695, %v1698
    %vm1700 = vcmp.lt.s32.totalorder %v1699, 0
    %v1701 = vsub.s32 0, %v1699
    %v1702 = vsel %vm1700, %v1701, %v1699
    %v1703 = vclz %v1702
    %v1704 = vsub.s32 %v1703, 2
    %vm1705 = vcmp.gt.s32.totalorder 0, %v1704
    %v1706 = vsel %vm1705, 0, %v1704
    %v1707 = vsub.s32 32, %v1706
    %v1708 = vshll.u32 %v1699, %v1706
    %v1709 = vshrl.u32 %v1691, %v1707
    %v1710 = vor.u32 %v1708, %v1709
    %v1711 = vsub.s32 4294967266, %v1706
    %v1712 = vadd.s32 %v1711, 127
    %v1713 = vshll.u32 %v1712, 23
    %v1714 = vor.u32 4788187, %v1713
    %v1715 = vand.u32 2147483647, %v1714
    %v1717 = vcvt.s32.f32 %v1710
    %v1718 = vmul.f32 %v1717, %v1715
    %v1719 = vxor.u32 %v1718, 2147483648
    %v1720 = vsel %vm1599, %v1719, %v1718
    %v1721 = vsub.s32 4, %v1697
    %v1722 = vsel %vm1599, %v1721, %v1697
    %v1723 = vsel %vm1598, %v1287, %v1720
    %v1724 = vsel %vm1598, 0, %v1722
    %v1725 = vmul.f32 %v1723, %v1723
    %v1726 = vmul.f32 %v1725, -0.001358992
    %v1727 = vadd.f32 %v1726, 0.041655596
    %v1728 = vmul.f32 %v1725, %v1727
    %v1729 = vadd.f32 %v1728, -0.4999988
    %v1730 = vmul.f32 %v1725, %v1729
    %v1731 = vadd.f32 1.0, %v1730
    %v1732 = vmul.f32 %v1723, %v1723
    %v1733 = vmul.f32 %v1732, -0.00019511016
    %v1734 = vadd.f32 %v1733, 0.008332121
    %v1735 = vmul.f32 %v1732, %v1734
    %v1736 = vadd.f32 %v1735, -0.16666654
    %v1737 = vmul.f32 %v1732, %v1736
    %v1738 = vadd.f32 %v1737, 1.0
    %v1739 = vmul.f32 %v1738, %v1723
    %vm1740 = vweird.f32 %v1287
    %v1741 = vand.u32 %v1724, 3
    %vm1742 = vcmp.lt.s32.totalorder %v1741, 2
    %vm1743 = vcmp.eq.s32.totalorder %v1741, 0
    %v1744 = vxor.u32 %v1739, 2147483648
    %v1745 = vsel %vm1743, %v1731, %v1744
    %vm1746 = vcmp.eq.s32.totalorder %v1741, 2
    %v1747 = vxor.u32 %v1731, 2147483648
    %v1748 = vsel %vm1746, %v1747, %v1739
    %v1749 = vsel %vm1742, %v1745, %v1748
    %v1750 = vsel %vm1740, nan, %v1749
    %v1751 = vand.u32 2147483647, %v1288
    %vm1752 = vcmp.le.f32.partialorder %v1751, 0.7853982
    %vm1753 = vcmp.lt.s32.totalorder %v1288, 0
    %v1754 = vand.u32 %v1288, 2139095040
    %v1755 = vshrl.u32 %v1754, 23
    %v1756 = vsub.s32 %v1755, 127
    %v1757 = vand.u32 2147483647, %v1288
    %v1758 = vand.u32 %v1757, 8388607
    %v1759 = vor.u32 %v1758, 8388608
    %v1760 = vsub.s32 0, %v1759
    %v1761 = vadd.s32 %v1756, 1
    %vm1762 = vcmp.gt.s32.totalorder %v1761, 0
    %v1763 = vsel %vm1762, %v1761, 0
    %v1764 = vshrl.u32 %v1763, 5
    %v1765 = vand.u32 %v1763, 31
    %v1766 = vsub.s32 32, %v1765
    %v1767 = vshrl.u32 683565275, %v1766
    %v1768 = vshll.u32 683565275, %v1765
    %v1769 = vshrl.u32 2475754826, %v1766
    %v1770 = vor.u32 %v1768, %v1769
    %v1771 = vshll.u32 2475754826, %v1765
    %v1772 = vshrl.u32 2131351028, %v1766
    %v1773 = vor.u32 %v1771, %v1772
    %v1774 = vshll.u32 2131351028, %v1765
    %v1775 = vshrl.u32 2102212464, %v1766
    %v1776 = vor.u32 %v1774, %v1775
    %v1777 = vshll.u32 2102212464, %v1765
    %v1778 = vshrl.u32 920167782, %v1766
    %v1779 = vor.u32 %v1777, %v1778
    %v1780 = vshll.u32 920167782, %v1765
    %v1781 = vshrl.u32 1326507024, %v1766
    %v1782 = vor.u32 %v1780, %v1781
    %vm1783 = vcmp.lt.s32.totalorder %v1764, 1
    %vm1784 = vcmp.lt.s32.totalorder %v1764, 2
    %vm1785 = vcmp.lt.s32.totalorder %v1764, 3
    %vm1786 = vcmp.lt.s32.totalorder %v1764, 4
    %v1787 = vsel %vm1783, %v1767, %v1770
    %v1788 = vsel %vm1786, %v1776, 2102212464
    %v1789 = vsel %vm1785, %v1773, %v1788
    %v1790 = vsel %vm1784, %v1787, %v1789
    %v1791 = vsel %vm1783, %v1770, %v1773
    %v1792 = vsel %vm1786, %v1779, 920167782
    %v1793 = vsel %vm1785, %v1776, %v1792
    %v1794 = vsel %vm1784, %v1791, %v1793
    %v1795 = vsel %vm1783, %v1773, %v1776
    %v1796 = vsel %vm1786, %v1782, 1326507024
    %v1797 = vsel %vm1785, %v1779, %v1796
    %v1798 = vsel %vm1784, %v1795, %v1797
    %v1799 = vshll.u32 %v1759, 8
    %v1800 = vand.u32 %v1799, 65535
    %v1801 = vshrl.u32 %v1799, 16
    %v1802 = vand.u32 %v1798, 65535
    %v1803 = vshrl.u32 %v1798, 16
    %v1804 = vmul.u32 %v1800, %v1802
    %v1805 = vmul.u32 %v1800, %v1803
    %v1806 = vmul.u32 %v1801, %v1802
    %v1807 = vmul.u32 %v1801, %v1803
    %v1808 = vshll.u32 %v1805, 16
    %v1809 = vshrl.u32 %v1805, 16
    %v1810 = vshll.u32 %v1806, 16
    %v1811 = vshrl.u32 %v1806, 16
    %vm1812 = vc.u32 %v1804, %v1808
    %v1813 = vsel %vm1812, 1, 0
    %v1814 = vadd.s32 %v1804, %v1808
    %v1815 = vadd.s32 %v1807, %v1813
    %vm1816 = vc.u32 %v1814, %v1810
    %v1817 = vsel %vm1816, 1, 0
    %v1818 = vadd.s32 %v1814, %v1810
    %v1819 = vadd.s32 %v1815, %v1817
    %v1820 = vadd.s32 %v1819, %v1809
    %v1821 = vadd.s32 %v1820, %v1811
    %v1822 = vand.u32 %v1799, 65535
    %v1823 = vshrl.u32 %v1799, 16
    %v1824 = vand.u32 %v1794, 65535
    %v1825 = vshrl.u32 %v1794, 16
    %v1826 = vmul.u32 %v1822, %v1824
    %v1827 = vmul.u32 %v1822, %v1825
    %v1828 = vmul.u32 %v1823, %v1824
    %v1829 = vmul.u32 %v1823, %v1825
    %v1830 = vshll.u32 %v1827, 16
    %v1831 = vshrl.u32 %v1827, 16
    %v1832 = vshll.u32 %v1828, 16
    %v1833 = vshrl.u32 %v1828, 16
    %vm1834 = vc.u32 %v1826, %v1830
    %v1835 = vsel %vm1834, 1, 0
    %v1836 = vadd.s32 %v1826, %v1830
    %v1837 = vadd.s32 %v1829, %v1835
    %vm1838 = vc.u32 %v1836, %v1832
    %v1839 = vsel %vm1838, 1, 0
    %v1840 = vadd.s32 %v1836, %v1832
    %v1841 = vadd.s32 %v1837, %v1839
    %v1842 = vadd.s32 %v1841, %v1831
    %v1843 = vadd.s32 %v1842, %v1833
    %v1844 = vmul.u32 %v1799, %v1790
    %v1845 = vadd.s32 %v1821, %v1840
    %vm1846 = vc.u32 %v1821, %v1840
    %v1847 = vadd.s32 %v1843, 1
    %v1848 = vsel %vm1846, %v1847, %v1843
    %v1849 = vadd.s32 %v1844, %v1848
    %v1850 = vadd.s32 %v1849, 536870912
    %v1851 = vshrl.u32 %v1850, 30
    %v1852 = vshll.u32 %v1851, 30
    %v1853 = vsub.s32 %v1849, %v1852
    %vm1854 = vcmp.lt.s32.totalorder %v1853, 0
    %v1855 = vsub.s32 0, %v1853
    %v1856 = vsel %vm1854, %v1855, %v1853
    %v1857 = vclz %v1856
    %v1858 = vsub.s32 %v1857, 2
    %vm1859 = vcmp.gt.s32.totalorder 0, %v1858
    %v1860 = vsel %vm1859, 0, %v1858
    %v1861 = vsub.s32 32, %v1860
    %v1862 = vshll.u32 %v1853, %v1860
    %v1863 = vshrl.u32 %v1845, %v1861
    %v1864 = vor.u32 %v1862, %v1863
    %v1865 = vsub.s32 4294967266, %v1860
    %v1866 = vadd.s32 %v1865, 127
    %v1867 = vshll.u32 %v1866, 23
    %v1868 = vor.u32 4788187, %v1867
    %v1869 = vand.u32 2147483647, %v1868
    %v1871 = vcvt.s32.f32 %v1864
    %v1872 = vmul.f32 %v1871, %v1869
    %v1873 = vxor.u32 %v1872, 2147483648
    %v1874 = vsel %vm1753, %v1873, %v1872
    %v1875 = vsub.s32 4, %v1851
    %v1876 = vsel %vm1753, %v1875, %v1851
    %v1877 = vsel %vm1752, %v1288, %v1874
    %v1878 = vsel %vm1752, 0, %v1876
    %v1879 = vmul.f32 %v1877, %v1877
    %v1880 = vmul.f32 %v1879, -0.001358992
    %v1881 = vadd.f32 %v1880, 0.041655596
    %v1882 = vmul.f32 %v1879, %v1881
    %v1883 = vadd.f32 %v1882, -0.4999988
    %v1884 = vmul.f32 %v1879, %v1883
    %v1885 = vadd.f32 1.0, %v1884
    %v1886 = vmul.f32 %v1877, %v1877
    %v1887 = vmul.f32 %v1886, -0.00019511016
    %v1888 = vadd.f32 %v1887, 0.008332121
    %v1889 = vmul.f32 %v1886, %v1888
    %v1890 = vadd.f32 %v1889, -0.16666654
    %v1891 = vmul.f32 %v1886, %v1890
    %v1892 = vadd.f32 %v1891, 1.0
    %v1893 = vmul.f32 %v1892, %v1877
    %vm1894 = vweird.f32 %v1288
    %v1895 = vand.u32 %v1878, 3
    %vm1896 = vcmp.lt.s32.totalorder %v1895, 2
    %vm1897 = vcmp.eq.s32.totalorder %v1895, 0
    %v1898 = vxor.u32 %v1893, 2147483648
    %v1899 = vsel %vm1897, %v1885, %v1898
    %vm1900 = vcmp.eq.s32.totalorder %v1895, 2
    %v1901 = vxor.u32 %v1885, 2147483648
    %v1902 = vsel %vm1900, %v1901, %v1893
    %v1903 = vsel %vm1896, %v1899, %v1902
    %v1904 = vsel %vm1894, nan, %v1903
    %v1905 = vmul.f32 %v1442, 0.5
    %v1906 = vmul.f32 %v1596, 0.5
    %v1907 = vmul.f32 %v1750, 0.5
    %v1908 = vmul.f32 %v1904, 0.5
    %v1909 = vadd.f32 %v1905, 0.5
    %v1910 = vadd.f32 %v1906, 0.5
    %v1911 = vadd.f32 %v1907, 0.5
    %v1912 = vadd.f32 %v1908, 0.5
    %v1913 = vld [vmem:[%s41] sm:$0xff]
    %v1914 = vld [vmem:[%s41 + $0x8] sm:$0xff]
    %v1915 = vld [vmem:[%s41 + $0x10] sm:$0xff]
    %v1916 = vld [vmem:[%s41 + $0x18] sm:$0xff]
    %1919 = vrot.lane.b32.xlu0 %v1214, 96
    %v1920 = vpop.permute.xlu0 %1919
    %1921 = vrot.lane.b32.xlu0 %v1215, 96
    %v1922 = vpop.permute.xlu0 %1921
    %v1923 = vsel %vm524, %v1920, 0
    %v1925 = vsel %vm524, %v1922, 0
    %1927 = vmatpush.msra.mxu0 0.0
    %1928 = vmatpush.msra.mxu0 0.0
    %1929 = vmatpush.msra.mxu0 0.0
    %1930 = vmatpush.msra.mxu0 0.0
    %1931 = vmatpush.msra.mxu0 0.0
    %1932 = vmatpush.msra.mxu0 0.0
    %1933 = vmatpush.msra.mxu0 0.0
    %1934 = vmatpush.msra.mxu0 0.0
    %1935 = vmatpush.msra.mxu0 0.0
    %1936 = vmatpush.msra.mxu0 0.0
    %1937 = vmatpush.msra.mxu0 0.0
    %1938 = vmatpush.msra.mxu0 0.0
    %1939 = vmatpush.msra.mxu0 %v1916
    %1940 = vmatpush.msra.mxu0 %v1915
    %1941 = vmatpush.msra.mxu0 %v1914
    %1942 = vmatpush.msra.mxu0 %v1913
    %1943 = vmatmul.f32.gmra.mxu0 %v1923
    %v1944 = vpop.f32.mrf.mxu0
    %v1945 = vadd.f32 0.0, %v1944
    %1946 = vmatmul.f32.gmra.mxu0 %v1925
    %v1947 = vpop.f32.mrf.mxu0
    %v1948 = vadd.f32 0.0, %v1947
    %1949 = vdwg.mxu0
    %1950 = vmatpush.msra.mxu0 0.0
    %1951 = vmatpush.msra.mxu0 0.0
    %1952 = vmatpush.msra.mxu0 0.0
    %1953 = vmatpush.msra.mxu0 0.0
    %1954 = vmatpush.msra.mxu0 0.0
    %1955 = vmatpush.msra.mxu0 0.0
    %1956 = vmatpush.msra.mxu0 0.0
    %1957 = vmatpush.msra.mxu0 0.0
    %1958 = vmatpush.msra.mxu0 0.0
    %1959 = vmatpush.msra.mxu0 0.0
    %1960 = vmatpush.msra.mxu0 0.0
    %1961 = vmatpush.msra.mxu0 0.0
    %1962 = vmatpush.msra.mxu0 0.0
    %1963 = vmatpush.msra.mxu0 0.0
    %1964 = vmatpush.msra.mxu0 %v1948
    %1965 = vmatpush.msra.mxu0 %v1945
    %1966 = vmatmul.f32.gmra.mxu0 %v653
    %v1967 = vpop.f32.mrf.mxu0
    %v1968 = vadd.f32 0.0, %v1967
    %1969 = vmatmul.f32.gmra.mxu0 %v656
    %v1970 = vpop.f32.mrf.mxu0
    %v1971 = vadd.f32 0.0, %v1970
    %1972 = vmatmul.f32.gmra.mxu0 %v659
    %v1973 = vpop.f32.mrf.mxu0
    %v1974 = vadd.f32 0.0, %v1973
    %1975 = vmatmul.f32.gmra.mxu0 %v662
    %v1976 = vpop.f32.mrf.mxu0
    %v1977 = vadd.f32 0.0, %v1976
    %1978 = vdwg.mxu0
    %1980 = vset.pattern.permute.xlu0 0
    %1981 = vperm.xlu0 %1980, %v1909
    %v1982 = vpop.permute.xlu0 %1981
    %1985 = vset.pattern.permute.xlu0 0
    %1986 = vperm.xlu0 %1985, %v1910
    %v1987 = vpop.permute.xlu0 %1986
    %1990 = vset.pattern.permute.xlu0 0
    %1991 = vperm.xlu0 %1990, %v1911
    %v1992 = vpop.permute.xlu0 %1991
    %1995 = vset.pattern.permute.xlu0 0
    %1996 = vperm.xlu0 %1995, %v1912
    %v1997 = vpop.permute.xlu0 %1996
    %v1999 = vmul.f32 %v1274, %v1982
    %v2000 = vmul.f32 %v1277, %v1987
    %v2001 = vmul.f32 %v1280, %v1992
    %v2002 = vmul.f32 %v1283, %v1997
    %v2003 = vmul.f32 %v1968, %v1999
    %v2004 = vmul.f32 %v1971, %v2000
    %v2005 = vmul.f32 %v1974, %v2001
    %v2006 = vmul.f32 %v1977, %v2002
    %2007 = vmatpush.msra.mxu0 0.0
    %2008 = vmatpush.msra.mxu0 0.0
    %2009 = vmatpush.msra.mxu0 0.0
    %2010 = vmatpush.msra.mxu0 0.0
    %2011 = vmatpush.msra.mxu0 0.0
    %2012 = vmatpush.msra.mxu0 0.0
    %2013 = vmatpush.msra.mxu0 0.0
    %2014 = vmatpush.msra.mxu0 0.0
    %2015 = vmatpush.msra.mxu0 0.0
    %2016 = vmatpush.msra.mxu0 0.0
    %2017 = vmatpush.msra.mxu0 0.0
    %2018 = vmatpush.msra.mxu0 0.0
    %2019 = vmatpush.msra.mxu0 %v2006
    %2020 = vmatpush.msra.mxu0 %v2005
    %2021 = vmatpush.msra.mxu0 %v2004
    %2022 = vmatpush.msra.mxu0 %v2003
    %2023 = vmatmul.f32.gmra.mxu0 %v919
    %v2024 = vpop.f32.mrf.mxu0
    %v2025 = vadd.f32 0.0, %v2024
    %2026 = vmatmul.f32.gmra.mxu0 %v922
    %v2027 = vpop.f32.mrf.mxu0
    %v2028 = vadd.f32 0.0, %v2027
    %2029 = vdwg.mxu0
    %v2030 = vmul.f32 %v2025, %v547
    %v2031 = vmul.f32 %v2028, %v562
    %v2032 = vld [vmem:[%s43] sm:$0xff]
    %v2033 = vld [vmem:[%s43 + $0x8] sm:$0xff]
    %v2034 = vld [vmem:[%s43 + $0x10] sm:$0xff]
    %v2035 = vld [vmem:[%s43 + $0x18] sm:$0xff]
    %v2036 = vld [vmem:[#allocation9] sm:$0x1]
    %v2038 = vperm.slane %v2036, 0
    %v2041 = vsel %vm524, %v2030, 0
    %v2044 = vsel %vm524, %v2031, 0
    %2046 = vmatpush.msra.mxu0 0.0
    %2047 = vmatpush.msra.mxu0 0.0
    %2048 = vmatpush.msra.mxu0 0.0
    %2049 = vmatpush.msra.mxu0 0.0
    %2050 = vmatpush.msra.mxu0 0.0
    %2051 = vmatpush.msra.mxu0 0.0
    %2052 = vmatpush.msra.mxu0 0.0
    %2053 = vmatpush.msra.mxu0 0.0
    %2054 = vmatpush.msra.mxu0 0.0
    %2055 = vmatpush.msra.mxu0 0.0
    %2056 = vmatpush.msra.mxu0 0.0
    %2057 = vmatpush.msra.mxu0 0.0
    %2058 = vmatpush.msra.mxu0 %v2035
    %2059 = vmatpush.msra.mxu0 %v2034
    %2060 = vmatpush.msra.mxu0 %v2033
    %2061 = vmatpush.msra.mxu0 %v2032
    %2062 = vmatmul.f32.gmra.mxu0 %v2041
    %v2063 = vpop.f32.mrf.mxu0
    %v2064 = vadd.f32 %v2038, %v2063
    %2065 = vmatmul.f32.gmra.mxu0 %v2044
    %v2066 = vpop.f32.mrf.mxu0
    %v2067 = vadd.f32 %v2038, %v2066
    %2068 = vdwg.mxu0
    %v2069 = vand.u32 2147483647, %v2064
    %v2070 = vand.u32 2147483647, %v2067
    %v2071 = vsub.f32 0.0, %v2069
    %v2072 = vsub.f32 0.0, %v2070
    %v2073 = vmul.f32 %v2071, 1.442695
    %v2074 = vpow.pop %v2073
    %v2075 = vmul.f32 %v2072, 1.442695
    %v2076 = vpow.pop %v2075
    %v2077 = vadd.f32 %v2074, 1.0
    %v2078 = vadd.f32 %v2076, 1.0
    %v2079 = vlog2.pop %v2077
    %v2080 = vmul.f32 %v2079, 0.6931472
    %v2081 = vlog2.pop %v2078
    %v2082 = vmul.f32 %v2081, 0.6931472
    %v2083 = vmax.f32 %v2064, 0.0
    %v2084 = vmax.f32 %v2067, 0.0
    %v2085 = vadd.f32 %v2080, %v2083
    %v2086 = vadd.f32 %v2082, %v2084
    %v2087 = vsub.f32 %v2085, 0.6931472
    %v2088 = vsub.f32 %v2086, 0.6931472
    %v2089 = vld [vmem:[#allocation10] sm:$0xff]
    %v2090 = vld [vmem:[#allocation10 + $0x8] sm:$0xff]
    %v2091 = vld [vmem:[#allocation10 + $0x10] sm:$0xff]
    %v2092 = vld [vmem:[#allocation10 + $0x18] sm:$0xff]
    %v2093 = vld [vmem:[#allocation12] sm:$0x1]
    %v2095 = vperm.slane %v2093, 0
    %v2098 = vsel %vm524, %v2087, 0
    %v2101 = vsel %vm524, %v2088, 0
    %2103 = vmatpush.msra.mxu0 0.0
    %2104 = vmatpush.msra.mxu0 0.0
    %2105 = vmatpush.msra.mxu0 0.0
    %2106 = vmatpush.msra.mxu0 0.0
    %2107 = vmatpush.msra.mxu0 0.0
    %2108 = vmatpush.msra.mxu0 0.0
    %2109 = vmatpush.msra.mxu0 0.0
    %2110 = vmatpush.msra.mxu0 0.0
    %2111 = vmatpush.msra.mxu0 0.0
    %2112 = vmatpush.msra.mxu0 0.0
    %2113 = vmatpush.msra.mxu0 0.0
    %2114 = vmatpush.msra.mxu0 0.0
    %2115 = vmatpush.msra.mxu0 %v2092
    %2116 = vmatpush.msra.mxu0 %v2091
    %2117 = vmatpush.msra.mxu0 %v2090
    %2118 = vmatpush.msra.mxu0 %v2089
    %2119 = vmatmul.f32.gmra.mxu0 %v2098
    %v2120 = vpop.f32.mrf.mxu0
    %v2121 = vadd.f32 %v2095, %v2120
    %2122 = vmatmul.f32.gmra.mxu0 %v2101
    %v2123 = vpop.f32.mrf.mxu0
    %v2124 = vadd.f32 %v2095, %v2123
    %2125 = vdwg.mxu0
    %vm2126 = vcmp.ge.f32.partialorder %v2121, 0.0
    %vm2127 = vcmp.ge.f32.partialorder %v2124, 0.0
    %v2128 = vmul.f32 %v2121, 0.01
    %v2129 = vmul.f32 %v2124, 0.01
    %v2130 = vsel %vm2126, %v2121, %v2128
    %v2131 = vsel %vm2127, %v2124, %v2129
    %v2133 = vsel %vm524, %v2130, 0
    %v2136 = vsel %vm524, %v2131, 0
    %2138 = vmatpush.msra.mxu0 0.0
    %2139 = vmatpush.msra.mxu0 0.0
    %2140 = vmatpush.msra.mxu0 0.0
    %2141 = vmatpush.msra.mxu0 0.0
    %2142 = vmatpush.msra.mxu0 0.0
    %2143 = vmatpush.msra.mxu0 0.0
    %2144 = vmatpush.msra.mxu0 0.0
    %2145 = vmatpush.msra.mxu0 0.0
    %2146 = vmatpush.msra.mxu0 0.0
    %2147 = vmatpush.msra.mxu0 0.0
    %2148 = vmatpush.msra.mxu0 0.0
    %2149 = vmatpush.msra.mxu0 0.0
    %2150 = vmatpush.msra.mxu0 %v1061
    %2151 = vmatpush.msra.mxu0 %v1060
    %2152 = vmatpush.msra.mxu0 %v1059
    %2153 = vmatpush.msra.mxu0 %v1058
    %2154 = vmatmul.f32.gmra.mxu0 %v2133
    %v2155 = vpop.f32.mrf.mxu0
    %v2156 = vadd.f32 %v1064, %v2155
    %2157 = vmatmul.f32.gmra.mxu0 %v2136
    %v2158 = vpop.f32.mrf.mxu0
    %v2159 = vadd.f32 %v1064, %v2158
    %2160 = vdwg.mxu0
    %2161 = vmatpush.msra.mxu0 0.0
    %2162 = vmatpush.msra.mxu0 0.0
    %2163 = vmatpush.msra.mxu0 0.0
    %2164 = vmatpush.msra.mxu0 0.0
    %2165 = vmatpush.msra.mxu0 0.0
    %2166 = vmatpush.msra.mxu0 0.0
    %2167 = vmatpush.msra.mxu0 0.0
    %2168 = vmatpush.msra.mxu0 0.0
    %2169 = vmatpush.msra.mxu0 0.0
    %2170 = vmatpush.msra.mxu0 0.0
    %2171 = vmatpush.msra.mxu0 0.0
    %2172 = vmatpush.msra.mxu0 0.0
    %2173 = vmatpush.msra.mxu0 %v1098
    %2174 = vmatpush.msra.mxu0 %v1097
    %2175 = vmatpush.msra.mxu0 %v1096
    %2176 = vmatpush.msra.mxu0 %v1095
    %2177 = vmatmul.f32.gmra.mxu0 %v1923
    %v2178 = vpop.f32.mrf.mxu0
    %v2179 = vadd.f32 %v1101, %v2178
    %2180 = vmatmul.f32.gmra.mxu0 %v1925
    %v2181 = vpop.f32.mrf.mxu0
    %v2182 = vadd.f32 %v1101, %v2181
    %2183 = vdwg.mxu0
    %v2184 = vadd.f32 %v2156, %v2179
    %v2185 = vadd.f32 %v2159, %v2182
    %v2186 = vsub.f32 0.0, %v2184
    %v2187 = vsub.f32 0.0, %v2185
    %v2188 = vmul.f32 %v2186, 1.442695
    %v2189 = vpow.pop %v2188
    %v2190 = vmul.f32 %v2187, 1.442695
    %v2191 = vpow.pop %v2190
    %v2192 = vadd.f32 %v2189, 1.0
    %v2193 = vadd.f32 %v2191, 1.0
    %v2194 = vrcp.pop %v2192
    %v2195 = vmul.f32 %v2192, %v2194
    %v2196 = vsub.f32 1.0, %v2195
    %v2197 = vmul.f32 %v2194, %v2196
    %v2198 = vadd.f32 %v2194, %v2197
    %vm2199 = vweird.f32 %v2192
    %vm2200 = vweird.f32 %v2194
    %vm2201 = vmor %vm2199, %vm2200
    %v2202 = vsel %vm2201, %v2194, %v2198
    %v2203 = vand.u32 2147483647, %v2192
    %vm2204 = vcmp.eq.f32.partialorder %v2203, 8.507059e+37
    %v2205 = vand.u32 %v2192, 2147483648
    %v2206 = vor.u32 1.1754944e-38, %v2205
    %v2207 = vsel %vm2204, %v2206, %v2202
    %v2208 = vmul.f32 1.0, %v2207
    %v2209 = vrcp.pop %v2193
    %v2210 = vmul.f32 %v2193, %v2209
    %v2211 = vsub.f32 1.0, %v2210
    %v2212 = vmul.f32 %v2209, %v2211
    %v2213 = vadd.f32 %v2209, %v2212
    %vm2214 = vweird.f32 %v2193
    %vm2215 = vweird.f32 %v2209
    %vm2216 = vmor %vm2214, %vm2215
    %v2217 = vsel %vm2216, %v2209, %v2213
    %v2218 = vand.u32 2147483647, %v2193
    %vm2219 = vcmp.eq.f32.partialorder %v2218, 8.507059e+37
    %v2220 = vand.u32 %v2193, 2147483648
    %v2221 = vor.u32 1.1754944e-38, %v2220
    %v2222 = vsel %vm2219, %v2221, %v2217
    %v2223 = vmul.f32 1.0, %v2222
    %2226 = vrot.lane.b32.xlu0 %v2179, 64
    %v2227 = vpop.permute.xlu0 %2226
    %2228 = vrot.lane.b32.xlu0 %v2182, 64
    %v2229 = vpop.permute.xlu0 %2228
    %v2232 = vmul.f32 %v2208, %v2227
    %v2233 = vmul.f32 %v2223, %v2229
    %2236 = vrot.lane.b32.xlu0 %v2232, 64
    %v2237 = vpop.permute.xlu0 %2236
    %2238 = vrot.lane.b32.xlu0 %v2233, 64
    %v2239 = vpop.permute.xlu0 %2238
    %v2242 = vadd.f32 %v2156, %v2237
    %v2243 = vadd.f32 %v2159, %v2239
    %v2244 = vtanh.pop %v2242
    %v2245 = vtanh.pop %v2243
    %v2246 = vsub.f32 1.0, %v2208
    %v2247 = vsub.f32 1.0, %v2223
    %2250 = vrot.lane.b32.xlu0 %v2244, 96
    %v2251 = vpop.permute.xlu0 %2250
    %2252 = vrot.lane.b32.xlu0 %v2245, 96
    %v2253 = vpop.permute.xlu0 %2252
    %v2256 = vmul.f32 %v2246, %v2251
    %v2257 = vmul.f32 %v2247, %v2253
    %v2258 = vmul.f32 %v2208, %v1214
    %v2259 = vmul.f32 %v2223, %v1215
    %v2260 = vadd.f32 %v2256, %v2258
    %v2261 = vadd.f32 %v2257, %v2259
    %v2262 = vld [vmem:[#allocation13] sm:$0x1]
    %v2264 = vperm.slane %v2262, 0
    %v2266 = vmul.f32 %v866, %v2264
    %v2267 = vmul.f32 %v871, %v2264
    %v2268 = vmul.f32 %v876, %v2264
    %v2269 = vmul.f32 %v881, %v2264
    %v2270 = vld [vmem:[#allocation15] sm:$0x1]
    %v2272 = vperm.slane %v2270, 0
    %v2274 = vadd.f32 %v2266, %v2272
    %v2275 = vadd.f32 %v2267, %v2272
    %v2276 = vadd.f32 %v2268, %v2272
    %v2277 = vadd.f32 %v2269, %v2272
    %v2278 = vmax.f32 %v2274, 0.0
    %v2279 = vmax.f32 %v2275, 0.0
    %v2280 = vmax.f32 %v2276, 0.0
    %v2281 = vmax.f32 %v2277, 0.0
    %v2282 = vld [vmem:[#allocation16] sm:$0xff]
    %v2283 = vld [vmem:[#allocation16 + $0x8] sm:$0xff]
    %v2284 = vld [vmem:[#allocation16 + $0x10] sm:$0xff]
    %v2285 = vld [vmem:[#allocation16 + $0x18] sm:$0xff]
    %v2286 = vld [vmem:[#allocation18] sm:$0x1]
    %v2288 = vperm.slane %v2286, 0
    %v2291 = vsel %vm524, %v2278, 0
    %v2294 = vsel %vm524, %v2279, 0
    %v2297 = vsel %vm524, %v2280, 0
    %v2300 = vsel %vm524, %v2281, 0
    %2302 = vmatpush.msra.mxu0 0.0
    %2303 = vmatpush.msra.mxu0 0.0
    %2304 = vmatpush.msra.mxu0 0.0
    %2305 = vmatpush.msra.mxu0 0.0
    %2306 = vmatpush.msra.mxu0 0.0
    %2307 = vmatpush.msra.mxu0 0.0
    %2308 = vmatpush.msra.mxu0 0.0
    %2309 = vmatpush.msra.mxu0 0.0
    %2310 = vmatpush.msra.mxu0 0.0
    %2311 = vmatpush.msra.mxu0 0.0
    %2312 = vmatpush.msra.mxu0 0.0
    %2313 = vmatpush.msra.mxu0 0.0
    %2314 = vmatpush.msra.mxu0 %v2285
    %2315 = vmatpush.msra.mxu0 %v2284
    %2316 = vmatpush.msra.mxu0 %v2283
    %2317 = vmatpush.msra.mxu0 %v2282
    %2318 = vmatmul.f32.gmra.mxu0 %v2291
    %v2319 = vpop.f32.mrf.mxu0
    %v2320 = vadd.f32 %v2288, %v2319
    %2321 = vmatmul.f32.gmra.mxu0 %v2294
    %v2322 = vpop.f32.mrf.mxu0
    %v2323 = vadd.f32 %v2288, %v2322
    %2324 = vmatmul.f32.gmra.mxu0 %v2297
    %v2325 = vpop.f32.mrf.mxu0
    %v2326 = vadd.f32 %v2288, %v2325
    %2327 = vmatmul.f32.gmra.mxu0 %v2300
    %v2328 = vpop.f32.mrf.mxu0
    %v2329 = vadd.f32 %v2288, %v2328
    %2330 = vdwg.mxu0
    %v2331 = vld [vmem:[#allocation19] sm:$0xff]
    %v2332 = vld [vmem:[#allocation19 + $0x8] sm:$0xff]
    %v2333 = vld [vmem:[#allocation19 + $0x10] sm:$0xff]
    %v2334 = vld [vmem:[#allocation19 + $0x18] sm:$0xff]
    %2337 = vrot.lane.b32.xlu0 %v2260, 96
    %v2338 = vpop.permute.xlu0 %2337
    %2339 = vrot.lane.b32.xlu0 %v2261, 96
    %v2340 = vpop.permute.xlu0 %2339
    %v2341 = vsel %vm524, %v2338, 0
    %v2343 = vsel %vm524, %v2340, 0
    %2345 = vmatpush.msra.mxu0 0.0
    %2346 = vmatpush.msra.mxu0 0.0
    %2347 = vmatpush.msra.mxu0 0.0
    %2348 = vmatpush.msra.mxu0 0.0
    %2349 = vmatpush.msra.mxu0 0.0
    %2350 = vmatpush.msra.mxu0 0.0
    %2351 = vmatpush.msra.mxu0 0.0
    %2352 = vmatpush.msra.mxu0 0.0
    %2353 = vmatpush.msra.mxu0 0.0
    %2354 = vmatpush.msra.mxu0 0.0
    %2355 = vmatpush.msra.mxu0 0.0
    %2356 = vmatpush.msra.mxu0 0.0
    %2357 = vmatpush.msra.mxu0 %v2334
    %2358 = vmatpush.msra.mxu0 %v2333
    %2359 = vmatpush.msra.mxu0 %v2332
    %2360 = vmatpush.msra.mxu0 %v2331
    %2361 = vmatmul.f32.gmra.mxu0 %v2341
    %v2362 = vpop.f32.mrf.mxu0
    %v2363 = vadd.f32 0.0, %v2362
    %2364 = vmatmul.f32.gmra.mxu0 %v2343
    %v2365 = vpop.f32.mrf.mxu0
    %v2366 = vadd.f32 0.0, %v2365
    %2367 = vdwg.mxu0
    %2368 = vmatpush.msra.mxu0 0.0
    %2369 = vmatpush.msra.mxu0 0.0
    %2370 = vmatpush.msra.mxu0 0.0
    %2371 = vmatpush.msra.mxu0 0.0
    %2372 = vmatpush.msra.mxu0 0.0
    %2373 = vmatpush.msra.mxu0 0.0
    %2374 = vmatpush.msra.mxu0 0.0
    %2375 = vmatpush.msra.mxu0 0.0
    %2376 = vmatpush.msra.mxu0 0.0
    %2377 = vmatpush.msra.mxu0 0.0
    %2378 = vmatpush.msra.mxu0 0.0
    %2379 = vmatpush.msra.mxu0 0.0
    %2380 = vmatpush.msra.mxu0 0.0
    %2381 = vmatpush.msra.mxu0 0.0
    %2382 = vmatpush.msra.mxu0 %v2366
    %2383 = vmatpush.msra.mxu0 %v2363
    %2384 = vmatmul.f32.gmra.mxu0 %v653
    %v2385 = vpop.f32.mrf.mxu0
    %v2386 = vadd.f32 0.0, %v2385
    %2387 = vmatmul.f32.gmra.mxu0 %v656
    %v2388 = vpop.f32.mrf.mxu0
    %v2389 = vadd.f32 0.0, %v2388
    %2390 = vmatmul.f32.gmra.mxu0 %v659
    %v2391 = vpop.f32.mrf.mxu0
    %v2392 = vadd.f32 0.0, %v2391
    %2393 = vmatmul.f32.gmra.mxu0 %v662
    %v2394 = vpop.f32.mrf.mxu0
    %v2395 = vadd.f32 0.0, %v2394
    %2396 = vdwg.mxu0
    %v2397 = vmul.f32 %v2320, %v1982
    %v2398 = vmul.f32 %v2323, %v1987
    %v2399 = vmul.f32 %v2326, %v1992
    %v2400 = vmul.f32 %v2329, %v1997
    %v2401 = vmul.f32 %v2386, %v2397
    %v2402 = vmul.f32 %v2389, %v2398
    %v2403 = vmul.f32 %v2392, %v2399
    %v2404 = vmul.f32 %v2395, %v2400
    %2405 = vmatpush.msra.mxu0 0.0
    %2406 = vmatpush.msra.mxu0 0.0
    %2407 = vmatpush.msra.mxu0 0.0
    %2408 = vmatpush.msra.mxu0 0.0
    %2409 = vmatpush.msra.mxu0 0.0
    %2410 = vmatpush.msra.mxu0 0.0
    %2411 = vmatpush.msra.mxu0 0.0
    %2412 = vmatpush.msra.mxu0 0.0
    %2413 = vmatpush.msra.mxu0 0.0
    %2414 = vmatpush.msra.mxu0 0.0
    %2415 = vmatpush.msra.mxu0 0.0
    %2416 = vmatpush.msra.mxu0 0.0
    %2417 = vmatpush.msra.mxu0 %v2404
    %2418 = vmatpush.msra.mxu0 %v2403
    %2419 = vmatpush.msra.mxu0 %v2402
    %2420 = vmatpush.msra.mxu0 %v2401
    %2421 = vmatmul.f32.gmra.mxu0 %v919
    %v2422 = vpop.f32.mrf.mxu0
    %v2423 = vadd.f32 0.0, %v2422
    %2424 = vmatmul.f32.gmra.mxu0 %v922
    %v2425 = vpop.f32.mrf.mxu0
    %v2426 = vadd.f32 0.0, %v2425
    %2427 = vdwg.mxu0
    %v2428 = vmul.f32 %v2423, %v547
    %v2429 = vmul.f32 %v2426, %v562
    %v2430 = vld [vmem:[#allocation21] sm:$0xff]
    %v2431 = vld [vmem:[#allocation21 + $0x8] sm:$0xff]
    %v2432 = vld [vmem:[#allocation21 + $0x10] sm:$0xff]
    %v2433 = vld [vmem:[#allocation21 + $0x18] sm:$0xff]
    %v2434 = vld [vmem:[#allocation22] sm:$0x1]
    %v2436 = vperm.slane %v2434, 0
    %v2439 = vsel %vm524, %v2428, 0
    %v2442 = vsel %vm524, %v2429, 0
    %2444 = vmatpush.msra.mxu0 0.0
    %2445 = vmatpush.msra.mxu0 0.0
    %2446 = vmatpush.msra.mxu0 0.0
    %2447 = vmatpush.msra.mxu0 0.0
    %2448 = vmatpush.msra.mxu0 0.0
    %2449 = vmatpush.msra.mxu0 0.0
    %2450 = vmatpush.msra.mxu0 0.0
    %2451 = vmatpush.msra.mxu0 0.0
    %2452 = vmatpush.msra.mxu0 0.0
    %2453 = vmatpush.msra.mxu0 0.0
    %2454 = vmatpush.msra.mxu0 0.0
    %2455 = vmatpush.msra.mxu0 0.0
    %2456 = vmatpush.msra.mxu0 %v2433
    %2457 = vmatpush.msra.mxu0 %v2432
    %2458 = vmatpush.msra.mxu0 %v2431
    %2459 = vmatpush.msra.mxu0 %v2430
    %2460 = vmatmul.f32.gmra.mxu0 %v2439
    %v2461 = vpop.f32.mrf.mxu0
    %v2462 = vadd.f32 %v2436, %v2461
    %2463 = vmatmul.f32.gmra.mxu0 %v2442
    %v2464 = vpop.f32.mrf.mxu0
    %v2465 = vadd.f32 %v2436, %v2464
    %2466 = vdwg.mxu0
    %v2467 = vand.u32 2147483647, %v2462
    %v2468 = vand.u32 2147483647, %v2465
    %v2469 = vsub.f32 0.0, %v2467
    %v2470 = vsub.f32 0.0, %v2468
    %v2471 = vmul.f32 %v2469, 1.442695
    %v2472 = vpow.pop %v2471
    %v2473 = vmul.f32 %v2470, 1.442695
    %v2474 = vpow.pop %v2473
    %v2475 = vadd.f32 %v2472, 1.0
    %v2476 = vadd.f32 %v2474, 1.0
    %v2477 = vlog2.pop %v2475
    %v2478 = vmul.f32 %v2477, 0.6931472
    %v2479 = vlog2.pop %v2476
    %v2480 = vmul.f32 %v2479, 0.6931472
    %v2481 = vmax.f32 %v2462, 0.0
    %v2482 = vmax.f32 %v2465, 0.0
    %v2483 = vadd.f32 %v2478, %v2481
    %v2484 = vadd.f32 %v2480, %v2482
    %v2485 = vsub.f32 %v2483, 0.6931472
    %v2486 = vsub.f32 %v2484, 0.6931472
    %v2487 = vld [vmem:[#allocation24] sm:$0xff]
    %v2488 = vld [vmem:[#allocation24 + $0x8] sm:$0xff]
    %v2489 = vld [vmem:[#allocation24 + $0x10] sm:$0xff]
    %v2490 = vld [vmem:[#allocation24 + $0x18] sm:$0xff]
    %v2491 = vld [vmem:[#allocation25] sm:$0x1]
    %v2493 = vperm.slane %v2491, 0
    %v2496 = vsel %vm524, %v2485, 0
    %v2499 = vsel %vm524, %v2486, 0
    %2501 = vmatpush.msra.mxu0 0.0
    %2502 = vmatpush.msra.mxu0 0.0
    %2503 = vmatpush.msra.mxu0 0.0
    %2504 = vmatpush.msra.mxu0 0.0
    %2505 = vmatpush.msra.mxu0 0.0
    %2506 = vmatpush.msra.mxu0 0.0
    %2507 = vmatpush.msra.mxu0 0.0
    %2508 = vmatpush.msra.mxu0 0.0
    %2509 = vmatpush.msra.mxu0 0.0
    %2510 = vmatpush.msra.mxu0 0.0
    %2511 = vmatpush.msra.mxu0 0.0
    %2512 = vmatpush.msra.mxu0 0.0
    %2513 = vmatpush.msra.mxu0 %v2490
    %2514 = vmatpush.msra.mxu0 %v2489
    %2515 = vmatpush.msra.mxu0 %v2488
    %2516 = vmatpush.msra.mxu0 %v2487
    %2517 = vmatmul.f32.gmra.mxu0 %v2496
    %v2518 = vpop.f32.mrf.mxu0
    %v2519 = vadd.f32 %v2493, %v2518
    %2520 = vmatmul.f32.gmra.mxu0 %v2499
    %v2521 = vpop.f32.mrf.mxu0
    %v2522 = vadd.f32 %v2493, %v2521
    %2523 = vdwg.mxu0
    %vm2524 = vcmp.ge.f32.partialorder %v2519, 0.0
    %vm2525 = vcmp.ge.f32.partialorder %v2522, 0.0
    %v2526 = vmul.f32 %v2519, 0.01
    %v2527 = vmul.f32 %v2522, 0.01
    %v2528 = vsel %vm2524, %v2519, %v2526
    %v2529 = vsel %vm2525, %v2522, %v2527
    %v2531 = vsel %vm524, %v2528, 0
    %v2534 = vsel %vm524, %v2529, 0
    %2536 = vmatpush.msra.mxu0 0.0
    %2537 = vmatpush.msra.mxu0 0.0
    %2538 = vmatpush.msra.mxu0 0.0
    %2539 = vmatpush.msra.mxu0 0.0
    %2540 = vmatpush.msra.mxu0 0.0
    %2541 = vmatpush.msra.mxu0 0.0
    %2542 = vmatpush.msra.mxu0 0.0
    %2543 = vmatpush.msra.mxu0 0.0
    %2544 = vmatpush.msra.mxu0 0.0
    %2545 = vmatpush.msra.mxu0 0.0
    %2546 = vmatpush.msra.mxu0 0.0
    %2547 = vmatpush.msra.mxu0 0.0
    %2548 = vmatpush.msra.mxu0 %v1061
    %2549 = vmatpush.msra.mxu0 %v1060
    %2550 = vmatpush.msra.mxu0 %v1059
    %2551 = vmatpush.msra.mxu0 %v1058
    %2552 = vmatmul.f32.gmra.mxu0 %v2531
    %v2553 = vpop.f32.mrf.mxu0
    %v2554 = vadd.f32 %v1064, %v2553
    %2555 = vmatmul.f32.gmra.mxu0 %v2534
    %v2556 = vpop.f32.mrf.mxu0
    %v2557 = vadd.f32 %v1064, %v2556
    %2558 = vdwg.mxu0
    %2559 = vmatpush.msra.mxu0 0.0
    %2560 = vmatpush.msra.mxu0 0.0
    %2561 = vmatpush.msra.mxu0 0.0
    %2562 = vmatpush.msra.mxu0 0.0
    %2563 = vmatpush.msra.mxu0 0.0
    %2564 = vmatpush.msra.mxu0 0.0
    %2565 = vmatpush.msra.mxu0 0.0
    %2566 = vmatpush.msra.mxu0 0.0
    %2567 = vmatpush.msra.mxu0 0.0
    %2568 = vmatpush.msra.mxu0 0.0
    %2569 = vmatpush.msra.mxu0 0.0
    %2570 = vmatpush.msra.mxu0 0.0
    %2571 = vmatpush.msra.mxu0 %v1098
    %2572 = vmatpush.msra.mxu0 %v1097
    %2573 = vmatpush.msra.mxu0 %v1096
    %2574 = vmatpush.msra.mxu0 %v1095
    %2575 = vmatmul.f32.gmra.mxu0 %v2341
    %v2576 = vpop.f32.mrf.mxu0
    %v2577 = vadd.f32 %v1101, %v2576
    %2578 = vmatmul.f32.gmra.mxu0 %v2343
    %v2579 = vpop.f32.mrf.mxu0
    %v2580 = vadd.f32 %v1101, %v2579
    %2581 = vdwg.mxu0
    %v2582 = vadd.f32 %v2554, %v2577
    %v2583 = vadd.f32 %v2557, %v2580
    %v2584 = vsub.f32 0.0, %v2582
    %v2585 = vsub.f32 0.0, %v2583
    %v2586 = vmul.f32 %v2584, 1.442695
    %v2587 = vpow.pop %v2586
    %v2588 = vmul.f32 %v2585, 1.442695
    %v2589 = vpow.pop %v2588
    %v2590 = vadd.f32 %v2587, 1.0
    %v2591 = vadd.f32 %v2589, 1.0
    %v2592 = vrcp.pop %v2590
    %v2593 = vmul.f32 %v2590, %v2592
    %v2594 = vsub.f32 1.0, %v2593
    %v2595 = vmul.f32 %v2592, %v2594
    %v2596 = vadd.f32 %v2592, %v2595
    %vm2597 = vweird.f32 %v2590
    %vm2598 = vweird.f32 %v2592
    %vm2599 = vmor %vm2597, %vm2598
    %v2600 = vsel %vm2599, %v2592, %v2596
    %v2601 = vand.u32 2147483647, %v2590
    %vm2602 = vcmp.eq.f32.partialorder %v2601, 8.507059e+37
    %v2603 = vand.u32 %v2590, 2147483648
    %v2604 = vor.u32 1.1754944e-38, %v2603
    %v2605 = vsel %vm2602, %v2604, %v2600
    %v2606 = vmul.f32 1.0, %v2605
    %v2607 = vrcp.pop %v2591
    %v2608 = vmul.f32 %v2591, %v2607
    %v2609 = vsub.f32 1.0, %v2608
    %v2610 = vmul.f32 %v2607, %v2609
    %v2611 = vadd.f32 %v2607, %v2610
    %vm2612 = vweird.f32 %v2591
    %vm2613 = vweird.f32 %v2607
    %vm2614 = vmor %vm2612, %vm2613
    %v2615 = vsel %vm2614, %v2607, %v2611
    %v2616 = vand.u32 2147483647, %v2591
    %vm2617 = vcmp.eq.f32.partialorder %v2616, 8.507059e+37
    %v2618 = vand.u32 %v2591, 2147483648
    %v2619 = vor.u32 1.1754944e-38, %v2618
    %v2620 = vsel %vm2617, %v2619, %v2615
    %v2621 = vmul.f32 1.0, %v2620
    %2624 = vrot.lane.b32.xlu0 %v2577, 64
    %v2625 = vpop.permute.xlu0 %2624
    %2626 = vrot.lane.b32.xlu0 %v2580, 64
    %v2627 = vpop.permute.xlu0 %2626
    %v2630 = vmul.f32 %v2606, %v2625
    %v2631 = vmul.f32 %v2621, %v2627
    %2634 = vrot.lane.b32.xlu0 %v2630, 64
    %v2635 = vpop.permute.xlu0 %2634
    %2636 = vrot.lane.b32.xlu0 %v2631, 64
    %v2637 = vpop.permute.xlu0 %2636
    %v2640 = vadd.f32 %v2554, %v2635
    %v2641 = vadd.f32 %v2557, %v2637
    %v2642 = vtanh.pop %v2640
    %v2643 = vtanh.pop %v2641
    %v2644 = vsub.f32 1.0, %v2606
    %v2645 = vsub.f32 1.0, %v2621
    %2648 = vrot.lane.b32.xlu0 %v2642, 96
    %v2649 = vpop.permute.xlu0 %2648
    %2650 = vrot.lane.b32.xlu0 %v2643, 96
    %v2651 = vpop.permute.xlu0 %2650
    %v2654 = vmul.f32 %v2644, %v2649
    %v2655 = vmul.f32 %v2645, %v2651
    %v2656 = vmul.f32 %v2606, %v2260
    %v2657 = vmul.f32 %v2621, %v2261
    %v2658 = vadd.f32 %v2654, %v2656
    %v2659 = vadd.f32 %v2655, %v2657
    %2662 = vrot.lane.b32.xlu0 %v2658, 96
    %v2663 = vpop.permute.xlu0 %2662
    %2664 = vrot.lane.b32.xlu0 %v2659, 96
    %v2665 = vpop.permute.xlu0 %2664
    %2668 = vst.msk [vmem:[%s77] sm:$0xff] %vm524, %v2663
    %2669 = vst.msk [vmem:[%s77 + $0x8] sm:$0xff] %vm524, %v2665
    // Predicated region
    $region234: #{cggru_forward.2} parent=1 // pred_check
      _
    $region235: #{cggru_forward.2} parent=1 // pred_check_branch
      %2671 = sbr.rel (0) target = $region237
    $region236: #{cggru_forward.2} parent=1 // pred_region
      _
    $region237: #{cggru_forward.2} parent=1 // pred_fallthru
      _
    // Predicated region
    $region238: #{cggru_forward.2} parent=1 // pred_check
      _
    $region239: #{cggru_forward.2} parent=1 // pred_check_branch
      %2673 = sbr.rel (0) target = $region241
    $region240: #{cggru_forward.2} parent=1 // pred_region
      _
    $region241: #{cggru_forward.2} parent=1 // pred_fallthru
      _
    %2674 = vsyncpa [#allocation3], 1
    %2675 = vsyncpa [#allocation5], 1
    %2676 = vsyncpa [#allocation8], 1
    %2677 = vsyncpa [#allocation11], 1
    %2678 = vsyncpa [#allocation14], 1
    %2679 = vsyncpa [#allocation17], 1
    %2680 = vsyncpa [#allocation20], 1
    %2681 = vsyncpa [#allocation23], 1
    %2682 = vsyncpa [#allocation26], 1
    %2683 = vsyncpa [#allocation29], 1
    %2684 = vsyncpa [#allocation32], 1

// kernel: cggru_forward.3
$region0: #{cggru_forward.3}
  #allocation0 [shape = 'u32[]', space=smem, size = 0x4, offset = 0x4, fixed_abs, tag = 'smem constant byte address 0x4 - core index']
  #allocation1 [shape = 'u32[72,128]{1,0:T(1,128)}', space=vmem, size = 0x9000, scoped, tag = 'internal scratch']
  #allocation2 [shape = 'f32[1,1]{1,0:T(1,128)S(1)}', space=vmem, size = 0x200, scoped, tag = 'scoped memory for cggru_forward.3']
  %s0 = inlined_call_operand.vmem [shape: f32[16,32], index: 0, kind: input, shape index: {}]
  %s1 = inlined_call_operand.vmem [shape: f32[16,1], index: 1, kind: input, shape index: {}]
  %s2 = inlined_call_operand.vmem [shape: s32[1,16], index: 2, kind: input, shape index: {}]
  %s3 = inlined_call_operand.vmem [shape: f32[32,128], index: 3, kind: input, shape index: {}]
  %s4 = inlined_call_operand.vmem [shape: f32[32,128], index: 4, kind: input, shape index: {}]
  %s5 = inlined_call_operand.vmem [shape: f32[32,128], index: 5, kind: input, shape index: {}]
  %s6 = inlined_call_operand.vmem [shape: f32[1,128], index: 6, kind: input, shape index: {}]
  %s7 = inlined_call_operand.vmem [shape: f32[32,32], index: 7, kind: input, shape index: {}]
  %s8 = inlined_call_operand.vmem [shape: f32[32,32], index: 8, kind: input, shape index: {}]
  %s9 = inlined_call_operand.vmem [shape: f32[1,32], index: 9, kind: input, shape index: {}]
  %s10 = inlined_call_operand.vmem [shape: f32[32,1], index: 10, kind: input, shape index: {}]
  %s11 = inlined_call_operand.<no memory space> [shape: f32[1,1], index: 11, kind: input, shape index: {}]
  %s12 = inlined_call_operand.vmem [shape: f32[32,32], index: 12, kind: input, shape index: {}]
  %s13 = inlined_call_operand.vmem [shape: f32[1,32], index: 13, kind: input, shape index: {}]
  %s14 = inlined_call_operand.vmem [shape: f32[32,3], index: 14, kind: input, shape index: {}]
  %s15 = inlined_call_operand.vmem [shape: f32[1,3], index: 15, kind: input, shape index: {}]
  %s16 = inlined_call_operand.vmem [shape: f32[32,6], index: 16, kind: input, shape index: {}]
  %s17 = inlined_call_operand.vmem [shape: f32[1,6], index: 17, kind: input, shape index: {}]
  %s18 = inlined_call_operand.vmem [shape: f32[2,1], index: 18, kind: output, shape index: {0}]
  %s19 = inlined_call_operand.vmem [shape: f32[16,3], index: 19, kind: output, shape index: {1}]
  %s20 = inlined_call_operand.hbm [shape: f32[2,6], index: 20, kind: output, shape index: {2}]
  %21 = xla_tuple %s18, %s19, %s20
  %s22 = sld [smem:[#allocation0]]
  $region98: #{cggru_forward.3} parent=0
    _
  %s24 = ssub.s32 1, %s22
  %s25 = scalar_select 0, %s24, %s22
  %v26 = vstv %s11
  %27 = vst [vmem:[#allocation2] sm:$0x1] %v26
  $region1: #{cggru_forward.3} parent=0
    #allocation3 [shape = 'u8[1024]{0}', space=vmem, size = 0x400, scoped, tag = 'output window, operand 2, single buffered']
    #allocation4 [shape = 's32[1]{0}', space=sflag, size = 0x4, scoped, tag = 'scoped memory for cggru_forward.3']
    %28 = vsyncpa [#allocation4], 0
    // Predicated region
    $region2: #{cggru_forward.3} parent=1 // pred_check
      _
    $region3: #{cggru_forward.3} parent=1 // pred_check_branch
      %30 = sbr.rel (0) target = $region5
    $region4: #{cggru_forward.3} parent=1 // pred_region
      _
    $region5: #{cggru_forward.3} parent=1 // pred_fallthru
      _
    // Predicated region
    $region6: #{cggru_forward.3} parent=1 // pred_check
      _
    $region7: #{cggru_forward.3} parent=1 // pred_check_branch
      %32 = sbr.rel (0) target = $region9
    $region8: #{cggru_forward.3} parent=1 // pred_region
      _
    $region9: #{cggru_forward.3} parent=1 // pred_fallthru
      _
    // Predicated region
    $region10: #{cggru_forward.3} parent=1 // pred_check
      _
    $region11: #{cggru_forward.3} parent=1 // pred_check_branch
      %34 = sbr.rel (0) target = $region13
    $region12: #{cggru_forward.3} parent=1 // pred_region
      _
    $region13: #{cggru_forward.3} parent=1 // pred_fallthru
      _
    // Predicated region
    $region14: #{cggru_forward.3} parent=1 // pred_check
      _
    $region15: #{cggru_forward.3} parent=1 // pred_check_branch
      %36 = sbr.rel (0) target = $region17
    $region16: #{cggru_forward.3} parent=1 // pred_region
      _
    $region17: #{cggru_forward.3} parent=1 // pred_fallthru
      _
    // Predicated region
    $region18: #{cggru_forward.3} parent=1 // pred_check
      _
    $region19: #{cggru_forward.3} parent=1 // pred_check_branch
      %38 = sbr.rel (0) target = $region21
    $region20: #{cggru_forward.3} parent=1 // pred_region
      _
    $region21: #{cggru_forward.3} parent=1 // pred_fallthru
      _
    // Predicated region
    $region22: #{cggru_forward.3} parent=1 // pred_check
      _
    $region23: #{cggru_forward.3} parent=1 // pred_check_branch
      %40 = sbr.rel (0) target = $region25
    $region24: #{cggru_forward.3} parent=1 // pred_region
      _
    $region25: #{cggru_forward.3} parent=1 // pred_fallthru
      _
    // Predicated region
    $region26: #{cggru_forward.3} parent=1 // pred_check
      _
    $region27: #{cggru_forward.3} parent=1 // pred_check_branch
      %42 = sbr.rel (0) target = $region29
    $region28: #{cggru_forward.3} parent=1 // pred_region
      _
    $region29: #{cggru_forward.3} parent=1 // pred_fallthru
      _
    // Predicated region
    $region30: #{cggru_forward.3} parent=1 // pred_check
      _
    $region31: #{cggru_forward.3} parent=1 // pred_check_branch
      %44 = sbr.rel (0) target = $region33
    $region32: #{cggru_forward.3} parent=1 // pred_region
      _
    $region33: #{cggru_forward.3} parent=1 // pred_fallthru
      _
    // Predicated region
    $region34: #{cggru_forward.3} parent=1 // pred_check
      _
    $region35: #{cggru_forward.3} parent=1 // pred_check_branch
      %46 = sbr.rel (0) target = $region37
    $region36: #{cggru_forward.3} parent=1 // pred_region
      _
    $region37: #{cggru_forward.3} parent=1 // pred_fallthru
      _
    // Predicated region
    $region38: #{cggru_forward.3} parent=1 // pred_check
      _
    $region39: #{cggru_forward.3} parent=1 // pred_check_branch
      %48 = sbr.rel (0) target = $region41
    $region40: #{cggru_forward.3} parent=1 // pred_region
      _
    $region41: #{cggru_forward.3} parent=1 // pred_fallthru
      _
    // Predicated region
    $region42: #{cggru_forward.3} parent=1 // pred_check
      _
    $region43: #{cggru_forward.3} parent=1 // pred_check_branch
      %50 = sbr.rel (0) target = $region45
    $region44: #{cggru_forward.3} parent=1 // pred_region
      _
    $region45: #{cggru_forward.3} parent=1 // pred_fallthru
      _
    // Predicated region
    $region46: #{cggru_forward.3} parent=1 // pred_check
      _
    $region47: #{cggru_forward.3} parent=1 // pred_check_branch
      %52 = sbr.rel (0) target = $region49
    $region48: #{cggru_forward.3} parent=1 // pred_region
      _
    $region49: #{cggru_forward.3} parent=1 // pred_fallthru
      _
    // Predicated region
    $region50: #{cggru_forward.3} parent=1 // pred_check
      _
    $region51: #{cggru_forward.3} parent=1 // pred_check_branch
      %54 = sbr.rel (0) target = $region53
    $region52: #{cggru_forward.3} parent=1 // pred_region
      _
    $region53: #{cggru_forward.3} parent=1 // pred_fallthru
      _
    // Predicated region
    $region54: #{cggru_forward.3} parent=1 // pred_check
      _
    $region55: #{cggru_forward.3} parent=1 // pred_check_branch
      %56 = sbr.rel (0) target = $region57
    $region56: #{cggru_forward.3} parent=1 // pred_region
      _
    $region57: #{cggru_forward.3} parent=1 // pred_fallthru
      _
    // Predicated region
    $region58: #{cggru_forward.3} parent=1 // pred_check
      _
    $region59: #{cggru_forward.3} parent=1 // pred_check_branch
      %58 = sbr.rel (0) target = $region61
    $region60: #{cggru_forward.3} parent=1 // pred_region
      _
    $region61: #{cggru_forward.3} parent=1 // pred_fallthru
      _
    // Predicated region
    $region62: #{cggru_forward.3} parent=1 // pred_check
      _
    $region63: #{cggru_forward.3} parent=1 // pred_check_branch
      %60 = sbr.rel (0) target = $region65
    $region64: #{cggru_forward.3} parent=1 // pred_region
      _
    $region65: #{cggru_forward.3} parent=1 // pred_fallthru
      _
    // Predicated region
    $region66: #{cggru_forward.3} parent=1 // pred_check
      _
    $region67: #{cggru_forward.3} parent=1 // pred_check_branch
      %62 = sbr.rel (0) target = $region69
    $region68: #{cggru_forward.3} parent=1 // pred_region
      _
    $region69: #{cggru_forward.3} parent=1 // pred_fallthru
      _
    // Predicated region
    $region70: #{cggru_forward.3} parent=1 // pred_check
      _
    $region71: #{cggru_forward.3} parent=1 // pred_check_branch
      %64 = sbr.rel (0) target = $region73
    $region72: #{cggru_forward.3} parent=1 // pred_region
      _
    $region73: #{cggru_forward.3} parent=1 // pred_fallthru
      _
    %v65 = vld [vmem:[%s0] sm:$0xff]
    %v66 = vld [vmem:[%s0 + $0x8] sm:$0xff]
    %v67 = vld [vmem:[%s1] sm:$0xff]
    %v68 = vld [vmem:[%s1 + $0x8] sm:$0xff]
    %70 = vset.pattern.permute.xlu0 0
    %71 = vperm.xlu0 %70, %v67
    %v72 = vpop.permute.xlu0 %71
    %75 = vset.pattern.permute.xlu0 0
    %76 = vperm.xlu0 %75, %v68
    %v77 = vpop.permute.xlu0 %76
    %v79 = vadd.f32 %v65, %v72
    %v80 = vadd.f32 %v66, %v77
    %v81 = vlaneseq
    %v82 = vshrl.u32 %v81, 7
    %v83 = vld [vmem:[%s2] sm:$0x1]
    %v84 = vperm.slane %v83, 0
    %vm85 = vcmp.eq.s32.totalorder %v84, %v82
    %v86 = vsel %vm85, 1, 0
    %v87 = vcvt.s32.f32 %v86
    %vm88 = vcmask 123904
    %v89 = vsel %vm88, %v87, 0.0
    %90 = vadd.xlane.f32.xlu0 %v89
    %v91 = vpop.xlane.xlu0 %90
    %v92 = vmax.f32 %v91, 1.0
    %v93 = vld [vmem:[%s3] sm:$0xff]
    %v94 = vld [vmem:[%s3 + $0x8] sm:$0xff]
    %v95 = vld [vmem:[%s3 + $0x10] sm:$0xff]
    %v96 = vld [vmem:[%s3 + $0x18] sm:$0xff]
    %v97 = vld [vmem:[%s4] sm:$0xff]
    %v98 = vld [vmem:[%s4 + $0x8] sm:$0xff]
    %v99 = vld [vmem:[%s4 + $0x10] sm:$0xff]
    %v100 = vld [vmem:[%s4 + $0x18] sm:$0xff]
    %vm101 = vcmask 261120
    %v103 = vsel %vm101, 0.0, 0
    %105 = vmatpush.msra.mxu0 0.0
    %106 = vmatpush.msra.mxu0 0.0
    %107 = vmatpush.msra.mxu0 0.0
    %108 = vmatpush.msra.mxu0 0.0
    %109 = vmatpush.msra.mxu0 0.0
    %110 = vmatpush.msra.mxu0 0.0
    %111 = vmatpush.msra.mxu0 0.0
    %112 = vmatpush.msra.mxu0 0.0
    %113 = vmatpush.msra.mxu0 0.0
    %114 = vmatpush.msra.mxu0 0.0
    %115 = vmatpush.msra.mxu0 0.0
    %116 = vmatpush.msra.mxu0 0.0
    %117 = vmatpush.msra.mxu0 %v100
    %118 = vmatpush.msra.mxu0 %v99
    %119 = vmatpush.msra.mxu0 %v98
    %120 = vmatpush.msra.mxu0 %v97
    %121 = vmatmul.f32.gmra.mxu0 %v103
    %v122 = vpop.f32.mrf.mxu0
    %v123 = vadd.f32 0.0, %v122
    %124 = vdwg.mxu0
    %125 = vmatpush.msra.mxu0 0.0
    %126 = vmatpush.msra.mxu0 0.0
    %127 = vmatpush.msra.mxu0 0.0
    %128 = vmatpush.msra.mxu0 0.0
    %129 = vmatpush.msra.mxu0 0.0
    %130 = vmatpush.msra.mxu0 0.0
    %131 = vmatpush.msra.mxu0 0.0
    %132 = vmatpush.msra.mxu0 0.0
    %133 = vmatpush.msra.mxu0 0.0
    %134 = vmatpush.msra.mxu0 0.0
    %135 = vmatpush.msra.mxu0 0.0
    %136 = vmatpush.msra.mxu0 0.0
    %137 = vmatpush.msra.mxu0 %v96
    %138 = vmatpush.msra.mxu0 %v95
    %139 = vmatpush.msra.mxu0 %v94
    %140 = vmatpush.msra.mxu0 %v93
    %141 = vmatmul.f32.gmra.mxu0 %v103
    %v142 = vpop.f32.mrf.mxu0
    %v143 = vadd.f32 %v123, %v142
    %144 = vdwg.mxu0
    %v145 = vld [vmem:[%s5] sm:$0xff]
    %v146 = vld [vmem:[%s5 + $0x8] sm:$0xff]
    %v147 = vld [vmem:[%s5 + $0x10] sm:$0xff]
    %v148 = vld [vmem:[%s5 + $0x18] sm:$0xff]
    %149 = vmatpush.msra.mxu0 0.0
    %150 = vmatpush.msra.mxu0 0.0
    %151 = vmatpush.msra.mxu0 0.0
    %152 = vmatpush.msra.mxu0 0.0
    %153 = vmatpush.msra.mxu0 0.0
    %154 = vmatpush.msra.mxu0 0.0
    %155 = vmatpush.msra.mxu0 0.0
    %156 = vmatpush.msra.mxu0 0.0
    %157 = vmatpush.msra.mxu0 0.0
    %158 = vmatpush.msra.mxu0 0.0
    %159 = vmatpush.msra.mxu0 0.0
    %160 = vmatpush.msra.mxu0 0.0
    %161 = vmatpush.msra.mxu0 %v148
    %162 = vmatpush.msra.mxu0 %v147
    %163 = vmatpush.msra.mxu0 %v146
    %164 = vmatpush.msra.mxu0 %v145
    %165 = vmatmul.f32.gmra.mxu0 %v103
    %v166 = vpop.f32.mrf.mxu0
    %v167 = vadd.f32 0.0, %v166
    %168 = vdwg.mxu0
    %v169 = vadd.f32 %v143, %v167
    %v170 = vld [vmem:[%s6] sm:$0x1]
    %v172 = vperm.slane %v170, 0
    %v174 = vadd.f32 %v169, %v172
    %v175 = vsub.f32 0.0, %v174
    %v176 = vmul.f32 %v175, 1.442695
    %v177 = vpow.pop %v176
    %v178 = vadd.f32 %v177, 1.0
    %v179 = vrcp.pop %v178
    %v180 = vmul.f32 %v178, %v179
    %v181 = vsub.f32 1.0, %v180
    %v182 = vmul.f32 %v179, %v181
    %v183 = vadd.f32 %v179, %v182
    %vm184 = vweird.f32 %v178
    %vm185 = vweird.f32 %v179
    %vm186 = vmor %vm184, %vm185
    %v187 = vsel %vm186, %v179, %v183
    %v188 = vand.u32 2147483647, %v178
    %vm189 = vcmp.eq.f32.partialorder %v188, 8.507059e+37
    %v190 = vand.u32 %v178, 2147483648
    %v191 = vor.u32 1.1754944e-38, %v190
    %v192 = vsel %vm189, %v191, %v187
    %v193 = vmul.f32 1.0, %v192
    %v194 = vtanh.pop %v174
    %v195 = vmul.f32 %v193, 0.0
    %197 = vrot.lane.b32.xlu0 %v194, 64
    %v198 = vpop.permute.xlu0 %197
    %v200 = vmul.f32 %v193, %v198
    %202 = vrot.lane.b32.xlu0 %v200, 32
    %v203 = vpop.permute.xlu0 %202
    %v205 = vadd.f32 %v195, %v203
    %v206 = vtanh.pop %v205
    %208 = vrot.lane.b32.xlu0 %v206, 64
    %v209 = vpop.permute.xlu0 %208
    %v211 = vmul.f32 %v193, %v209
    %213 = vrot.lane.b32.xlu0 %v211, 32
    %v214 = vpop.permute.xlu0 %213
    %v215 = vsel %vm101, %v214, 0
    %v218 = vsel %vm101, %v79, 0
    %v221 = vsel %vm101, %v80, 0
    %223 = vmatpush.xpose.msra.mxu0 0.0
    %224 = vmatpush.xpose.msra.mxu0 0.0
    %225 = vmatpush.xpose.msra.mxu0 0.0
    %226 = vmatpush.xpose.msra.mxu0 0.0
    %227 = vmatpush.xpose.msra.mxu0 0.0
    %228 = vmatpush.xpose.msra.mxu0 0.0
    %229 = vmatpush.xpose.msra.mxu0 0.0
    %230 = vmatpush.xpose.msra.mxu0 0.0
    %231 = vmatpush.xpose.msra.mxu0 0.0
    %232 = vmatpush.xpose.msra.mxu0 0.0
    %233 = vmatpush.xpose.msra.mxu0 0.0
    %234 = vmatpush.xpose.msra.mxu0 0.0
    %235 = vmatpush.xpose.msra.mxu0 0.0
    %236 = vmatpush.xpose.msra.mxu0 0.0
    %237 = vmatpush.xpose.msra.mxu0 %v221
    %238 = vmatpush.xpose.msra.mxu0 %v218
    %239 = vmatmul.f32.gmra.mxu0 %v215
    %v240 = vpop.f32.mrf.mxu0
    %v241 = vadd.f32 0.0, %v240
    %242 = vdwg.mxu0
    %vm243 = vcmp.gt.f32.partialorder %v87, 0.0
    %v244 = vsel %vm243, %v241, -1e+30
    %v245 = vsel %vm88, %v244, -inf
    %246 = vmax.xlane.f32.xlu0 %v245
    %v247 = vpop.xlane.xlu0 %246
    %v248 = vsub.f32 %v244, %v247
    %v249 = vmul.f32 %v248, 1.442695
    %v250 = vpow.pop %v249
    %v251 = vsel %vm88, %v250, 0.0
    %252 = vadd.xlane.f32.xlu0 %v251
    %v253 = vpop.xlane.xlu0 %252
    %v254 = vrcp.pop %v253
    %v255 = vmul.f32 %v253, %v254
    %v256 = vsub.f32 1.0, %v255
    %v257 = vmul.f32 %v254, %v256
    %v258 = vadd.f32 %v254, %v257
    %vm259 = vweird.f32 %v253
    %vm260 = vweird.f32 %v254
    %vm261 = vmor %vm259, %vm260
    %v262 = vsel %vm261, %v254, %v258
    %v263 = vand.u32 2147483647, %v253
    %vm264 = vcmp.eq.f32.partialorder %v263, 8.507059e+37
    %v265 = vand.u32 %v253, 2147483648
    %v266 = vor.u32 1.1754944e-38, %v265
    %v267 = vsel %vm264, %v266, %v262
    %v268 = vmul.f32 %v250, %v267
    %vm269 = vcmask 130048
    %v271 = vsel %vm269, %v268, 0
    %273 = vmatpush.msra.mxu0 0.0
    %274 = vmatpush.msra.mxu0 0.0
    %275 = vmatpush.msra.mxu0 0.0
    %276 = vmatpush.msra.mxu0 0.0
    %277 = vmatpush.msra.mxu0 0.0
    %278 = vmatpush.msra.mxu0 0.0
    %279 = vmatpush.msra.mxu0 0.0
    %280 = vmatpush.msra.mxu0 0.0
    %281 = vmatpush.msra.mxu0 0.0
    %282 = vmatpush.msra.mxu0 0.0
    %283 = vmatpush.msra.mxu0 0.0
    %284 = vmatpush.msra.mxu0 0.0
    %285 = vmatpush.msra.mxu0 0.0
    %286 = vmatpush.msra.mxu0 0.0
    %287 = vmatpush.msra.mxu0 %v80
    %288 = vmatpush.msra.mxu0 %v79
    %289 = vmatmul.f32.gmra.mxu0 %v271
    %v290 = vpop.f32.mrf.mxu0
    %v291 = vadd.f32 0.0, %v290
    %292 = vdwg.mxu0
    %v294 = vsel %vm101, %v291, 0
    %296 = vmatpush.msra.mxu0 0.0
    %297 = vmatpush.msra.mxu0 0.0
    %298 = vmatpush.msra.mxu0 0.0
    %299 = vmatpush.msra.mxu0 0.0
    %300 = vmatpush.msra.mxu0 0.0
    %301 = vmatpush.msra.mxu0 0.0
    %302 = vmatpush.msra.mxu0 0.0
    %303 = vmatpush.msra.mxu0 0.0
    %304 = vmatpush.msra.mxu0 0.0
    %305 = vmatpush.msra.mxu0 0.0
    %306 = vmatpush.msra.mxu0 0.0
    %307 = vmatpush.msra.mxu0 0.0
    %308 = vmatpush.msra.mxu0 %v100
    %309 = vmatpush.msra.mxu0 %v99
    %310 = vmatpush.msra.mxu0 %v98
    %311 = vmatpush.msra.mxu0 %v97
    %312 = vmatmul.f32.gmra.mxu0 %v294
    %v313 = vpop.f32.mrf.mxu0
    %v314 = vadd.f32 0.0, %v313
    %315 = vdwg.mxu0
    %316 = vmatpush.msra.mxu0 0.0
    %317 = vmatpush.msra.mxu0 0.0
    %318 = vmatpush.msra.mxu0 0.0
    %319 = vmatpush.msra.mxu0 0.0
    %320 = vmatpush.msra.mxu0 0.0
    %321 = vmatpush.msra.mxu0 0.0
    %322 = vmatpush.msra.mxu0 0.0
    %323 = vmatpush.msra.mxu0 0.0
    %324 = vmatpush.msra.mxu0 0.0
    %325 = vmatpush.msra.mxu0 0.0
    %326 = vmatpush.msra.mxu0 0.0
    %327 = vmatpush.msra.mxu0 0.0
    %328 = vmatpush.msra.mxu0 %v96
    %329 = vmatpush.msra.mxu0 %v95
    %330 = vmatpush.msra.mxu0 %v94
    %331 = vmatpush.msra.mxu0 %v93
    %332 = vmatmul.f32.gmra.mxu0 %v215
    %v333 = vpop.f32.mrf.mxu0
    %v334 = vadd.f32 %v314, %v333
    %335 = vdwg.mxu0
    %336 = vmatpush.msra.mxu0 0.0
    %337 = vmatpush.msra.mxu0 0.0
    %338 = vmatpush.msra.mxu0 0.0
    %339 = vmatpush.msra.mxu0 0.0
    %340 = vmatpush.msra.mxu0 0.0
    %341 = vmatpush.msra.mxu0 0.0
    %342 = vmatpush.msra.mxu0 0.0
    %343 = vmatpush.msra.mxu0 0.0
    %344 = vmatpush.msra.mxu0 0.0
    %345 = vmatpush.msra.mxu0 0.0
    %346 = vmatpush.msra.mxu0 0.0
    %347 = vmatpush.msra.mxu0 0.0
    %348 = vmatpush.msra.mxu0 %v148
    %349 = vmatpush.msra.mxu0 %v147
    %350 = vmatpush.msra.mxu0 %v146
    %351 = vmatpush.msra.mxu0 %v145
    %352 = vmatmul.f32.gmra.mxu0 %v215
    %v353 = vpop.f32.mrf.mxu0
    %v354 = vadd.f32 0.0, %v353
    %355 = vdwg.mxu0
    %v356 = vadd.f32 %v334, %v354
    %v357 = vadd.f32 %v356, %v172
    %v358 = vsub.f32 0.0, %v357
    %v359 = vmul.f32 %v358, 1.442695
    %v360 = vpow.pop %v359
    %v361 = vadd.f32 %v360, 1.0
    %v362 = vrcp.pop %v361
    %v363 = vmul.f32 %v361, %v362
    %v364 = vsub.f32 1.0, %v363
    %v365 = vmul.f32 %v362, %v364
    %v366 = vadd.f32 %v362, %v365
    %vm367 = vweird.f32 %v361
    %vm368 = vweird.f32 %v362
    %vm369 = vmor %vm367, %vm368
    %v370 = vsel %vm369, %v362, %v366
    %v371 = vand.u32 2147483647, %v361
    %vm372 = vcmp.eq.f32.partialorder %v371, 8.507059e+37
    %v373 = vand.u32 %v361, 2147483648
    %v374 = vor.u32 1.1754944e-38, %v373
    %v375 = vsel %vm372, %v374, %v370
    %v376 = vmul.f32 1.0, %v375
    %v377 = vtanh.pop %v357
    %v378 = vmul.f32 %v376, %v205
    %380 = vrot.lane.b32.xlu0 %v377, 64
    %v381 = vpop.permute.xlu0 %380
    %v383 = vmul.f32 %v376, %v381
    %385 = vrot.lane.b32.xlu0 %v383, 32
    %v386 = vpop.permute.xlu0 %385
    %v388 = vadd.f32 %v378, %v386
    %v389 = vtanh.pop %v388
    %391 = vrot.lane.b32.xlu0 %v389, 64
    %v392 = vpop.permute.xlu0 %391
    %v394 = vmul.f32 %v376, %v392
    %396 = vrot.lane.b32.xlu0 %v394, 32
    %v397 = vpop.permute.xlu0 %396
    %v398 = vsel %vm101, %v397, 0
    %400 = vmatpush.xpose.msra.mxu0 0.0
    %401 = vmatpush.xpose.msra.mxu0 0.0
    %402 = vmatpush.xpose.msra.mxu0 0.0
    %403 = vmatpush.xpose.msra.mxu0 0.0
    %404 = vmatpush.xpose.msra.mxu0 0.0
    %405 = vmatpush.xpose.msra.mxu0 0.0
    %406 = vmatpush.xpose.msra.mxu0 0.0
    %407 = vmatpush.xpose.msra.mxu0 0.0
    %408 = vmatpush.xpose.msra.mxu0 0.0
    %409 = vmatpush.xpose.msra.mxu0 0.0
    %410 = vmatpush.xpose.msra.mxu0 0.0
    %411 = vmatpush.xpose.msra.mxu0 0.0
    %412 = vmatpush.xpose.msra.mxu0 0.0
    %413 = vmatpush.xpose.msra.mxu0 0.0
    %414 = vmatpush.xpose.msra.mxu0 %v221
    %415 = vmatpush.xpose.msra.mxu0 %v218
    %416 = vmatmul.f32.gmra.mxu0 %v398
    %v417 = vpop.f32.mrf.mxu0
    %v418 = vadd.f32 0.0, %v417
    %419 = vdwg.mxu0
    %v420 = vsel %vm243, %v418, -1e+30
    %v421 = vsel %vm88, %v420, -inf
    %422 = vmax.xlane.f32.xlu0 %v421
    %v423 = vpop.xlane.xlu0 %422
    %v424 = vsub.f32 %v420, %v423
    %v425 = vmul.f32 %v424, 1.442695
    %v426 = vpow.pop %v425
    %v427 = vsel %vm88, %v426, 0.0
    %428 = vadd.xlane.f32.xlu0 %v427
    %v429 = vpop.xlane.xlu0 %428
    %v430 = vrcp.pop %v429
    %v431 = vmul.f32 %v429, %v430
    %v432 = vsub.f32 1.0, %v431
    %v433 = vmul.f32 %v430, %v432
    %v434 = vadd.f32 %v430, %v433
    %vm435 = vweird.f32 %v429
    %vm436 = vweird.f32 %v430
    %vm437 = vmor %vm435, %vm436
    %v438 = vsel %vm437, %v430, %v434
    %v439 = vand.u32 2147483647, %v429
    %vm440 = vcmp.eq.f32.partialorder %v439, 8.507059e+37
    %v441 = vand.u32 %v429, 2147483648
    %v442 = vor.u32 1.1754944e-38, %v441
    %v443 = vsel %vm440, %v442, %v438
    %v444 = vmul.f32 %v426, %v443
    %v446 = vsel %vm269, %v444, 0
    %448 = vmatpush.msra.mxu0 0.0
    %449 = vmatpush.msra.mxu0 0.0
    %450 = vmatpush.msra.mxu0 0.0
    %451 = vmatpush.msra.mxu0 0.0
    %452 = vmatpush.msra.mxu0 0.0
    %453 = vmatpush.msra.mxu0 0.0
    %454 = vmatpush.msra.mxu0 0.0
    %455 = vmatpush.msra.mxu0 0.0
    %456 = vmatpush.msra.mxu0 0.0
    %457 = vmatpush.msra.mxu0 0.0
    %458 = vmatpush.msra.mxu0 0.0
    %459 = vmatpush.msra.mxu0 0.0
    %460 = vmatpush.msra.mxu0 0.0
    %461 = vmatpush.msra.mxu0 0.0
    %462 = vmatpush.msra.mxu0 %v80
    %463 = vmatpush.msra.mxu0 %v79
    %464 = vmatmul.f32.gmra.mxu0 %v446
    %v465 = vpop.f32.mrf.mxu0
    %v466 = vadd.f32 0.0, %v465
    %467 = vdwg.mxu0
    %v469 = vsel %vm101, %v466, 0
    %471 = vmatpush.msra.mxu0 0.0
    %472 = vmatpush.msra.mxu0 0.0
    %473 = vmatpush.msra.mxu0 0.0
    %474 = vmatpush.msra.mxu0 0.0
    %475 = vmatpush.msra.mxu0 0.0
    %476 = vmatpush.msra.mxu0 0.0
    %477 = vmatpush.msra.mxu0 0.0
    %478 = vmatpush.msra.mxu0 0.0
    %479 = vmatpush.msra.mxu0 0.0
    %480 = vmatpush.msra.mxu0 0.0
    %481 = vmatpush.msra.mxu0 0.0
    %482 = vmatpush.msra.mxu0 0.0
    %483 = vmatpush.msra.mxu0 %v100
    %484 = vmatpush.msra.mxu0 %v99
    %485 = vmatpush.msra.mxu0 %v98
    %486 = vmatpush.msra.mxu0 %v97
    %487 = vmatmul.f32.gmra.mxu0 %v469
    %v488 = vpop.f32.mrf.mxu0
    %v489 = vadd.f32 0.0, %v488
    %490 = vdwg.mxu0
    %491 = vmatpush.msra.mxu0 0.0
    %492 = vmatpush.msra.mxu0 0.0
    %493 = vmatpush.msra.mxu0 0.0
    %494 = vmatpush.msra.mxu0 0.0
    %495 = vmatpush.msra.mxu0 0.0
    %496 = vmatpush.msra.mxu0 0.0
    %497 = vmatpush.msra.mxu0 0.0
    %498 = vmatpush.msra.mxu0 0.0
    %499 = vmatpush.msra.mxu0 0.0
    %500 = vmatpush.msra.mxu0 0.0
    %501 = vmatpush.msra.mxu0 0.0
    %502 = vmatpush.msra.mxu0 0.0
    %503 = vmatpush.msra.mxu0 %v96
    %504 = vmatpush.msra.mxu0 %v95
    %505 = vmatpush.msra.mxu0 %v94
    %506 = vmatpush.msra.mxu0 %v93
    %507 = vmatmul.f32.gmra.mxu0 %v398
    %v508 = vpop.f32.mrf.mxu0
    %v509 = vadd.f32 %v489, %v508
    %510 = vdwg.mxu0
    %511 = vmatpush.msra.mxu0 0.0
    %512 = vmatpush.msra.mxu0 0.0
    %513 = vmatpush.msra.mxu0 0.0
    %514 = vmatpush.msra.mxu0 0.0
    %515 = vmatpush.msra.mxu0 0.0
    %516 = vmatpush.msra.mxu0 0.0
    %517 = vmatpush.msra.mxu0 0.0
    %518 = vmatpush.msra.mxu0 0.0
    %519 = vmatpush.msra.mxu0 0.0
    %520 = vmatpush.msra.mxu0 0.0
    %521 = vmatpush.msra.mxu0 0.0
    %522 = vmatpush.msra.mxu0 0.0
    %523 = vmatpush.msra.mxu0 %v148
    %524 = vmatpush.msra.mxu0 %v147
    %525 = vmatpush.msra.mxu0 %v146
    %526 = vmatpush.msra.mxu0 %v145
    %527 = vmatmul.f32.gmra.mxu0 %v398
    %v528 = vpop.f32.mrf.mxu0
    %v529 = vadd.f32 0.0, %v528
    %530 = vdwg.mxu0
    %v531 = vadd.f32 %v509, %v529
    %v532 = vadd.f32 %v531, %v172
    %v533 = vsub.f32 0.0, %v532
    %v534 = vmul.f32 %v533, 1.442695
    %v535 = vpow.pop %v534
    %v536 = vadd.f32 %v535, 1.0
    %v537 = vrcp.pop %v536
    %v538 = vmul.f32 %v536, %v537
    %v539 = vsub.f32 1.0, %v538
    %v540 = vmul.f32 %v537, %v539
    %v541 = vadd.f32 %v537, %v540
    %vm542 = vweird.f32 %v536
    %vm543 = vweird.f32 %v537
    %vm544 = vmor %vm542, %vm543
    %v545 = vsel %vm544, %v537, %v541
    %v546 = vand.u32 2147483647, %v536
    %vm547 = vcmp.eq.f32.partialorder %v546, 8.507059e+37
    %v548 = vand.u32 %v536, 2147483648
    %v549 = vor.u32 1.1754944e-38, %v548
    %v550 = vsel %vm547, %v549, %v545
    %v551 = vmul.f32 1.0, %v550
    %v552 = vtanh.pop %v532
    %v553 = vmul.f32 %v551, %v388
    %555 = vrot.lane.b32.xlu0 %v552, 64
    %v556 = vpop.permute.xlu0 %555
    %v558 = vmul.f32 %v551, %v556
    %560 = vrot.lane.b32.xlu0 %v558, 32
    %v561 = vpop.permute.xlu0 %560
    %v563 = vadd.f32 %v553, %v561
    %v564 = vtanh.pop %v563
    %566 = vrot.lane.b32.xlu0 %v564, 64
    %v567 = vpop.permute.xlu0 %566
    %v569 = vmul.f32 %v551, %v567
    %571 = vrot.lane.b32.xlu0 %v569, 32
    %v572 = vpop.permute.xlu0 %571
    %v573 = vsel %vm101, %v572, 0
    %575 = vmatpush.xpose.msra.mxu0 0.0
    %576 = vmatpush.xpose.msra.mxu0 0.0
    %577 = vmatpush.xpose.msra.mxu0 0.0
    %578 = vmatpush.xpose.msra.mxu0 0.0
    %579 = vmatpush.xpose.msra.mxu0 0.0
    %580 = vmatpush.xpose.msra.mxu0 0.0
    %581 = vmatpush.xpose.msra.mxu0 0.0
    %582 = vmatpush.xpose.msra.mxu0 0.0
    %583 = vmatpush.xpose.msra.mxu0 0.0
    %584 = vmatpush.xpose.msra.mxu0 0.0
    %585 = vmatpush.xpose.msra.mxu0 0.0
    %586 = vmatpush.xpose.msra.mxu0 0.0
    %587 = vmatpush.xpose.msra.mxu0 0.0
    %588 = vmatpush.xpose.msra.mxu0 0.0
    %589 = vmatpush.xpose.msra.mxu0 %v221
    %590 = vmatpush.xpose.msra.mxu0 %v218
    %591 = vmatmul.f32.gmra.mxu0 %v573
    %v592 = vpop.f32.mrf.mxu0
    %v593 = vadd.f32 0.0, %v592
    %594 = vdwg.mxu0
    %v595 = vsel %vm243, %v593, -1e+30
    %v596 = vsel %vm88, %v595, -inf
    %597 = vmax.xlane.f32.xlu0 %v596
    %v598 = vpop.xlane.xlu0 %597
    %v599 = vsub.f32 %v595, %v598
    %v600 = vmul.f32 %v599, 1.442695
    %v601 = vpow.pop %v600
    %v602 = vsel %vm88, %v601, 0.0
    %603 = vadd.xlane.f32.xlu0 %v602
    %v604 = vpop.xlane.xlu0 %603
    %v605 = vrcp.pop %v604
    %v606 = vmul.f32 %v604, %v605
    %v607 = vsub.f32 1.0, %v606
    %v608 = vmul.f32 %v605, %v607
    %v609 = vadd.f32 %v605, %v608
    %vm610 = vweird.f32 %v604
    %vm611 = vweird.f32 %v605
    %vm612 = vmor %vm610, %vm611
    %v613 = vsel %vm612, %v605, %v609
    %v614 = vand.u32 2147483647, %v604
    %vm615 = vcmp.eq.f32.partialorder %v614, 8.507059e+37
    %v616 = vand.u32 %v604, 2147483648
    %v617 = vor.u32 1.1754944e-38, %v616
    %v618 = vsel %vm615, %v617, %v613
    %v619 = vmul.f32 %v601, %v618
    %v621 = vsel %vm269, %v619, 0
    %623 = vmatpush.msra.mxu0 0.0
    %624 = vmatpush.msra.mxu0 0.0
    %625 = vmatpush.msra.mxu0 0.0
    %626 = vmatpush.msra.mxu0 0.0
    %627 = vmatpush.msra.mxu0 0.0
    %628 = vmatpush.msra.mxu0 0.0
    %629 = vmatpush.msra.mxu0 0.0
    %630 = vmatpush.msra.mxu0 0.0
    %631 = vmatpush.msra.mxu0 0.0
    %632 = vmatpush.msra.mxu0 0.0
    %633 = vmatpush.msra.mxu0 0.0
    %634 = vmatpush.msra.mxu0 0.0
    %635 = vmatpush.msra.mxu0 0.0
    %636 = vmatpush.msra.mxu0 0.0
    %637 = vmatpush.msra.mxu0 %v80
    %638 = vmatpush.msra.mxu0 %v79
    %639 = vmatmul.f32.gmra.mxu0 %v621
    %v640 = vpop.f32.mrf.mxu0
    %v641 = vadd.f32 0.0, %v640
    %642 = vdwg.mxu0
    %v643 = vld [vmem:[%s7] sm:$0xff]
    %v644 = vld [vmem:[%s7 + $0x8] sm:$0xff]
    %v645 = vld [vmem:[%s7 + $0x10] sm:$0xff]
    %v646 = vld [vmem:[%s7 + $0x18] sm:$0xff]
    %v647 = vld [vmem:[%s8] sm:$0xff]
    %v648 = vld [vmem:[%s8 + $0x8] sm:$0xff]
    %v649 = vld [vmem:[%s8 + $0x10] sm:$0xff]
    %v650 = vld [vmem:[%s8 + $0x18] sm:$0xff]
    %v652 = vsel %vm101, %v641, 0
    %654 = vmatpush.msra.mxu0 0.0
    %655 = vmatpush.msra.mxu0 0.0
    %656 = vmatpush.msra.mxu0 0.0
    %657 = vmatpush.msra.mxu0 0.0
    %658 = vmatpush.msra.mxu0 0.0
    %659 = vmatpush.msra.mxu0 0.0
    %660 = vmatpush.msra.mxu0 0.0
    %661 = vmatpush.msra.mxu0 0.0
    %662 = vmatpush.msra.mxu0 0.0
    %663 = vmatpush.msra.mxu0 0.0
    %664 = vmatpush.msra.mxu0 0.0
    %665 = vmatpush.msra.mxu0 0.0
    %666 = vmatpush.msra.mxu0 %v650
    %667 = vmatpush.msra.mxu0 %v649
    %668 = vmatpush.msra.mxu0 %v648
    %669 = vmatpush.msra.mxu0 %v647
    %670 = vmatmul.f32.gmra.mxu0 %v652
    %v671 = vpop.f32.mrf.mxu0
    %v672 = vadd.f32 0.0, %v671
    %673 = vdwg.mxu0
    %674 = vmatpush.msra.mxu0 0.0
    %675 = vmatpush.msra.mxu0 0.0
    %676 = vmatpush.msra.mxu0 0.0
    %677 = vmatpush.msra.mxu0 0.0
    %678 = vmatpush.msra.mxu0 0.0
    %679 = vmatpush.msra.mxu0 0.0
    %680 = vmatpush.msra.mxu0 0.0
    %681 = vmatpush.msra.mxu0 0.0
    %682 = vmatpush.msra.mxu0 0.0
    %683 = vmatpush.msra.mxu0 0.0
    %684 = vmatpush.msra.mxu0 0.0
    %685 = vmatpush.msra.mxu0 0.0
    %686 = vmatpush.msra.mxu0 %v646
    %687 = vmatpush.msra.mxu0 %v645
    %688 = vmatpush.msra.mxu0 %v644
    %689 = vmatpush.msra.mxu0 %v643
    %690 = vmatmul.f32.gmra.mxu0 %v573
    %v691 = vpop.f32.mrf.mxu0
    %v692 = vadd.f32 %v672, %v691
    %693 = vdwg.mxu0
    %v694 = vld [vmem:[%s9] sm:$0x1]
    %v696 = vperm.slane %v694, 0
    %v698 = vadd.f32 %v692, %v696
    %vm699 = vcmp.ge.f32.partialorder %v698, 0.0
    %v700 = vmul.f32 %v698, 0.01
    %v701 = vsel %vm699, %v698, %v700
    %v702 = vld [vmem:[%s10] sm:$0xff]
    %v703 = vld [vmem:[%s10 + $0x8] sm:$0xff]
    %v704 = vld [vmem:[%s10 + $0x10] sm:$0xff]
    %v705 = vld [vmem:[%s10 + $0x18] sm:$0xff]
    %v706 = vld [vmem:[#allocation2] sm:$0x1]
    %v708 = vperm.slane %v706, 0
    %v711 = vsel %vm101, %v701, 0
    %713 = vmatpush.msra.mxu0 0.0
    %714 = vmatpush.msra.mxu0 0.0
    %715 = vmatpush.msra.mxu0 0.0
    %716 = vmatpush.msra.mxu0 0.0
    %717 = vmatpush.msra.mxu0 0.0
    %718 = vmatpush.msra.mxu0 0.0
    %719 = vmatpush.msra.mxu0 0.0
    %720 = vmatpush.msra.mxu0 0.0
    %721 = vmatpush.msra.mxu0 0.0
    %722 = vmatpush.msra.mxu0 0.0
    %723 = vmatpush.msra.mxu0 0.0
    %724 = vmatpush.msra.mxu0 0.0
    %725 = vmatpush.msra.mxu0 %v705
    %726 = vmatpush.msra.mxu0 %v704
    %727 = vmatpush.msra.mxu0 %v703
    %728 = vmatpush.msra.mxu0 %v702
    %729 = vmatmul.f32.gmra.mxu0 %v711
    %v730 = vpop.f32.mrf.mxu0
    %v731 = vadd.f32 %v708, %v730
    %732 = vdwg.mxu0
    %vm733 = vcmask 1024
    %734 = vst.msk [vmem:[%s18] sm:$0x3] %vm733, %v731
    %v735 = vld [vmem:[%s12] sm:$0xff]
    %v736 = vld [vmem:[%s12 + $0x8] sm:$0xff]
    %v737 = vld [vmem:[%s12 + $0x10] sm:$0xff]
    %v738 = vld [vmem:[%s12 + $0x18] sm:$0xff]
    %v739 = vld [vmem:[%s13] sm:$0x1]
    %v741 = vperm.slane %v739, 0
    %v744 = vsel %vm101, %v65, 0
    %v747 = vsel %vm101, %v66, 0
    %749 = vmatpush.msra.mxu0 0.0
    %750 = vmatpush.msra.mxu0 0.0
    %751 = vmatpush.msra.mxu0 0.0
    %752 = vmatpush.msra.mxu0 0.0
    %753 = vmatpush.msra.mxu0 0.0
    %754 = vmatpush.msra.mxu0 0.0
    %755 = vmatpush.msra.mxu0 0.0
    %756 = vmatpush.msra.mxu0 0.0
    %757 = vmatpush.msra.mxu0 0.0
    %758 = vmatpush.msra.mxu0 0.0
    %759 = vmatpush.msra.mxu0 0.0
    %760 = vmatpush.msra.mxu0 0.0
    %761 = vmatpush.msra.mxu0 %v738
    %762 = vmatpush.msra.mxu0 %v737
    %763 = vmatpush.msra.mxu0 %v736
    %764 = vmatpush.msra.mxu0 %v735
    %765 = vmatmul.f32.gmra.mxu0 %v744
    %v766 = vpop.f32.mrf.mxu0
    %v767 = vadd.f32 %v741, %v766
    %768 = vmatmul.f32.gmra.mxu0 %v747
    %v769 = vpop.f32.mrf.mxu0
    %v770 = vadd.f32 %v741, %v769
    %771 = vdwg.mxu0
    %v772 = vand.u32 2147483647, %v767
    %v773 = vand.u32 2147483647, %v770
    %v774 = vsub.f32 0.0, %v772
    %v775 = vsub.f32 0.0, %v773
    %v776 = vmul.f32 %v774, 1.442695
    %v777 = vpow.pop %v776
    %v778 = vmul.f32 %v775, 1.442695
    %v779 = vpow.pop %v778
    %v780 = vadd.f32 %v777, 1.0
    %v781 = vadd.f32 %v779, 1.0
    %v782 = vlog2.pop %v780
    %v783 = vmul.f32 %v782, 0.6931472
    %v784 = vlog2.pop %v781
    %v785 = vmul.f32 %v784, 0.6931472
    %v786 = vmax.f32 %v767, 0.0
    %v787 = vmax.f32 %v770, 0.0
    %v788 = vadd.f32 %v783, %v786
    %v789 = vadd.f32 %v785, %v787
    %v790 = vsub.f32 %v788, 0.6931472
    %v791 = vsub.f32 %v789, 0.6931472
    %v792 = vld [vmem:[%s14] sm:$0xff]
    %v793 = vld [vmem:[%s14 + $0x8] sm:$0xff]
    %v794 = vld [vmem:[%s14 + $0x10] sm:$0xff]
    %v795 = vld [vmem:[%s14 + $0x18] sm:$0xff]
    %v796 = vld [vmem:[%s15] sm:$0x1]
    %v798 = vperm.slane %v796, 0
    %v801 = vsel %vm101, %v790, 0
    %v804 = vsel %vm101, %v791, 0
    %806 = vmatpush.msra.mxu0 0.0
    %807 = vmatpush.msra.mxu0 0.0
    %808 = vmatpush.msra.mxu0 0.0
    %809 = vmatpush.msra.mxu0 0.0
    %810 = vmatpush.msra.mxu0 0.0
    %811 = vmatpush.msra.mxu0 0.0
    %812 = vmatpush.msra.mxu0 0.0
    %813 = vmatpush.msra.mxu0 0.0
    %814 = vmatpush.msra.mxu0 0.0
    %815 = vmatpush.msra.mxu0 0.0
    %816 = vmatpush.msra.mxu0 0.0
    %817 = vmatpush.msra.mxu0 0.0
    %818 = vmatpush.msra.mxu0 %v795
    %819 = vmatpush.msra.mxu0 %v794
    %820 = vmatpush.msra.mxu0 %v793
    %821 = vmatpush.msra.mxu0 %v792
    %822 = vmatmul.f32.gmra.mxu0 %v801
    %v823 = vpop.f32.mrf.mxu0
    %v824 = vadd.f32 %v798, %v823
    %825 = vmatmul.f32.gmra.mxu0 %v804
    %v826 = vpop.f32.mrf.mxu0
    %v827 = vadd.f32 %v798, %v826
    %828 = vdwg.mxu0
    %vm829 = vcmask 23552
    %830 = vst.msk [vmem:[%s19] sm:$0xff] %vm829, %v824
    %831 = vst.msk [vmem:[%s19 + $0x8] sm:$0xff] %vm829, %v827
    %v832 = vld [vmem:[%s16] sm:$0xff]
    %v833 = vld [vmem:[%s16 + $0x8] sm:$0xff]
    %v834 = vld [vmem:[%s16 + $0x10] sm:$0xff]
    %v835 = vld [vmem:[%s16 + $0x18] sm:$0xff]
    %v836 = vld [vmem:[%s17] sm:$0x1]
    %v838 = vperm.slane %v836, 0
    %840 = vmatpush.msra.mxu0 0.0
    %841 = vmatpush.msra.mxu0 0.0
    %842 = vmatpush.msra.mxu0 0.0
    %843 = vmatpush.msra.mxu0 0.0
    %844 = vmatpush.msra.mxu0 0.0
    %845 = vmatpush.msra.mxu0 0.0
    %846 = vmatpush.msra.mxu0 0.0
    %847 = vmatpush.msra.mxu0 0.0
    %848 = vmatpush.msra.mxu0 0.0
    %849 = vmatpush.msra.mxu0 0.0
    %850 = vmatpush.msra.mxu0 0.0
    %851 = vmatpush.msra.mxu0 0.0
    %852 = vmatpush.msra.mxu0 %v835
    %853 = vmatpush.msra.mxu0 %v834
    %854 = vmatpush.msra.mxu0 %v833
    %855 = vmatpush.msra.mxu0 %v832
    %856 = vmatmul.f32.gmra.mxu0 %v744
    %v857 = vpop.f32.mrf.mxu0
    %v858 = vadd.f32 %v838, %v857
    %859 = vmatmul.f32.gmra.mxu0 %v747
    %v860 = vpop.f32.mrf.mxu0
    %v861 = vadd.f32 %v838, %v860
    %862 = vdwg.mxu0
    %v864 = vsel %vm269, %v87, 0
    %866 = vmatpush.msra.mxu0 0.0
    %867 = vmatpush.msra.mxu0 0.0
    %868 = vmatpush.msra.mxu0 0.0
    %869 = vmatpush.msra.mxu0 0.0
    %870 = vmatpush.msra.mxu0 0.0
    %871 = vmatpush.msra.mxu0 0.0
    %872 = vmatpush.msra.mxu0 0.0
    %873 = vmatpush.msra.mxu0 0.0
    %874 = vmatpush.msra.mxu0 0.0
    %875 = vmatpush.msra.mxu0 0.0
    %876 = vmatpush.msra.mxu0 0.0
    %877 = vmatpush.msra.mxu0 0.0
    %878 = vmatpush.msra.mxu0 0.0
    %879 = vmatpush.msra.mxu0 0.0
    %880 = vmatpush.msra.mxu0 %v861
    %881 = vmatpush.msra.mxu0 %v858
    %882 = vmatmul.f32.gmra.mxu0 %v864
    %v883 = vpop.f32.mrf.mxu0
    %v884 = vadd.f32 0.0, %v883
    %885 = vdwg.mxu0
    %v886 = vrcp.pop %v92
    %v887 = vmul.f32 %v92, %v886
    %v888 = vsub.f32 1.0, %v887
    %v889 = vmul.f32 %v886, %v888
    %v890 = vadd.f32 %v886, %v889
    %vm891 = vweird.f32 %v92
    %vm892 = vweird.f32 %v886
    %vm893 = vmor %vm891, %vm892
    %v894 = vsel %vm893, %v886, %v890
    %v895 = vand.u32 2147483647, %v92
    %vm896 = vcmp.eq.f32.partialorder %v895, 8.507059e+37
    %v897 = vand.u32 %v92, 2147483648
    %v898 = vor.u32 1.1754944e-38, %v897
    %v899 = vsel %vm896, %v898, %v894
    %v900 = vmul.f32 %v884, %v899
    %vm901 = vcmask 41984
    %902 = vst.msk [vmem:[#allocation3] sm:$0x3] %vm901, %v900
    // Predicated region
    $region74: #{cggru_forward.3} parent=1 // pred_check
      _
    $region75: #{cggru_forward.3} parent=1 // pred_check_branch
      %904 = sbr.rel (0) target = $region77
    $region76: #{cggru_forward.3} parent=1 // pred_region
      _
    $region77: #{cggru_forward.3} parent=1 // pred_fallthru
      _
    // Predicated region
    $region78: #{cggru_forward.3} parent=1 // pred_check
      _
    $region79: #{cggru_forward.3} parent=1 // pred_check_branch
      %906 = sbr.rel (0) target = $region81
    $region80: #{cggru_forward.3} parent=1 // pred_region
      _
    $region81: #{cggru_forward.3} parent=1 // pred_fallthru
      _
    // Predicated region
    $region82: #{cggru_forward.3} parent=1 // pred_check
      _
    $region83: #{cggru_forward.3} parent=1 // pred_check_branch
      %908 = sbr.rel (0) target = $region85
    $region84: #{cggru_forward.3} parent=1 // pred_region
      %910 = vsyncadd [#allocation4], 0
      %s912 = sshll.u32 [#allocation3], 4
      %s913 = int_to_ptr.vmem [resolvable:$true] %s912
      %s914 = sshll.u32 %s20, 4
      %s915 = int_to_ptr.hbm [resolvable:$true] %s914
      %917 = dma.vmem_to_hbm [thread:$0]  %s913, 32, %s915, [#allocation4]
    $region85: #{cggru_forward.3} parent=1 // pred_fallthru
      _
    // Predicated region
    $region86: #{cggru_forward.3} parent=1 // pred_check
      _
    $region87: #{cggru_forward.3} parent=1 // pred_check_branch
      %919 = sbr.rel (0) target = $region89
    $region88: #{cggru_forward.3} parent=1 // pred_region
      _
    $region89: #{cggru_forward.3} parent=1 // pred_fallthru
      _
    // Predicated region
    $region90: #{cggru_forward.3} parent=1 // pred_check
      _
    $region91: #{cggru_forward.3} parent=1 // pred_check_branch
      %921 = sbr.rel (0) target = $region93
    $region92: #{cggru_forward.3} parent=1 // pred_region
      _
    $region93: #{cggru_forward.3} parent=1 // pred_fallthru
      _
    // Predicated region
    $region94: #{cggru_forward.3} parent=1 // pred_check
      _
    $region95: #{cggru_forward.3} parent=1 // pred_check_branch
      %923 = sbr.rel (0) target = $region97
    $region96: #{cggru_forward.3} parent=1 // pred_region
      %925 = dma.done [#allocation4], 32
    $region97: #{cggru_forward.3} parent=1 // pred_fallthru
      _
    %926 = vsyncpa [#allocation4], 1

</llo_original>
